<compile_context>
chip_gen: v6e
topology: v6e:2x2x1
jax: 0.10.0
libtpu: 0.0.40
codegen_flags: <defaults>
</compile_context>

<pallas_src>
import functools

import jax
import jax.numpy as jnp
from jax.experimental import pallas as pl
from jax.experimental.pallas import tpu as pltpu


def _conv3x3_sigmoid(w_ref, b_ref, xpad_ref, tap_masks, *, W, L, P):
    """3x3 SAME conv + bias + sigmoid on the activation stored in the centre of
    `xpad_ref` (shape (Cin, L + 2P); TN images concatenated along lanes, pad
    columns already zero).

      w_ref     : VMEM (9, Cout, Cin) f32, tap index = ky*3 + kx
      b_ref     : VMEM (Cout, 1) f32
      tap_masks : 9 Optional[(1, L) bool] masks (precomputed once per step)
    Returns (Cout, L) f32.
    """
    cout = b_ref.shape[0]
    acc = jnp.zeros((cout, L), jnp.float32)
    for ky in range(3):
        for kx in range(3):
            tap = ky * 3 + kx
            off = (ky - 1) * W + (kx - 1)
            # Shifted tap as a register value (no im2col scratch round trip).
            t = xpad_ref[:, P + off:P + off + L]                 # (Cin, L)
            m = tap_masks[tap]
            if m is not None:
                t = jnp.where(m, t, 0.0)
            # One small MXU matmul per tap (K = Cin), accumulated in registers.
            # Trades a single K=9*Cin push for the removal of the misaligned
            # scratch stores + reload; the MXU is nowhere near the bottleneck
            # at these sizes.
            acc = acc + jnp.dot(w_ref[tap], t,
                                preferred_element_type=jnp.float32)
    return jax.nn.sigmoid(acc + b_ref[...])


def _dacon_fused_kernel(w1_ref, b1_ref, w2_ref, b2_ref, x_ref, o_ref, xpad_ref,
                        *, H, W, TN):
    """Fused: sigmoid(conv1(x)) -> + x -> sigmoid(conv2(.)), all in VMEM."""
    HW = H * W
    L = TN * HW            # lane extent: TN images side by side
    P = W + 1              # zero-pad width on each side of the flattened axis
    C1 = x_ref.shape[1]

    # Zero ONLY the pad columns; the centre is fully overwritten every stage.
    # Done every step (not gated on program_id): with "parallel" semantics each
    # core runs a disjoint subset of steps with its own scratch.
    zpad = jnp.zeros((C1, P), jnp.float32)
    xpad_ref[:, 0:P] = zpad
    xpad_ref[:, P + L:P + L + P] = zpad

    # Per-tap out-of-image masks, computed ONCE (JAX does not CSE
    # broadcast_in_dim) at (1, L) and reused by both stages.  The row masks for
    # ky = 0/2 also kill any cross-image bleed from the lane-packed layout.
    pos = jax.lax.broadcasted_iota(jnp.int32, (1, L), 1)
    if (W & (W - 1)) == 0 and (H & (H - 1)) == 0:      # power-of-two fast path
        col = pos & (W - 1)
        row = (pos >> (W.bit_length() - 1)) & (H - 1)
    else:
        col = pos % W
        row = (pos // W) % H
    left_ok = col >= 1            # needed for kx == 0
    right_ok = col <= W - 2       # needed for kx == 2
    top_ok = row >= 1             # needed for ky == 0
    bot_ok = row <= H - 2         # needed for ky == 2

    def tap_mask(ky, kx):
        m = None
        if ky == 0:
            m = top_ok
        elif ky == 2:
            m = bot_ok
        if kx == 0:
            m = left_ok if m is None else jnp.logical_and(m, left_ok)
        elif kx == 2:
            m = right_ok if m is None else jnp.logical_and(m, right_ok)
        return m

    tap_masks = [tap_mask(ky, kx) for ky in range(3) for kx in range(3)]

    # Lane-dense activation: TN images concatenated along lanes (offsets are
    # multiples of HW >= 128, so the concat is lane-aligned and cheap).
    parts = [x_ref[t].astype(jnp.float32) for t in range(TN)]
    xf = parts[0] if TN == 1 else jnp.concatenate(parts, axis=-1)   # (C1, L)

    # model_first head (3x3 SAME conv + sigmoid)
    xpad_ref[:, P:P + L] = xf
    y1 = _conv3x3_sigmoid(w1_ref, b1_ref, xpad_ref, tap_masks, W=W, L=L, P=P)

    # skip connection: output + x   (requires classes == in_channels)
    s = y1 + xf

    # model_second head — the intermediate never leaves VMEM/registers.
    xpad_ref[:, P:P + L] = s
    y2 = _conv3x3_sigmoid(w2_ref, b2_ref, xpad_ref, tap_masks, W=W, L=L, P=P)

    # Lane-dense output stores: per-image slices start at multiples of HW,
    # so every store is an unmasked full-lane vst.
    for t in range(TN):
        o_ref[t] = y2[:, t * HW:(t + 1) * HW].astype(o_ref.dtype)


def _images_per_step(N):
    """How many images to fold into one grid step.

    Batch as much as possible per step (per-step overhead dominates at these
    sizes), but keep >= 2 grid steps on multi-TensorCore chips (v7x / megacore)
    so dimension_semantics=("parallel",) can shard steps across cores.
    Single-TC chips (v5e/v6e) collapse the whole batch into one step.
    """
    try:
        kind = jax.devices()[0].device_kind.lower()
    except Exception:          # defensive: never fail the wrapper on this
        kind = ""
    multi_core = any(tag in kind for tag in ("v7", "7x", "v4", "v5p"))
    steps = 2 if (multi_core and N >= 2) else 1
    return -(-N // steps)      # cdiv


def dacon_forward(x, w1, b1, w2, b2, *, images_per_step=None):
    """x: (N, Cin, H, W); w*: (Cout, Cin, 3, 3); b*: (Cout,)."""
    N, C1, H, W = x.shape
    C2 = b1.shape[0]
    C3 = b2.shape[0]
    if C2 != C1:
        # Pallas does no VMEM bounds checking; the skip add silently assumes this.
        raise ValueError("skip add (output + x) requires classes == in_channels")
    HW = H * W

    TN = images_per_step if images_per_step is not None else _images_per_step(N)
    TN = max(1, min(TN, N))
    steps = -(-N // TN)
    Np = steps * TN

    # Lane-dense flatten (contiguous -> free reshape).  Pad the batch with
    # zeros so every grid step sees a full (TN, C1, HW) block; padded rows are
    # discarded after the call.
    xf = x.reshape(N, C1, HW)
    if Np != N:
        xf = jnp.concatenate([xf, jnp.zeros((Np - N, C1, HW), x.dtype)], axis=0)

    # Pack weights tap-major: (Cout, Cin, ky, kx) -> (ky*3+kx, Cout, Cin).
    # Kept in f32 (tiny head).  At real UNet++ feature-map sizes, cast the
    # matmul operands to bf16 (keep f32 accumulation) and tile H*W on the lane
    # axis via a grid dimension so the working set fits v7x's 64 MiB VMEM.
    w1p = jnp.transpose(w1, (2, 3, 0, 1)).reshape(9, C2, C1).astype(jnp.float32)
    w2p = jnp.transpose(w2, (2, 3, 0, 1)).reshape(9, C3, C2).astype(jnp.float32)
    b1c = b1.reshape(C2, 1).astype(jnp.float32)
    b2c = b2.reshape(C3, 1).astype(jnp.float32)

    kernel = functools.partial(_dacon_fused_kernel, H=H, W=W, TN=TN)
    out = pl.pallas_call(
        kernel,
        out_shape=jax.ShapeDtypeStruct((Np, C3, HW), x.dtype),
        grid=(steps,),
        in_specs=[
            pl.BlockSpec((9, C2, C1), lambda n: (0, 0, 0)),    # w1 (VMEM tile)
            pl.BlockSpec((C2, 1), lambda n: (0, 0)),           # b1
            pl.BlockSpec((9, C3, C2), lambda n: (0, 0, 0)),    # w2
            pl.BlockSpec((C3, 1), lambda n: (0, 0)),           # b2
            pl.BlockSpec((TN, C1, HW), lambda n: (n, 0, 0)),   # x (lane-dense)
        ],
        out_specs=pl.BlockSpec((TN, C3, HW), lambda n: (n, 0, 0)),
        scratch_shapes=[
            # Single padded-activation scratch (no im2col scratch any more);
            # only the 2*(W+1) pad columns are zeroed per step.
            pltpu.VMEM((C1, TN * HW + 2 * (W + 1)), jnp.float32),
        ],
        compiler_params=pltpu.CompilerParams(
            dimension_semantics=("parallel",)),
    )(w1p, b1c, w2p, b2c, xf)

    if Np != N:
        out = out[:N]
    return out.reshape(N, C3, H, W)


def _reference(x, w1, b1, w2, b2):
    """Pure-JAX reference for correctness checking."""
    def conv_sig(inp, w, b):
        y = jax.lax.conv_general_dilated(
            inp, w, window_strides=(1, 1), padding="SAME",
            dimension_numbers=("NCHW", "OIHW", "NCHW"),
        )
        return jax.nn.sigmoid(y + b[None, :, None, None])

    s = conv_sig(x, w1, b1) + x
    return conv_sig(s, w2, b2)


if __name__ == "__main__":
    key = jax.random.PRNGKey(0)
    k1, k2, k3, k4, k5 = jax.random.split(key, 5)

    N, C, H, W = 2, 3, 16, 16          # Dacon default: in_channels = classes = 3
    x = jax.random.normal(k1, (N, C, H, W), dtype=jnp.float32)
    w1 = jax.random.normal(k2, (C, C, 3, 3), dtype=jnp.float32) * 0.1
    b1 = jax.random.normal(k3, (C,), dtype=jnp.float32) * 0.1
    w2 = jax.random.normal(k4, (C, C, 3, 3), dtype=jnp.float32) * 0.1
    b2 = jax.random.normal(k5, (C,), dtype=jnp.float32) * 0.1

    out = jax.jit(dacon_forward)(x, w1, b1, w2, b2)
    jax.block_until_ready(out)

    ref = _reference(x, w1, b1, w2, b2)
    assert out.shape == (N, C, H, W)
    assert jnp.allclose(out, ref, atol=1e-4, rtol=1e-4), "mismatch vs reference"

    print("KERNEL_OK")
</pallas_src>

<mosaic_0001>
module attributes {stable_mosaic.version = 11 : i64} {
  func.func @_dacon_fused_kernel(%arg0: i32, %arg1: memref<9x3x3xf32, #tpu.memory_space<vmem>>, %arg2: memref<3x1xf32, #tpu.memory_space<vmem>>, %arg3: memref<9x3x3xf32, #tpu.memory_space<vmem>>, %arg4: memref<3x1xf32, #tpu.memory_space<vmem>>, %arg5: memref<2x3x256xf32, #tpu.memory_space<vmem>>, %arg6: memref<2x3x256xf32, #tpu.memory_space<vmem>>, %arg7: memref<3x546xf32, #tpu.memory_space<vmem>>) attributes {dimension_semantics = [#tpu.dimension_semantics<parallel>], iteration_bounds = array<i64: 1>, scalar_prefetch = 0 : i64, scratch_operands = 1 : i64, tpu.core_type = #tpu.core_type<tc>, window_params = [{pipeline_mode = #tpu.pipeline_mode<synchronous>, transform_indices = @transform_0, window_bounds = array<i64: 9, 3, 3>}, {pipeline_mode = #tpu.pipeline_mode<synchronous>, transform_indices = @transform_1, window_bounds = array<i64: 3, 1>}, {pipeline_mode = #tpu.pipeline_mode<synchronous>, transform_indices = @transform_2, window_bounds = array<i64: 9, 3, 3>}, {pipeline_mode = #tpu.pipeline_mode<synchronous>, transform_indices = @transform_3, window_bounds = array<i64: 3, 1>}, {transform_indices = @transform_4, window_bounds = array<i64: 2, 3, 256>}, {transform_indices = @transform_5, window_bounds = array<i64: 2, 3, 256>}]} {
    %cst = arith.constant 0.000000e+00 : f32
    %0 = vector.broadcast %cst : f32 to vector<3x17xf32>
    %c0 = arith.constant 0 : index
    %c0_0 = arith.constant 0 : index
    %1 = vector.load %arg7[%c0, %c0_0] : memref<3x546xf32, #tpu.memory_space<vmem>>, vector<3x17xf32>
    tpu.vector_store %arg7[%c0, %c0_0], %0 {strides = array<i32>} : memref<3x546xf32, #tpu.memory_space<vmem>>, vector<3x17xf32>,
    %c0_1 = arith.constant 0 : index
    %c529 = arith.constant 529 : index
    %2 = vector.load %arg7[%c0_1, %c529] : memref<3x546xf32, #tpu.memory_space<vmem>>, vector<3x17xf32>
    tpu.vector_store %arg7[%c0_1, %c529], %0 {strides = array<i32>} : memref<3x546xf32, #tpu.memory_space<vmem>>, vector<3x17xf32>,
    %3 = tpu.iota {dimensions = array<i32: 1>} : vector<1x512xi32>
    %c15_i32 = arith.constant 15 : i32
    %4 = vector.broadcast %c15_i32 : i32 to vector<1x512xi32>
    %5 = arith.andi %3, %4 : vector<1x512xi32>
    %c4_i32 = arith.constant 4 : i32
    %6 = vector.broadcast %c4_i32 : i32 to vector<1x512xi32>
    %7 = arith.shrsi %3, %6 : vector<1x512xi32>
    %c15_i32_2 = arith.constant 15 : i32
    %8 = vector.broadcast %c15_i32_2 : i32 to vector<1x512xi32>
    %9 = arith.andi %7, %8 : vector<1x512xi32>
    %c1_i32 = arith.constant 1 : i32
    %10 = vector.broadcast %c1_i32 : i32 to vector<1x512xi32>
    %11 = arith.cmpi sge, %5, %10 : vector<1x512xi32>
    %c14_i32 = arith.constant 14 : i32
    %12 = vector.broadcast %c14_i32 : i32 to vector<1x512xi32>
    %13 = arith.cmpi sle, %5, %12 : vector<1x512xi32>
    %c1_i32_3 = arith.constant 1 : i32
    %14 = vector.broadcast %c1_i32_3 : i32 to vector<1x512xi32>
    %15 = arith.cmpi sge, %9, %14 : vector<1x512xi32>
    %c14_i32_4 = arith.constant 14 : i32
    %16 = vector.broadcast %c14_i32_4 : i32 to vector<1x512xi32>
    %17 = arith.cmpi sle, %9, %16 : vector<1x512xi32>
    %18 = arith.andi %15, %11 : vector<1x512xi1>
    %19 = arith.andi %15, %13 : vector<1x512xi1>
    %20 = arith.andi %17, %11 : vector<1x512xi1>
    %21 = arith.andi %17, %13 : vector<1x512xi1>
    %c0_5 = arith.constant 0 : index
    %c0_6 = arith.constant 0 : index
    %c0_7 = arith.constant 0 : index
    %22 = vector.load %arg5[%c0_5, %c0_6, %c0_7] : memref<2x3x256xf32, #tpu.memory_space<vmem>>, vector<1x3x256xf32>
    %23 = vector.shape_cast %22 : vector<1x3x256xf32> to vector<3x256xf32>
    %c1 = arith.constant 1 : index
    %c0_8 = arith.constant 0 : index
    %c0_9 = arith.constant 0 : index
    %24 = vector.load %arg5[%c1, %c0_8, %c0_9] : memref<2x3x256xf32, #tpu.memory_space<vmem>>, vector<1x3x256xf32>
    %25 = vector.shape_cast %24 : vector<1x3x256xf32> to vector<3x256xf32>
    %26 = tpu.concatenate %23, %25 in 1 : vector<3x256xf32>, vector<3x256xf32> -> vector<3x512xf32>
    %c0_10 = arith.constant 0 : index
    %c17 = arith.constant 17 : index
    %27 = vector.load %arg7[%c0_10, %c17] : memref<3x546xf32, #tpu.memory_space<vmem>>, vector<3x512xf32>
    tpu.vector_store %arg7[%c0_10, %c17], %26 {strides = array<i32>} : memref<3x546xf32, #tpu.memory_space<vmem>>, vector<3x512xf32>,
    %cst_11 = arith.constant 0.000000e+00 : f32
    %28 = vector.broadcast %cst_11 : f32 to vector<3x512xf32>
    %c0_12 = arith.constant 0 : index
    %c0_13 = arith.constant 0 : index
    %29 = vector.load %arg7[%c0_12, %c0_13] : memref<3x546xf32, #tpu.memory_space<vmem>>, vector<3x512xf32>
    %cst_14 = arith.constant 0.000000e+00 : f32
    %30 = vector.shape_cast %18 : vector<1x512xi1> to vector<1x512xi1>
    %31 = vector.broadcast %30 : vector<1x512xi1> to vector<3x512xi1>
    %32 = vector.broadcast %cst_14 : f32 to vector<3x512xf32>
    %33 = arith.select %31, %29, %32 : vector<3x512xi1>, vector<3x512xf32>
    %c0_15 = arith.constant 0 : index
    %c0_16 = arith.constant 0 : index
    %c0_17 = arith.constant 0 : index
    %34 = vector.load %arg1[%c0_15, %c0_16, %c0_17] : memref<9x3x3xf32, #tpu.memory_space<vmem>>, vector<1x3x3xf32>
    %35 = vector.shape_cast %34 : vector<1x3x3xf32> to vector<3x3xf32>
    %cst_18 = arith.constant dense<0.000000e+00> : vector<3x512xf32>
    %36 = tpu.matmul %35, %33, %cst_18 {dimension_numbers = #tpu.dot_dimension_numbers<[1], [0], [0], [1], [0, 0, 1, 1], [], []>} : vector<3x3xf32>, vector<3x512xf32>, vector<3x512xf32> -> vector<3x512xf32>
    %37 = arith.addf %28, %36 : vector<3x512xf32>
    %c0_19 = arith.constant 0 : index
    %c1_20 = arith.constant 1 : index
    %38 = vector.load %arg7[%c0_19, %c1_20] : memref<3x546xf32, #tpu.memory_space<vmem>>, vector<3x512xf32>
    %cst_21 = arith.constant 0.000000e+00 : f32
    %39 = vector.shape_cast %15 : vector<1x512xi1> to vector<1x512xi1>
    %40 = vector.broadcast %39 : vector<1x512xi1> to vector<3x512xi1>
    %41 = vector.broadcast %cst_21 : f32 to vector<3x512xf32>
    %42 = arith.select %40, %38, %41 : vector<3x512xi1>, vector<3x512xf32>
    %c1_22 = arith.constant 1 : index
    %c0_23 = arith.constant 0 : index
    %c0_24 = arith.constant 0 : index
    %43 = vector.load %arg1[%c1_22, %c0_23, %c0_24] : memref<9x3x3xf32, #tpu.memory_space<vmem>>, vector<1x3x3xf32>
    %44 = vector.shape_cast %43 : vector<1x3x3xf32> to vector<3x3xf32>
    %cst_25 = arith.constant dense<0.000000e+00> : vector<3x512xf32>
    %45 = tpu.matmul %44, %42, %cst_25 {dimension_numbers = #tpu.dot_dimension_numbers<[1], [0], [0], [1], [0, 0, 1, 1], [], []>} : vector<3x3xf32>, vector<3x512xf32>, vector<3x512xf32> -> vector<3x512xf32>
    %46 = arith.addf %37, %45 : vector<3x512xf32>
    %c0_26 = arith.constant 0 : index
    %c2 = arith.constant 2 : index
    %47 = vector.load %arg7[%c0_26, %c2] : memref<3x546xf32, #tpu.memory_space<vmem>>, vector<3x512xf32>
    %cst_27 = arith.constant 0.000000e+00 : f32
    %48 = vector.shape_cast %19 : vector<1x512xi1> to vector<1x512xi1>
    %49 = vector.broadcast %48 : vector<1x512xi1> to vector<3x512xi1>
    %50 = vector.broadcast %cst_27 : f32 to vector<3x512xf32>
    %51 = arith.select %49, %47, %50 : vector<3x512xi1>, vector<3x512xf32>
    %c2_28 = arith.constant 2 : index
    %c0_29 = arith.constant 0 : index
    %c0_30 = arith.constant 0 : index
    %52 = vector.load %arg1[%c2_28, %c0_29, %c0_30] : memref<9x3x3xf32, #tpu.memory_space<vmem>>, vector<1x3x3xf32>
    %53 = vector.shape_cast %52 : vector<1x3x3xf32> to vector<3x3xf32>
    %cst_31 = arith.constant dense<0.000000e+00> : vector<3x512xf32>
    %54 = tpu.matmul %53, %51, %cst_31 {dimension_numbers = #tpu.dot_dimension_numbers<[1], [0], [0], [1], [0, 0, 1, 1], [], []>} : vector<3x3xf32>, vector<3x512xf32>, vector<3x512xf32> -> vector<3x512xf32>
    %55 = arith.addf %46, %54 : vector<3x512xf32>
    %c0_32 = arith.constant 0 : index
    %c16 = arith.constant 16 : index
    %56 = vector.load %arg7[%c0_32, %c16] : memref<3x546xf32, #tpu.memory_space<vmem>>, vector<3x512xf32>
    %cst_33 = arith.constant 0.000000e+00 : f32
    %57 = vector.shape_cast %11 : vector<1x512xi1> to vector<1x512xi1>
    %58 = vector.broadcast %57 : vector<1x512xi1> to vector<3x512xi1>
    %59 = vector.broadcast %cst_33 : f32 to vector<3x512xf32>
    %60 = arith.select %58, %56, %59 : vector<3x512xi1>, vector<3x512xf32>
    %c3 = arith.constant 3 : index
    %c0_34 = arith.constant 0 : index
    %c0_35 = arith.constant 0 : index
    %61 = vector.load %arg1[%c3, %c0_34, %c0_35] : memref<9x3x3xf32, #tpu.memory_space<vmem>>, vector<1x3x3xf32>
    %62 = vector.shape_cast %61 : vector<1x3x3xf32> to vector<3x3xf32>
    %cst_36 = arith.constant dense<0.000000e+00> : vector<3x512xf32>
    %63 = tpu.matmul %62, %60, %cst_36 {dimension_numbers = #tpu.dot_dimension_numbers<[1], [0], [0], [1], [0, 0, 1, 1], [], []>} : vector<3x3xf32>, vector<3x512xf32>, vector<3x512xf32> -> vector<3x512xf32>
    %64 = arith.addf %55, %63 : vector<3x512xf32>
    %c0_37 = arith.constant 0 : index
    %c17_38 = arith.constant 17 : index
    %65 = vector.load %arg7[%c0_37, %c17_38] : memref<3x546xf32, #tpu.memory_space<vmem>>, vector<3x512xf32>
    %c4 = arith.constant 4 : index
    %c0_39 = arith.constant 0 : index
    %c0_40 = arith.constant 0 : index
    %66 = vector.load %arg1[%c4, %c0_39, %c0_40] : memref<9x3x3xf32, #tpu.memory_space<vmem>>, vector<1x3x3xf32>
    %67 = vector.shape_cast %66 : vector<1x3x3xf32> to vector<3x3xf32>
    %cst_41 = arith.constant dense<0.000000e+00> : vector<3x512xf32>
    %68 = tpu.matmul %67, %65, %cst_41 {dimension_numbers = #tpu.dot_dimension_numbers<[1], [0], [0], [1], [0, 0, 1, 1], [], []>} : vector<3x3xf32>, vector<3x512xf32>, vector<3x512xf32> -> vector<3x512xf32>
    %69 = arith.addf %64, %68 : vector<3x512xf32>
    %c0_42 = arith.constant 0 : index
    %c18 = arith.constant 18 : index
    %70 = vector.load %arg7[%c0_42, %c18] : memref<3x546xf32, #tpu.memory_space<vmem>>, vector<3x512xf32>
    %cst_43 = arith.constant 0.000000e+00 : f32
    %71 = vector.shape_cast %13 : vector<1x512xi1> to vector<1x512xi1>
    %72 = vector.broadcast %71 : vector<1x512xi1> to vector<3x512xi1>
    %73 = vector.broadcast %cst_43 : f32 to vector<3x512xf32>
    %74 = arith.select %72, %70, %73 : vector<3x512xi1>, vector<3x512xf32>
    %c5 = arith.constant 5 : index
    %c0_44 = arith.constant 0 : index
    %c0_45 = arith.constant 0 : index
    %75 = vector.load %arg1[%c5, %c0_44, %c0_45] : memref<9x3x3xf32, #tpu.memory_space<vmem>>, vector<1x3x3xf32>
    %76 = vector.shape_cast %75 : vector<1x3x3xf32> to vector<3x3xf32>
    %cst_46 = arith.constant dense<0.000000e+00> : vector<3x512xf32>
    %77 = tpu.matmul %76, %74, %cst_46 {dimension_numbers = #tpu.dot_dimension_numbers<[1], [0], [0], [1], [0, 0, 1, 1], [], []>} : vector<3x3xf32>, vector<3x512xf32>, vector<3x512xf32> -> vector<3x512xf32>
    %78 = arith.addf %69, %77 : vector<3x512xf32>
    %c0_47 = arith.constant 0 : index
    %c32 = arith.constant 32 : index
    %79 = vector.load %arg7[%c0_47, %c32] : memref<3x546xf32, #tpu.memory_space<vmem>>, vector<3x512xf32>
    %cst_48 = arith.constant 0.000000e+00 : f32
    %80 = vector.shape_cast %20 : vector<1x512xi1> to vector<1x512xi1>
    %81 = vector.broadcast %80 : vector<1x512xi1> to vector<3x512xi1>
    %82 = vector.broadcast %cst_48 : f32 to vector<3x512xf32>
    %83 = arith.select %81, %79, %82 : vector<3x512xi1>, vector<3x512xf32>
    %c6 = arith.constant 6 : index
    %c0_49 = arith.constant 0 : index
    %c0_50 = arith.constant 0 : index
    %84 = vector.load %arg1[%c6, %c0_49, %c0_50] : memref<9x3x3xf32, #tpu.memory_space<vmem>>, vector<1x3x3xf32>
    %85 = vector.shape_cast %84 : vector<1x3x3xf32> to vector<3x3xf32>
    %cst_51 = arith.constant dense<0.000000e+00> : vector<3x512xf32>
    %86 = tpu.matmul %85, %83, %cst_51 {dimension_numbers = #tpu.dot_dimension_numbers<[1], [0], [0], [1], [0, 0, 1, 1], [], []>} : vector<3x3xf32>, vector<3x512xf32>, vector<3x512xf32> -> vector<3x512xf32>
    %87 = arith.addf %78, %86 : vector<3x512xf32>
    %c0_52 = arith.constant 0 : index
    %c33 = arith.constant 33 : index
    %88 = vector.load %arg7[%c0_52, %c33] : memref<3x546xf32, #tpu.memory_space<vmem>>, vector<3x512xf32>
    %cst_53 = arith.constant 0.000000e+00 : f32
    %89 = vector.shape_cast %17 : vector<1x512xi1> to vector<1x512xi1>
    %90 = vector.broadcast %89 : vector<1x512xi1> to vector<3x512xi1>
    %91 = vector.broadcast %cst_53 : f32 to vector<3x512xf32>
    %92 = arith.select %90, %88, %91 : vector<3x512xi1>, vector<3x512xf32>
    %c7 = arith.constant 7 : index
    %c0_54 = arith.constant 0 : index
    %c0_55 = arith.constant 0 : index
    %93 = vector.load %arg1[%c7, %c0_54, %c0_55] : memref<9x3x3xf32, #tpu.memory_space<vmem>>, vector<1x3x3xf32>
    %94 = vector.shape_cast %93 : vector<1x3x3xf32> to vector<3x3xf32>
    %cst_56 = arith.constant dense<0.000000e+00> : vector<3x512xf32>
    %95 = tpu.matmul %94, %92, %cst_56 {dimension_numbers = #tpu.dot_dimension_numbers<[1], [0], [0], [1], [0, 0, 1, 1], [], []>} : vector<3x3xf32>, vector<3x512xf32>, vector<3x512xf32> -> vector<3x512xf32>
    %96 = arith.addf %87, %95 : vector<3x512xf32>
    %c0_57 = arith.constant 0 : index
    %c34 = arith.constant 34 : index
    %97 = vector.load %arg7[%c0_57, %c34] : memref<3x546xf32, #tpu.memory_space<vmem>>, vector<3x512xf32>
    %cst_58 = arith.constant 0.000000e+00 : f32
    %98 = vector.shape_cast %21 : vector<1x512xi1> to vector<1x512xi1>
    %99 = vector.broadcast %98 : vector<1x512xi1> to vector<3x512xi1>
    %100 = vector.broadcast %cst_58 : f32 to vector<3x512xf32>
    %101 = arith.select %99, %97, %100 : vector<3x512xi1>, vector<3x512xf32>
    %c8 = arith.constant 8 : index
    %c0_59 = arith.constant 0 : index
    %c0_60 = arith.constant 0 : index
    %102 = vector.load %arg1[%c8, %c0_59, %c0_60] : memref<9x3x3xf32, #tpu.memory_space<vmem>>, vector<1x3x3xf32>
    %103 = vector.shape_cast %102 : vector<1x3x3xf32> to vector<3x3xf32>
    %cst_61 = arith.constant dense<0.000000e+00> : vector<3x512xf32>
    %104 = tpu.matmul %103, %101, %cst_61 {dimension_numbers = #tpu.dot_dimension_numbers<[1], [0], [0], [1], [0, 0, 1, 1], [], []>} : vector<3x3xf32>, vector<3x512xf32>, vector<3x512xf32> -> vector<3x512xf32>
    %105 = arith.addf %96, %104 : vector<3x512xf32>
    %c0_62 = arith.constant 0 : index
    %c0_63 = arith.constant 0 : index
    %106 = vector.load %arg2[%c0_62, %c0_63] : memref<3x1xf32, #tpu.memory_space<vmem>>, vector<3x1xf32>
    %107 = vector.broadcast %106 : vector<3x1xf32> to vector<3x512xf32>
    %108 = arith.addf %105, %107 : vector<3x512xf32>
    %109 = arith.negf %108 : vector<3x512xf32>
    %110 = math.exp %109 : vector<3x512xf32>
    %cst_64 = arith.constant 1.000000e+00 : f32
    %111 = vector.broadcast %cst_64 : f32 to vector<3x512xf32>
    %112 = arith.addf %111, %110 : vector<3x512xf32>
    %113 = arith.divf %111, %112 : vector<3x512xf32>
    %114 = arith.addf %113, %26 : vector<3x512xf32>
    %c0_65 = arith.constant 0 : index
    %c17_66 = arith.constant 17 : index
    %115 = vector.load %arg7[%c0_65, %c17_66] : memref<3x546xf32, #tpu.memory_space<vmem>>, vector<3x512xf32>
    tpu.vector_store %arg7[%c0_65, %c17_66], %114 {strides = array<i32>} : memref<3x546xf32, #tpu.memory_space<vmem>>, vector<3x512xf32>,
    %cst_67 = arith.constant 0.000000e+00 : f32
    %116 = vector.broadcast %cst_67 : f32 to vector<3x512xf32>
    %c0_68 = arith.constant 0 : index
    %c0_69 = arith.constant 0 : index
    %117 = vector.load %arg7[%c0_68, %c0_69] : memref<3x546xf32, #tpu.memory_space<vmem>>, vector<3x512xf32>
    %cst_70 = arith.constant 0.000000e+00 : f32
    %118 = vector.shape_cast %18 : vector<1x512xi1> to vector<1x512xi1>
    %119 = vector.broadcast %118 : vector<1x512xi1> to vector<3x512xi1>
    %120 = vector.broadcast %cst_70 : f32 to vector<3x512xf32>
    %121 = arith.select %119, %117, %120 : vector<3x512xi1>, vector<3x512xf32>
    %c0_71 = arith.constant 0 : index
    %c0_72 = arith.constant 0 : index
    %c0_73 = arith.constant 0 : index
    %122 = vector.load %arg3[%c0_71, %c0_72, %c0_73] : memref<9x3x3xf32, #tpu.memory_space<vmem>>, vector<1x3x3xf32>
    %123 = vector.shape_cast %122 : vector<1x3x3xf32> to vector<3x3xf32>
    %cst_74 = arith.constant dense<0.000000e+00> : vector<3x512xf32>
    %124 = tpu.matmul %123, %121, %cst_74 {dimension_numbers = #tpu.dot_dimension_numbers<[1], [0], [0], [1], [0, 0, 1, 1], [], []>} : vector<3x3xf32>, vector<3x512xf32>, vector<3x512xf32> -> vector<3x512xf32>
    %125 = arith.addf %116, %124 : vector<3x512xf32>
    %c0_75 = arith.constant 0 : index
    %c1_76 = arith.constant 1 : index
    %126 = vector.load %arg7[%c0_75, %c1_76] : memref<3x546xf32, #tpu.memory_space<vmem>>, vector<3x512xf32>
    %cst_77 = arith.constant 0.000000e+00 : f32
    %127 = vector.shape_cast %15 : vector<1x512xi1> to vector<1x512xi1>
    %128 = vector.broadcast %127 : vector<1x512xi1> to vector<3x512xi1>
    %129 = vector.broadcast %cst_77 : f32 to vector<3x512xf32>
    %130 = arith.select %128, %126, %129 : vector<3x512xi1>, vector<3x512xf32>
    %c1_78 = arith.constant 1 : index
    %c0_79 = arith.constant 0 : index
    %c0_80 = arith.constant 0 : index
    %131 = vector.load %arg3[%c1_78, %c0_79, %c0_80] : memref<9x3x3xf32, #tpu.memory_space<vmem>>, vector<1x3x3xf32>
    %132 = vector.shape_cast %131 : vector<1x3x3xf32> to vector<3x3xf32>
    %cst_81 = arith.constant dense<0.000000e+00> : vector<3x512xf32>
    %133 = tpu.matmul %132, %130, %cst_81 {dimension_numbers = #tpu.dot_dimension_numbers<[1], [0], [0], [1], [0, 0, 1, 1], [], []>} : vector<3x3xf32>, vector<3x512xf32>, vector<3x512xf32> -> vector<3x512xf32>
    %134 = arith.addf %125, %133 : vector<3x512xf32>
    %c0_82 = arith.constant 0 : index
    %c2_83 = arith.constant 2 : index
    %135 = vector.load %arg7[%c0_82, %c2_83] : memref<3x546xf32, #tpu.memory_space<vmem>>, vector<3x512xf32>
    %cst_84 = arith.constant 0.000000e+00 : f32
    %136 = vector.shape_cast %19 : vector<1x512xi1> to vector<1x512xi1>
    %137 = vector.broadcast %136 : vector<1x512xi1> to vector<3x512xi1>
    %138 = vector.broadcast %cst_84 : f32 to vector<3x512xf32>
    %139 = arith.select %137, %135, %138 : vector<3x512xi1>, vector<3x512xf32>
    %c2_85 = arith.constant 2 : index
    %c0_86 = arith.constant 0 : index
    %c0_87 = arith.constant 0 : index
    %140 = vector.load %arg3[%c2_85, %c0_86, %c0_87] : memref<9x3x3xf32, #tpu.memory_space<vmem>>, vector<1x3x3xf32>
    %141 = vector.shape_cast %140 : vector<1x3x3xf32> to vector<3x3xf32>
    %cst_88 = arith.constant dense<0.000000e+00> : vector<3x512xf32>
    %142 = tpu.matmul %141, %139, %cst_88 {dimension_numbers = #tpu.dot_dimension_numbers<[1], [0], [0], [1], [0, 0, 1, 1], [], []>} : vector<3x3xf32>, vector<3x512xf32>, vector<3x512xf32> -> vector<3x512xf32>
    %143 = arith.addf %134, %142 : vector<3x512xf32>
    %c0_89 = arith.constant 0 : index
    %c16_90 = arith.constant 16 : index
    %144 = vector.load %arg7[%c0_89, %c16_90] : memref<3x546xf32, #tpu.memory_space<vmem>>, vector<3x512xf32>
    %cst_91 = arith.constant 0.000000e+00 : f32
    %145 = vector.shape_cast %11 : vector<1x512xi1> to vector<1x512xi1>
    %146 = vector.broadcast %145 : vector<1x512xi1> to vector<3x512xi1>
    %147 = vector.broadcast %cst_91 : f32 to vector<3x512xf32>
    %148 = arith.select %146, %144, %147 : vector<3x512xi1>, vector<3x512xf32>
    %c3_92 = arith.constant 3 : index
    %c0_93 = arith.constant 0 : index
    %c0_94 = arith.constant 0 : index
    %149 = vector.load %arg3[%c3_92, %c0_93, %c0_94] : memref<9x3x3xf32, #tpu.memory_space<vmem>>, vector<1x3x3xf32>
    %150 = vector.shape_cast %149 : vector<1x3x3xf32> to vector<3x3xf32>
    %cst_95 = arith.constant dense<0.000000e+00> : vector<3x512xf32>
    %151 = tpu.matmul %150, %148, %cst_95 {dimension_numbers = #tpu.dot_dimension_numbers<[1], [0], [0], [1], [0, 0, 1, 1], [], []>} : vector<3x3xf32>, vector<3x512xf32>, vector<3x512xf32> -> vector<3x512xf32>
    %152 = arith.addf %143, %151 : vector<3x512xf32>
    %c0_96 = arith.constant 0 : index
    %c17_97 = arith.constant 17 : index
    %153 = vector.load %arg7[%c0_96, %c17_97] : memref<3x546xf32, #tpu.memory_space<vmem>>, vector<3x512xf32>
    %c4_98 = arith.constant 4 : index
    %c0_99 = arith.constant 0 : index
    %c0_100 = arith.constant 0 : index
    %154 = vector.load %arg3[%c4_98, %c0_99, %c0_100] : memref<9x3x3xf32, #tpu.memory_space<vmem>>, vector<1x3x3xf32>
    %155 = vector.shape_cast %154 : vector<1x3x3xf32> to vector<3x3xf32>
    %cst_101 = arith.constant dense<0.000000e+00> : vector<3x512xf32>
    %156 = tpu.matmul %155, %153, %cst_101 {dimension_numbers = #tpu.dot_dimension_numbers<[1], [0], [0], [1], [0, 0, 1, 1], [], []>} : vector<3x3xf32>, vector<3x512xf32>, vector<3x512xf32> -> vector<3x512xf32>
    %157 = arith.addf %152, %156 : vector<3x512xf32>
    %c0_102 = arith.constant 0 : index
    %c18_103 = arith.constant 18 : index
    %158 = vector.load %arg7[%c0_102, %c18_103] : memref<3x546xf32, #tpu.memory_space<vmem>>, vector<3x512xf32>
    %cst_104 = arith.constant 0.000000e+00 : f32
    %159 = vector.shape_cast %13 : vector<1x512xi1> to vector<1x512xi1>
    %160 = vector.broadcast %159 : vector<1x512xi1> to vector<3x512xi1>
    %161 = vector.broadcast %cst_104 : f32 to vector<3x512xf32>
    %162 = arith.select %160, %158, %161 : vector<3x512xi1>, vector<3x512xf32>
    %c5_105 = arith.constant 5 : index
    %c0_106 = arith.constant 0 : index
    %c0_107 = arith.constant 0 : index
    %163 = vector.load %arg3[%c5_105, %c0_106, %c0_107] : memref<9x3x3xf32, #tpu.memory_space<vmem>>, vector<1x3x3xf32>
    %164 = vector.shape_cast %163 : vector<1x3x3xf32> to vector<3x3xf32>
    %cst_108 = arith.constant dense<0.000000e+00> : vector<3x512xf32>
    %165 = tpu.matmul %164, %162, %cst_108 {dimension_numbers = #tpu.dot_dimension_numbers<[1], [0], [0], [1], [0, 0, 1, 1], [], []>} : vector<3x3xf32>, vector<3x512xf32>, vector<3x512xf32> -> vector<3x512xf32>
    %166 = arith.addf %157, %165 : vector<3x512xf32>
    %c0_109 = arith.constant 0 : index
    %c32_110 = arith.constant 32 : index
    %167 = vector.load %arg7[%c0_109, %c32_110] : memref<3x546xf32, #tpu.memory_space<vmem>>, vector<3x512xf32>
    %cst_111 = arith.constant 0.000000e+00 : f32
    %168 = vector.shape_cast %20 : vector<1x512xi1> to vector<1x512xi1>
    %169 = vector.broadcast %168 : vector<1x512xi1> to vector<3x512xi1>
    %170 = vector.broadcast %cst_111 : f32 to vector<3x512xf32>
    %171 = arith.select %169, %167, %170 : vector<3x512xi1>, vector<3x512xf32>
    %c6_112 = arith.constant 6 : index
    %c0_113 = arith.constant 0 : index
    %c0_114 = arith.constant 0 : index
    %172 = vector.load %arg3[%c6_112, %c0_113, %c0_114] : memref<9x3x3xf32, #tpu.memory_space<vmem>>, vector<1x3x3xf32>
    %173 = vector.shape_cast %172 : vector<1x3x3xf32> to vector<3x3xf32>
    %cst_115 = arith.constant dense<0.000000e+00> : vector<3x512xf32>
    %174 = tpu.matmul %173, %171, %cst_115 {dimension_numbers = #tpu.dot_dimension_numbers<[1], [0], [0], [1], [0, 0, 1, 1], [], []>} : vector<3x3xf32>, vector<3x512xf32>, vector<3x512xf32> -> vector<3x512xf32>
    %175 = arith.addf %166, %174 : vector<3x512xf32>
    %c0_116 = arith.constant 0 : index
    %c33_117 = arith.constant 33 : index
    %176 = vector.load %arg7[%c0_116, %c33_117] : memref<3x546xf32, #tpu.memory_space<vmem>>, vector<3x512xf32>
    %cst_118 = arith.constant 0.000000e+00 : f32
    %177 = vector.shape_cast %17 : vector<1x512xi1> to vector<1x512xi1>
    %178 = vector.broadcast %177 : vector<1x512xi1> to vector<3x512xi1>
    %179 = vector.broadcast %cst_118 : f32 to vector<3x512xf32>
    %180 = arith.select %178, %176, %179 : vector<3x512xi1>, vector<3x512xf32>
    %c7_119 = arith.constant 7 : index
    %c0_120 = arith.constant 0 : index
    %c0_121 = arith.constant 0 : index
    %181 = vector.load %arg3[%c7_119, %c0_120, %c0_121] : memref<9x3x3xf32, #tpu.memory_space<vmem>>, vector<1x3x3xf32>
    %182 = vector.shape_cast %181 : vector<1x3x3xf32> to vector<3x3xf32>
    %cst_122 = arith.constant dense<0.000000e+00> : vector<3x512xf32>
    %183 = tpu.matmul %182, %180, %cst_122 {dimension_numbers = #tpu.dot_dimension_numbers<[1], [0], [0], [1], [0, 0, 1, 1], [], []>} : vector<3x3xf32>, vector<3x512xf32>, vector<3x512xf32> -> vector<3x512xf32>
    %184 = arith.addf %175, %183 : vector<3x512xf32>
    %c0_123 = arith.constant 0 : index
    %c34_124 = arith.constant 34 : index
    %185 = vector.load %arg7[%c0_123, %c34_124] : memref<3x546xf32, #tpu.memory_space<vmem>>, vector<3x512xf32>
    %cst_125 = arith.constant 0.000000e+00 : f32
    %186 = vector.shape_cast %21 : vector<1x512xi1> to vector<1x512xi1>
    %187 = vector.broadcast %186 : vector<1x512xi1> to vector<3x512xi1>
    %188 = vector.broadcast %cst_125 : f32 to vector<3x512xf32>
    %189 = arith.select %187, %185, %188 : vector<3x512xi1>, vector<3x512xf32>
    %c8_126 = arith.constant 8 : index
    %c0_127 = arith.constant 0 : index
    %c0_128 = arith.constant 0 : index
    %190 = vector.load %arg3[%c8_126, %c0_127, %c0_128] : memref<9x3x3xf32, #tpu.memory_space<vmem>>, vector<1x3x3xf32>
    %191 = vector.shape_cast %190 : vector<1x3x3xf32> to vector<3x3xf32>
    %cst_129 = arith.constant dense<0.000000e+00> : vector<3x512xf32>
    %192 = tpu.matmul %191, %189, %cst_129 {dimension_numbers = #tpu.dot_dimension_numbers<[1], [0], [0], [1], [0, 0, 1, 1], [], []>} : vector<3x3xf32>, vector<3x512xf32>, vector<3x512xf32> -> vector<3x512xf32>
    %193 = arith.addf %184, %192 : vector<3x512xf32>
    %c0_130 = arith.constant 0 : index
    %c0_131 = arith.constant 0 : index
    %194 = vector.load %arg4[%c0_130, %c0_131] : memref<3x1xf32, #tpu.memory_space<vmem>>, vector<3x1xf32>
    %195 = vector.broadcast %194 : vector<3x1xf32> to vector<3x512xf32>
    %196 = arith.addf %193, %195 : vector<3x512xf32>
    %197 = arith.negf %196 : vector<3x512xf32>
    %198 = math.exp %197 : vector<3x512xf32>
    %cst_132 = arith.constant 1.000000e+00 : f32
    %199 = vector.broadcast %cst_132 : f32 to vector<3x512xf32>
    %200 = arith.addf %199, %198 : vector<3x512xf32>
    %201 = arith.divf %199, %200 : vector<3x512xf32>
    %202 = vector.extract_strided_slice %201 {offsets = [0, 0], sizes = [3, 256], strides = [1, 1]} : vector<3x512xf32> to vector<3x256xf32>
    %c0_133 = arith.constant 0 : index
    %c0_134 = arith.constant 0 : index
    %c0_135 = arith.constant 0 : index
    %203 = vector.load %arg6[%c0_133, %c0_134, %c0_135] : memref<2x3x256xf32, #tpu.memory_space<vmem>>, vector<1x3x256xf32>
    %204 = vector.shape_cast %203 : vector<1x3x256xf32> to vector<3x256xf32>
    %205 = vector.shape_cast %202 : vector<3x256xf32> to vector<1x3x256xf32>
    tpu.vector_store %arg6[%c0_133, %c0_134, %c0_135], %205 {strides = array<i32>} : memref<2x3x256xf32, #tpu.memory_space<vmem>>, vector<1x3x256xf32>,
    %206 = vector.extract_strided_slice %201 {offsets = [0, 256], sizes = [3, 256], strides = [1, 1]} : vector<3x512xf32> to vector<3x256xf32>
    %c1_136 = arith.constant 1 : index
    %c0_137 = arith.constant 0 : index
    %c0_138 = arith.constant 0 : index
    %207 = vector.load %arg6[%c1_136, %c0_137, %c0_138] : memref<2x3x256xf32, #tpu.memory_space<vmem>>, vector<1x3x256xf32>
    %208 = vector.shape_cast %207 : vector<1x3x256xf32> to vector<3x256xf32>
    %209 = vector.shape_cast %206 : vector<3x256xf32> to vector<1x3x256xf32>
    tpu.vector_store %arg6[%c1_136, %c0_137, %c0_138], %209 {strides = array<i32>} : memref<2x3x256xf32, #tpu.memory_space<vmem>>, vector<1x3x256xf32>,
    return
  }
  func.func @transform_0(%arg0: i32) -> (i32, i32, i32) {
    %c0_i32 = arith.constant 0 : i32
    %c0_i32_0 = arith.constant 0 : i32
    %c0_i32_1 = arith.constant 0 : i32
    %c0_i32_2 = arith.constant 0 : i32
    return %c0_i32, %c0_i32_0, %c0_i32_1 : i32, i32, i32
  }
  func.func @transform_1(%arg0: i32) -> (i32, i32) {
    %c0_i32 = arith.constant 0 : i32
    %c0_i32_0 = arith.constant 0 : i32
    %c0_i32_1 = arith.constant 0 : i32
    return %c0_i32, %c0_i32_0 : i32, i32
  }
  func.func @transform_2(%arg0: i32) -> (i32, i32, i32) {
    %c0_i32 = arith.constant 0 : i32
    %c0_i32_0 = arith.constant 0 : i32
    %c0_i32_1 = arith.constant 0 : i32
    %c0_i32_2 = arith.constant 0 : i32
    return %c0_i32, %c0_i32_0, %c0_i32_1 : i32, i32, i32
  }
  func.func @transform_3(%arg0: i32) -> (i32, i32) {
    %c0_i32 = arith.constant 0 : i32
    %c0_i32_0 = arith.constant 0 : i32
    %c0_i32_1 = arith.constant 0 : i32
    return %c0_i32, %c0_i32_0 : i32, i32
  }
  func.func @transform_4(%arg0: i32) -> (i32, i32, i32) {
    %c0_i32 = arith.constant 0 : i32
    %c0_i32_0 = arith.constant 0 : i32
    %c0_i32_1 = arith.constant 0 : i32
    return %arg0, %c0_i32, %c0_i32_0 : i32, i32, i32
  }
  func.func @transform_5(%arg0: i32) -> (i32, i32, i32) {
    %c0_i32 = arith.constant 0 : i32
    %c0_i32_0 = arith.constant 0 : i32
    %c0_i32_1 = arith.constant 0 : i32
    return %arg0, %c0_i32, %c0_i32_0 : i32, i32, i32
  }
}

</mosaic_0001>

<llo_original>
// kernel: dacon_forward.1
$region0: #{dacon_forward.1}
  #allocation0 [shape = 'u32[]', space=smem, size = 0x4, offset = 0x4, fixed_abs, tag = 'smem constant byte address 0x4 - core index']
  #allocation1 [shape = 'u32[144,128]{1,0:T(1,128)}', space=vmem, size = 0x12000, scoped, tag = 'internal scratch']
  #allocation2 [shape = 'f32[3,546]{1,0:T(4,128)}', space=vmem, size = 0x2800, scoped, tag = 'scratch operand']
  %s0 = inlined_call_operand.vmem [shape: f32[9,3,3], index: 0, kind: input, shape index: {}]
  %s1 = inlined_call_operand.vmem [shape: f32[3,1], index: 1, kind: input, shape index: {}]
  %s2 = inlined_call_operand.vmem [shape: f32[9,3,3], index: 2, kind: input, shape index: {}]
  %s3 = inlined_call_operand.vmem [shape: f32[3,1], index: 3, kind: input, shape index: {}]
  %s4 = inlined_call_operand.vmem [shape: f32[2,3,256], index: 4, kind: input, shape index: {}]
  %s5 = inlined_call_operand.vmem [shape: f32[2,3,256], index: 5, kind: output, shape index: {}]
  %s6 = sld [smem:[#allocation0]]
  $region30: #{dacon_forward.1} parent=0
    _
  %s8 = ssub.s32 1, %s6
  %s9 = scalar_select 0, %s8, %s6
  // Predicated region
  $region2: #{dacon_forward.1} parent=0 // pred_check
    _
  $region3: #{dacon_forward.1} parent=0 // pred_check_branch
    %11 = sbr.rel (0) target = $region5
  $region4: #{dacon_forward.1} parent=0 // pred_region
    _
  $region5: #{dacon_forward.1} parent=0 // pred_fallthru
    _
  // Predicated region
  $region6: #{dacon_forward.1} parent=0 // pred_check
    _
  $region7: #{dacon_forward.1} parent=0 // pred_check_branch
    %13 = sbr.rel (0) target = $region9
  $region8: #{dacon_forward.1} parent=0 // pred_region
    _
  $region9: #{dacon_forward.1} parent=0 // pred_fallthru
    _
  // Predicated region
  $region10: #{dacon_forward.1} parent=0 // pred_check
    _
  $region11: #{dacon_forward.1} parent=0 // pred_check_branch
    %15 = sbr.rel (0) target = $region13
  $region12: #{dacon_forward.1} parent=0 // pred_region
    _
  $region13: #{dacon_forward.1} parent=0 // pred_fallthru
    _
  // Predicated region
  $region14: #{dacon_forward.1} parent=0 // pred_check
    _
  $region15: #{dacon_forward.1} parent=0 // pred_check_branch
    %17 = sbr.rel (0) target = $region17
  $region16: #{dacon_forward.1} parent=0 // pred_region
    _
  $region17: #{dacon_forward.1} parent=0 // pred_fallthru
    _
  // Predicated region
  $region18: #{dacon_forward.1} parent=0 // pred_check
    _
  $region19: #{dacon_forward.1} parent=0 // pred_check_branch
    %19 = sbr.rel (0) target = $region21
  $region20: #{dacon_forward.1} parent=0 // pred_region
    _
  $region21: #{dacon_forward.1} parent=0 // pred_fallthru
    _
  %vm20 = vcmask 133120
  %21 = vst.msk [vmem:[#allocation2] sm:$0x7] %vm20, 0.0
  %vm22 = vcmask 272520
  %23 = vst.msk [vmem:[#allocation2 + $0x10] sm:$0x7] %vm22, 0.0
  %v24 = vlaneseq
  %v25 = vand.u32 %v24, 127
  %v26 = vadd.s32 %v25, 128
  %v27 = vadd.s32 %v25, 256
  %v28 = vadd.s32 %v25, 384
  %v29 = vand.u32 %v25, 15
  %v30 = vand.u32 %v26, 15
  %v31 = vand.u32 %v27, 15
  %v32 = vand.u32 %v28, 15
  %v33 = vshra.s32 %v25, 4
  %v34 = vshra.s32 %v26, 4
  %v35 = vshra.s32 %v27, 4
  %v36 = vshra.s32 %v28, 4
  %v37 = vand.u32 %v33, 15
  %v38 = vand.u32 %v34, 15
  %v39 = vand.u32 %v35, 15
  %v40 = vand.u32 %v36, 15
  %vm41 = vcmp.ge.s32.totalorder %v29, 1
  %vm42 = vcmp.ge.s32.totalorder %v30, 1
  %vm43 = vcmp.ge.s32.totalorder %v31, 1
  %vm44 = vcmp.ge.s32.totalorder %v32, 1
  %vm45 = vcmp.le.s32.totalorder %v29, 14
  %vm46 = vcmp.le.s32.totalorder %v30, 14
  %vm47 = vcmp.le.s32.totalorder %v31, 14
  %vm48 = vcmp.le.s32.totalorder %v32, 14
  %vm49 = vcmp.ge.s32.totalorder %v37, 1
  %vm50 = vcmp.ge.s32.totalorder %v38, 1
  %vm51 = vcmp.ge.s32.totalorder %v39, 1
  %vm52 = vcmp.ge.s32.totalorder %v40, 1
  %vm53 = vcmp.le.s32.totalorder %v37, 14
  %vm54 = vcmp.le.s32.totalorder %v38, 14
  %vm55 = vcmp.le.s32.totalorder %v39, 14
  %vm56 = vcmp.le.s32.totalorder %v40, 14
  %vm57 = vmand %vm49, %vm41
  %vm58 = vmand %vm50, %vm42
  %vm59 = vmand %vm51, %vm43
  %vm60 = vmand %vm52, %vm44
  %vm61 = vmand %vm49, %vm45
  %vm62 = vmand %vm50, %vm46
  %vm63 = vmand %vm51, %vm47
  %vm64 = vmand %vm52, %vm48
  %vm65 = vmand %vm53, %vm41
  %vm66 = vmand %vm54, %vm42
  %vm67 = vmand %vm55, %vm43
  %vm68 = vmand %vm56, %vm44
  %vm69 = vmand %vm53, %vm45
  %vm70 = vmand %vm54, %vm46
  %vm71 = vmand %vm55, %vm47
  %vm72 = vmand %vm56, %vm48
  %v73 = vld [vmem:[%s4] sm:$0x77]
  %s74 = scalar_lea.vmem %s4, 8
  %v75 = vld [vmem:[%s74] sm:$0x77]
  %v77 = vcombine.high %v73, %v73
  %v80 = vcombine.high %v75, %v75
  %v82 = vcombine.low %v73, %v77
  %v83 = vcombine.low %v75, %v80
  %84 = vrot.lane.b32.xlu0 %v82, 17
  %v85 = vpop.permute.xlu0 %84
  %86 = vrot.lane.b32.xlu0 %v83, 17
  %v87 = vpop.permute.xlu0 %86
  %v88 = vrot.slane %v85, 4
  %v89 = vrot.slane %v87, 4
  %vm90 = vcmask 138240
  %v91 = vsel %vm90, %v88, %v85
  %vm92 = vcmask 1043456
  %v93 = vsel %vm92, %v88, %v89
  %v94 = vsel %vm90, %v93, %v87
  %vm98 = vcmask 1042568
  %vm99 = vcmask 1046532
  %vm100 = vmor %vm99, %vm98
  %101 = vst.msk [vmem:[#allocation2] sm:$0x77] %vm100, %v91
  %102 = vst [vmem:[#allocation2 + $0x8] sm:$0x77] %v94
  %103 = vst.msk [vmem:[#allocation2 + $0x10] sm:$0x7] %vm20, %v89
  %v104 = vld [vmem:[#allocation2] sm:$0x77]
  %v105 = vld [vmem:[#allocation2 + $0x8] sm:$0x77]
  %v106 = vsel %vm57, 1, 0
  %v107 = vsel %vm58, 1, 0
  %v108 = vsel %vm59, 1, 0
  %v109 = vsel %vm60, 1, 0
  %vm110 = vcmp.eq.s32.totalorder %v106, 1
  %vm111 = vcmp.eq.s32.totalorder %v107, 1
  %vm112 = vcmp.eq.s32.totalorder %v108, 1
  %vm113 = vcmp.eq.s32.totalorder %v109, 1
  %v116 = vcombine.high %v104, %v104
  %v117 = vcombine.high %v105, %v105
  %v120 = vsel %vm110, %v104, 0.0
  %v121 = vsel %vm111, %v116, 0.0
  %v122 = vsel %vm112, %v105, 0.0
  %v123 = vsel %vm113, %v117, 0.0
  %v124 = vld [vmem:[%s0] sm:$0x7]
  %v125 = vld [vmem:[#allocation2 + $0x10] sm:$0x7]
  %v126 = vsel %vm49, 1, 0
  %v127 = vsel %vm50, 1, 0
  %v128 = vsel %vm51, 1, 0
  %v129 = vsel %vm52, 1, 0
  %vm130 = vcmp.eq.s32.totalorder %v126, 1
  %vm131 = vcmp.eq.s32.totalorder %v127, 1
  %vm132 = vcmp.eq.s32.totalorder %v128, 1
  %vm133 = vcmp.eq.s32.totalorder %v129, 1
  %135 = vrot.lane.b32.xlu0 %v104, 127
  %v136 = vpop.permute.xlu0 %135
  %137 = vrot.lane.b32.xlu0 %v116, 127
  %v138 = vpop.permute.xlu0 %137
  %139 = vrot.lane.b32.xlu0 %v105, 127
  %v140 = vpop.permute.xlu0 %139
  %141 = vrot.lane.b32.xlu0 %v117, 127
  %v142 = vpop.permute.xlu0 %141
  %143 = vrot.lane.b32.xlu0 %v125, 127
  %v144 = vpop.permute.xlu0 %143
  %vm145 = vcmask 1039360
  %v146 = vsel %vm145, %v136, %v138
  %v147 = vsel %vm145, %v138, %v140
  %v148 = vsel %vm145, %v140, %v142
  %v149 = vsel %vm145, %v142, %v144
  %v154 = vsel %vm130, %v146, 0.0
  %v155 = vsel %vm131, %v147, 0.0
  %v156 = vsel %vm132, %v148, 0.0
  %v157 = vsel %vm133, %v149, 0.0
  %s158 = scalar_lea.vmem %s0, 4
  %v159 = vld [vmem:[%s158] sm:$0x7]
  %vm160 = vcmask 23552
  %v162 = vsel %vm160, %v159, 0
  %vm164 = vcmask 1042432
  %v166 = vsel %vm164, %v154, 0
  %v169 = vsel %vm164, %v155, 0
  %v172 = vsel %vm164, %v156, 0
  %v175 = vsel %vm164, %v157, 0
  %177 = vmatprep.subr.mxu0 0.0
  %178 = vmatpush1.msra.mxu0 0.0
  %179 = vmatprep.subr.mxu0 0.0
  %180 = vmatpush1.msra.mxu0 0.0
  %181 = vmatprep.subr.mxu0 0.0
  %182 = vmatpush1.msra.mxu0 0.0
  %183 = vmatprep.subr.mxu0 0.0
  %184 = vmatpush1.msra.mxu0 0.0
  %185 = vmatprep.subr.mxu0 0.0
  %186 = vmatpush1.msra.mxu0 0.0
  %187 = vmatprep.subr.mxu0 0.0
  %188 = vmatpush1.msra.mxu0 0.0
  %189 = vmatprep.subr.mxu0 0.0
  %190 = vmatpush1.msra.mxu0 0.0
  %191 = vmatprep.subr.mxu0 0.0
  %192 = vmatpush1.msra.mxu0 0.0
  %193 = vmatprep.subr.mxu0 0.0
  %194 = vmatpush1.msra.mxu0 0.0
  %195 = vmatprep.subr.mxu0 0.0
  %196 = vmatpush1.msra.mxu0 0.0
  %197 = vmatprep.subr.mxu0 0.0
  %198 = vmatpush1.msra.mxu0 0.0
  %199 = vmatprep.subr.mxu0 0.0
  %200 = vmatpush1.msra.mxu0 0.0
  %201 = vmatprep.subr.mxu0 0.0
  %202 = vmatpush1.msra.mxu0 0.0
  %203 = vmatprep.subr.mxu0 0.0
  %204 = vmatpush1.msra.mxu0 0.0
  %205 = vmatprep.subr.mxu0 0.0
  %206 = vmatpush1.msra.mxu0 0.0
  %207 = vmatprep.subr.mxu0 %v169
  %208 = vmatpush1.msra.mxu0 %v166
  %209 = vmatprep.subr.mxu0 0.0
  %210 = vmatpush2.msra.mxu0 0.0
  %211 = vmatprep.subr.mxu0 0.0
  %212 = vmatpush2.msra.mxu0 0.0
  %213 = vmatprep.subr.mxu0 0.0
  %214 = vmatpush2.msra.mxu0 0.0
  %215 = vmatprep.subr.mxu0 0.0
  %216 = vmatpush2.msra.mxu0 0.0
  %217 = vmatprep.subr.mxu0 0.0
  %218 = vmatpush2.msra.mxu0 0.0
  %219 = vmatprep.subr.mxu0 0.0
  %220 = vmatpush2.msra.mxu0 0.0
  %221 = vmatprep.subr.mxu0 0.0
  %222 = vmatpush2.msra.mxu0 0.0
  %223 = vmatprep.subr.mxu0 0.0
  %224 = vmatpush2.msra.mxu0 0.0
  %225 = vmatprep.subr.mxu0 0.0
  %226 = vmatpush2.msra.mxu0 0.0
  %227 = vmatprep.subr.mxu0 0.0
  %228 = vmatpush2.msra.mxu0 0.0
  %229 = vmatprep.subr.mxu0 0.0
  %230 = vmatpush2.msra.mxu0 0.0
  %231 = vmatprep.subr.mxu0 0.0
  %232 = vmatpush2.msra.mxu0 0.0
  %233 = vmatprep.subr.mxu0 0.0
  %234 = vmatpush2.msra.mxu0 0.0
  %235 = vmatprep.subr.mxu0 0.0
  %236 = vmatpush2.msra.mxu0 0.0
  %237 = vmatprep.subr.mxu0 0.0
  %238 = vmatpush2.msra.mxu0 0.0
  %239 = vmatprep.subr.mxu0 0.0
  %240 = vmatpush2.msra.mxu0 0.0
  %241 = vmatprep.mubr.f32.mxu0 0.0
  %242 = vmatmul.mubr.f32.gmra.mxu0 %v162
  %v243 = vpop.f32.mrf.mxu0
  %v244 = vadd.f32 0.0, %v243
  %v245 = vpop.f32.mrf.mxu0
  %v246 = vadd.f32 0.0, %v245
  %247 = vdwg.mxu0
  %248 = vmatprep.subr.mxu0 0.0
  %249 = vmatpush1.msra.mxu0 0.0
  %250 = vmatprep.subr.mxu0 0.0
  %251 = vmatpush1.msra.mxu0 0.0
  %252 = vmatprep.subr.mxu0 0.0
  %253 = vmatpush1.msra.mxu0 0.0
  %254 = vmatprep.subr.mxu0 0.0
  %255 = vmatpush1.msra.mxu0 0.0
  %256 = vmatprep.subr.mxu0 0.0
  %257 = vmatpush1.msra.mxu0 0.0
  %258 = vmatprep.subr.mxu0 0.0
  %259 = vmatpush1.msra.mxu0 0.0
  %260 = vmatprep.subr.mxu0 0.0
  %261 = vmatpush1.msra.mxu0 0.0
  %262 = vmatprep.subr.mxu0 0.0
  %263 = vmatpush1.msra.mxu0 0.0
  %264 = vmatprep.subr.mxu0 0.0
  %265 = vmatpush1.msra.mxu0 0.0
  %266 = vmatprep.subr.mxu0 0.0
  %267 = vmatpush1.msra.mxu0 0.0
  %268 = vmatprep.subr.mxu0 0.0
  %269 = vmatpush1.msra.mxu0 0.0
  %270 = vmatprep.subr.mxu0 0.0
  %271 = vmatpush1.msra.mxu0 0.0
  %272 = vmatprep.subr.mxu0 0.0
  %273 = vmatpush1.msra.mxu0 0.0
  %274 = vmatprep.subr.mxu0 0.0
  %275 = vmatpush1.msra.mxu0 0.0
  %276 = vmatprep.subr.mxu0 0.0
  %277 = vmatpush1.msra.mxu0 0.0
  %278 = vmatprep.subr.mxu0 %v175
  %279 = vmatpush1.msra.mxu0 %v172
  %280 = vmatprep.subr.mxu0 0.0
  %281 = vmatpush2.msra.mxu0 0.0
  %282 = vmatprep.subr.mxu0 0.0
  %283 = vmatpush2.msra.mxu0 0.0
  %284 = vmatprep.subr.mxu0 0.0
  %285 = vmatpush2.msra.mxu0 0.0
  %286 = vmatprep.subr.mxu0 0.0
  %287 = vmatpush2.msra.mxu0 0.0
  %288 = vmatprep.subr.mxu0 0.0
  %289 = vmatpush2.msra.mxu0 0.0
  %290 = vmatprep.subr.mxu0 0.0
  %291 = vmatpush2.msra.mxu0 0.0
  %292 = vmatprep.subr.mxu0 0.0
  %293 = vmatpush2.msra.mxu0 0.0
  %294 = vmatprep.subr.mxu0 0.0
  %295 = vmatpush2.msra.mxu0 0.0
  %296 = vmatprep.subr.mxu0 0.0
  %297 = vmatpush2.msra.mxu0 0.0
  %298 = vmatprep.subr.mxu0 0.0
  %299 = vmatpush2.msra.mxu0 0.0
  %300 = vmatprep.subr.mxu0 0.0
  %301 = vmatpush2.msra.mxu0 0.0
  %302 = vmatprep.subr.mxu0 0.0
  %303 = vmatpush2.msra.mxu0 0.0
  %304 = vmatprep.subr.mxu0 0.0
  %305 = vmatpush2.msra.mxu0 0.0
  %306 = vmatprep.subr.mxu0 0.0
  %307 = vmatpush2.msra.mxu0 0.0
  %308 = vmatprep.subr.mxu0 0.0
  %309 = vmatpush2.msra.mxu0 0.0
  %310 = vmatprep.subr.mxu0 0.0
  %311 = vmatpush2.msra.mxu0 0.0
  %312 = vmatprep.mubr.f32.mxu0 0.0
  %313 = vmatmul.mubr.f32.gmra.mxu0 %v162
  %v314 = vpop.f32.mrf.mxu0
  %v315 = vadd.f32 0.0, %v314
  %v316 = vpop.f32.mrf.mxu0
  %v317 = vadd.f32 0.0, %v316
  %318 = vdwg.mxu0
  %v320 = vsel %vm160, %v124, 0
  %v323 = vsel %vm164, %v120, 0
  %v326 = vsel %vm164, %v121, 0
  %v329 = vsel %vm164, %v122, 0
  %v332 = vsel %vm164, %v123, 0
  %334 = vmatprep.subr.mxu0 0.0
  %335 = vmatpush1.msra.mxu0 0.0
  %336 = vmatprep.subr.mxu0 0.0
  %337 = vmatpush1.msra.mxu0 0.0
  %338 = vmatprep.subr.mxu0 0.0
  %339 = vmatpush1.msra.mxu0 0.0
  %340 = vmatprep.subr.mxu0 0.0
  %341 = vmatpush1.msra.mxu0 0.0
  %342 = vmatprep.subr.mxu0 0.0
  %343 = vmatpush1.msra.mxu0 0.0
  %344 = vmatprep.subr.mxu0 0.0
  %345 = vmatpush1.msra.mxu0 0.0
  %346 = vmatprep.subr.mxu0 0.0
  %347 = vmatpush1.msra.mxu0 0.0
  %348 = vmatprep.subr.mxu0 0.0
  %349 = vmatpush1.msra.mxu0 0.0
  %350 = vmatprep.subr.mxu0 0.0
  %351 = vmatpush1.msra.mxu0 0.0
  %352 = vmatprep.subr.mxu0 0.0
  %353 = vmatpush1.msra.mxu0 0.0
  %354 = vmatprep.subr.mxu0 0.0
  %355 = vmatpush1.msra.mxu0 0.0
  %356 = vmatprep.subr.mxu0 0.0
  %357 = vmatpush1.msra.mxu0 0.0
  %358 = vmatprep.subr.mxu0 0.0
  %359 = vmatpush1.msra.mxu0 0.0
  %360 = vmatprep.subr.mxu0 0.0
  %361 = vmatpush1.msra.mxu0 0.0
  %362 = vmatprep.subr.mxu0 0.0
  %363 = vmatpush1.msra.mxu0 0.0
  %364 = vmatprep.subr.mxu0 %v326
  %365 = vmatpush1.msra.mxu0 %v323
  %366 = vmatprep.subr.mxu0 0.0
  %367 = vmatpush2.msra.mxu0 0.0
  %368 = vmatprep.subr.mxu0 0.0
  %369 = vmatpush2.msra.mxu0 0.0
  %370 = vmatprep.subr.mxu0 0.0
  %371 = vmatpush2.msra.mxu0 0.0
  %372 = vmatprep.subr.mxu0 0.0
  %373 = vmatpush2.msra.mxu0 0.0
  %374 = vmatprep.subr.mxu0 0.0
  %375 = vmatpush2.msra.mxu0 0.0
  %376 = vmatprep.subr.mxu0 0.0
  %377 = vmatpush2.msra.mxu0 0.0
  %378 = vmatprep.subr.mxu0 0.0
  %379 = vmatpush2.msra.mxu0 0.0
  %380 = vmatprep.subr.mxu0 0.0
  %381 = vmatpush2.msra.mxu0 0.0
  %382 = vmatprep.subr.mxu0 0.0
  %383 = vmatpush2.msra.mxu0 0.0
  %384 = vmatprep.subr.mxu0 0.0
  %385 = vmatpush2.msra.mxu0 0.0
  %386 = vmatprep.subr.mxu0 0.0
  %387 = vmatpush2.msra.mxu0 0.0
  %388 = vmatprep.subr.mxu0 0.0
  %389 = vmatpush2.msra.mxu0 0.0
  %390 = vmatprep.subr.mxu0 0.0
  %391 = vmatpush2.msra.mxu0 0.0
  %392 = vmatprep.subr.mxu0 0.0
  %393 = vmatpush2.msra.mxu0 0.0
  %394 = vmatprep.subr.mxu0 0.0
  %395 = vmatpush2.msra.mxu0 0.0
  %396 = vmatprep.subr.mxu0 0.0
  %397 = vmatpush2.msra.mxu0 0.0
  %398 = vmatprep.mubr.f32.mxu0 0.0
  %399 = vmatmul.mubr.f32.gmra.mxu0 %v320
  %v400 = vpop.f32.mrf.mxu0
  %v401 = vadd.f32 %v244, %v400
  %v402 = vpop.f32.mrf.mxu0
  %v403 = vadd.f32 %v246, %v402
  %404 = vdwg.mxu0
  %405 = vmatprep.subr.mxu0 0.0
  %406 = vmatpush1.msra.mxu0 0.0
  %407 = vmatprep.subr.mxu0 0.0
  %408 = vmatpush1.msra.mxu0 0.0
  %409 = vmatprep.subr.mxu0 0.0
  %410 = vmatpush1.msra.mxu0 0.0
  %411 = vmatprep.subr.mxu0 0.0
  %412 = vmatpush1.msra.mxu0 0.0
  %413 = vmatprep.subr.mxu0 0.0
  %414 = vmatpush1.msra.mxu0 0.0
  %415 = vmatprep.subr.mxu0 0.0
  %416 = vmatpush1.msra.mxu0 0.0
  %417 = vmatprep.subr.mxu0 0.0
  %418 = vmatpush1.msra.mxu0 0.0
  %419 = vmatprep.subr.mxu0 0.0
  %420 = vmatpush1.msra.mxu0 0.0
  %421 = vmatprep.subr.mxu0 0.0
  %422 = vmatpush1.msra.mxu0 0.0
  %423 = vmatprep.subr.mxu0 0.0
  %424 = vmatpush1.msra.mxu0 0.0
  %425 = vmatprep.subr.mxu0 0.0
  %426 = vmatpush1.msra.mxu0 0.0
  %427 = vmatprep.subr.mxu0 0.0
  %428 = vmatpush1.msra.mxu0 0.0
  %429 = vmatprep.subr.mxu0 0.0
  %430 = vmatpush1.msra.mxu0 0.0
  %431 = vmatprep.subr.mxu0 0.0
  %432 = vmatpush1.msra.mxu0 0.0
  %433 = vmatprep.subr.mxu0 0.0
  %434 = vmatpush1.msra.mxu0 0.0
  %435 = vmatprep.subr.mxu0 %v332
  %436 = vmatpush1.msra.mxu0 %v329
  %437 = vmatprep.subr.mxu0 0.0
  %438 = vmatpush2.msra.mxu0 0.0
  %439 = vmatprep.subr.mxu0 0.0
  %440 = vmatpush2.msra.mxu0 0.0
  %441 = vmatprep.subr.mxu0 0.0
  %442 = vmatpush2.msra.mxu0 0.0
  %443 = vmatprep.subr.mxu0 0.0
  %444 = vmatpush2.msra.mxu0 0.0
  %445 = vmatprep.subr.mxu0 0.0
  %446 = vmatpush2.msra.mxu0 0.0
  %447 = vmatprep.subr.mxu0 0.0
  %448 = vmatpush2.msra.mxu0 0.0
  %449 = vmatprep.subr.mxu0 0.0
  %450 = vmatpush2.msra.mxu0 0.0
  %451 = vmatprep.subr.mxu0 0.0
  %452 = vmatpush2.msra.mxu0 0.0
  %453 = vmatprep.subr.mxu0 0.0
  %454 = vmatpush2.msra.mxu0 0.0
  %455 = vmatprep.subr.mxu0 0.0
  %456 = vmatpush2.msra.mxu0 0.0
  %457 = vmatprep.subr.mxu0 0.0
  %458 = vmatpush2.msra.mxu0 0.0
  %459 = vmatprep.subr.mxu0 0.0
  %460 = vmatpush2.msra.mxu0 0.0
  %461 = vmatprep.subr.mxu0 0.0
  %462 = vmatpush2.msra.mxu0 0.0
  %463 = vmatprep.subr.mxu0 0.0
  %464 = vmatpush2.msra.mxu0 0.0
  %465 = vmatprep.subr.mxu0 0.0
  %466 = vmatpush2.msra.mxu0 0.0
  %467 = vmatprep.subr.mxu0 0.0
  %468 = vmatpush2.msra.mxu0 0.0
  %469 = vmatprep.mubr.f32.mxu0 0.0
  %470 = vmatmul.mubr.f32.gmra.mxu0 %v320
  %v471 = vpop.f32.mrf.mxu0
  %v472 = vadd.f32 %v315, %v471
  %v473 = vpop.f32.mrf.mxu0
  %v474 = vadd.f32 %v317, %v473
  %475 = vdwg.mxu0
  %v476 = vld [vmem:[#allocation2] sm:$0x77]
  %v477 = vld [vmem:[#allocation2 + $0x8] sm:$0x77]
  %v478 = vld [vmem:[#allocation2 + $0x10] sm:$0x7]
  %v479 = vsel %vm61, 1, 0
  %v480 = vsel %vm62, 1, 0
  %v481 = vsel %vm63, 1, 0
  %v482 = vsel %vm64, 1, 0
  %vm483 = vcmp.eq.s32.totalorder %v479, 1
  %vm484 = vcmp.eq.s32.totalorder %v480, 1
  %vm485 = vcmp.eq.s32.totalorder %v481, 1
  %vm486 = vcmp.eq.s32.totalorder %v482, 1
  %v490 = vcombine.high %v476, %v476
  %v491 = vcombine.high %v477, %v477
  %492 = vrot.lane.b32.xlu0 %v476, 126
  %v493 = vpop.permute.xlu0 %492
  %494 = vrot.lane.b32.xlu0 %v490, 126
  %v495 = vpop.permute.xlu0 %494
  %496 = vrot.lane.b32.xlu0 %v477, 126
  %v497 = vpop.permute.xlu0 %496
  %498 = vrot.lane.b32.xlu0 %v491, 126
  %v499 = vpop.permute.xlu0 %498
  %500 = vrot.lane.b32.xlu0 %v478, 126
  %v501 = vpop.permute.xlu0 %500
  %vm502 = vcmask 1031168
  %v503 = vsel %vm502, %v493, %v495
  %v504 = vsel %vm502, %v495, %v497
  %v505 = vsel %vm502, %v497, %v499
  %v506 = vsel %vm502, %v499, %v501
  %v511 = vsel %vm483, %v503, 0.0
  %v512 = vsel %vm484, %v504, 0.0
  %v513 = vsel %vm485, %v505, 0.0
  %v514 = vsel %vm486, %v506, 0.0
  %s515 = scalar_lea.vmem %s0, 8
  %v516 = vld [vmem:[%s515] sm:$0x7]
  %v518 = vsel %vm160, %v516, 0
  %v521 = vsel %vm164, %v511, 0
  %v524 = vsel %vm164, %v512, 0
  %v527 = vsel %vm164, %v513, 0
  %v530 = vsel %vm164, %v514, 0
  %532 = vmatprep.subr.mxu0 0.0
  %533 = vmatpush1.msra.mxu0 0.0
  %534 = vmatprep.subr.mxu0 0.0
  %535 = vmatpush1.msra.mxu0 0.0
  %536 = vmatprep.subr.mxu0 0.0
  %537 = vmatpush1.msra.mxu0 0.0
  %538 = vmatprep.subr.mxu0 0.0
  %539 = vmatpush1.msra.mxu0 0.0
  %540 = vmatprep.subr.mxu0 0.0
  %541 = vmatpush1.msra.mxu0 0.0
  %542 = vmatprep.subr.mxu0 0.0
  %543 = vmatpush1.msra.mxu0 0.0
  %544 = vmatprep.subr.mxu0 0.0
  %545 = vmatpush1.msra.mxu0 0.0
  %546 = vmatprep.subr.mxu0 0.0
  %547 = vmatpush1.msra.mxu0 0.0
  %548 = vmatprep.subr.mxu0 0.0
  %549 = vmatpush1.msra.mxu0 0.0
  %550 = vmatprep.subr.mxu0 0.0
  %551 = vmatpush1.msra.mxu0 0.0
  %552 = vmatprep.subr.mxu0 0.0
  %553 = vmatpush1.msra.mxu0 0.0
  %554 = vmatprep.subr.mxu0 0.0
  %555 = vmatpush1.msra.mxu0 0.0
  %556 = vmatprep.subr.mxu0 0.0
  %557 = vmatpush1.msra.mxu0 0.0
  %558 = vmatprep.subr.mxu0 0.0
  %559 = vmatpush1.msra.mxu0 0.0
  %560 = vmatprep.subr.mxu0 0.0
  %561 = vmatpush1.msra.mxu0 0.0
  %562 = vmatprep.subr.mxu0 %v524
  %563 = vmatpush1.msra.mxu0 %v521
  %564 = vmatprep.subr.mxu0 0.0
  %565 = vmatpush2.msra.mxu0 0.0
  %566 = vmatprep.subr.mxu0 0.0
  %567 = vmatpush2.msra.mxu0 0.0
  %568 = vmatprep.subr.mxu0 0.0
  %569 = vmatpush2.msra.mxu0 0.0
  %570 = vmatprep.subr.mxu0 0.0
  %571 = vmatpush2.msra.mxu0 0.0
  %572 = vmatprep.subr.mxu0 0.0
  %573 = vmatpush2.msra.mxu0 0.0
  %574 = vmatprep.subr.mxu0 0.0
  %575 = vmatpush2.msra.mxu0 0.0
  %576 = vmatprep.subr.mxu0 0.0
  %577 = vmatpush2.msra.mxu0 0.0
  %578 = vmatprep.subr.mxu0 0.0
  %579 = vmatpush2.msra.mxu0 0.0
  %580 = vmatprep.subr.mxu0 0.0
  %581 = vmatpush2.msra.mxu0 0.0
  %582 = vmatprep.subr.mxu0 0.0
  %583 = vmatpush2.msra.mxu0 0.0
  %584 = vmatprep.subr.mxu0 0.0
  %585 = vmatpush2.msra.mxu0 0.0
  %586 = vmatprep.subr.mxu0 0.0
  %587 = vmatpush2.msra.mxu0 0.0
  %588 = vmatprep.subr.mxu0 0.0
  %589 = vmatpush2.msra.mxu0 0.0
  %590 = vmatprep.subr.mxu0 0.0
  %591 = vmatpush2.msra.mxu0 0.0
  %592 = vmatprep.subr.mxu0 0.0
  %593 = vmatpush2.msra.mxu0 0.0
  %594 = vmatprep.subr.mxu0 0.0
  %595 = vmatpush2.msra.mxu0 0.0
  %596 = vmatprep.mubr.f32.mxu0 0.0
  %597 = vmatmul.mubr.f32.gmra.mxu0 %v518
  %v598 = vpop.f32.mrf.mxu0
  %v599 = vadd.f32 0.0, %v598
  %v600 = vpop.f32.mrf.mxu0
  %v601 = vadd.f32 0.0, %v600
  %602 = vdwg.mxu0
  %603 = vmatprep.subr.mxu0 0.0
  %604 = vmatpush1.msra.mxu0 0.0
  %605 = vmatprep.subr.mxu0 0.0
  %606 = vmatpush1.msra.mxu0 0.0
  %607 = vmatprep.subr.mxu0 0.0
  %608 = vmatpush1.msra.mxu0 0.0
  %609 = vmatprep.subr.mxu0 0.0
  %610 = vmatpush1.msra.mxu0 0.0
  %611 = vmatprep.subr.mxu0 0.0
  %612 = vmatpush1.msra.mxu0 0.0
  %613 = vmatprep.subr.mxu0 0.0
  %614 = vmatpush1.msra.mxu0 0.0
  %615 = vmatprep.subr.mxu0 0.0
  %616 = vmatpush1.msra.mxu0 0.0
  %617 = vmatprep.subr.mxu0 0.0
  %618 = vmatpush1.msra.mxu0 0.0
  %619 = vmatprep.subr.mxu0 0.0
  %620 = vmatpush1.msra.mxu0 0.0
  %621 = vmatprep.subr.mxu0 0.0
  %622 = vmatpush1.msra.mxu0 0.0
  %623 = vmatprep.subr.mxu0 0.0
  %624 = vmatpush1.msra.mxu0 0.0
  %625 = vmatprep.subr.mxu0 0.0
  %626 = vmatpush1.msra.mxu0 0.0
  %627 = vmatprep.subr.mxu0 0.0
  %628 = vmatpush1.msra.mxu0 0.0
  %629 = vmatprep.subr.mxu0 0.0
  %630 = vmatpush1.msra.mxu0 0.0
  %631 = vmatprep.subr.mxu0 0.0
  %632 = vmatpush1.msra.mxu0 0.0
  %633 = vmatprep.subr.mxu0 %v530
  %634 = vmatpush1.msra.mxu0 %v527
  %635 = vmatprep.subr.mxu0 0.0
  %636 = vmatpush2.msra.mxu0 0.0
  %637 = vmatprep.subr.mxu0 0.0
  %638 = vmatpush2.msra.mxu0 0.0
  %639 = vmatprep.subr.mxu0 0.0
  %640 = vmatpush2.msra.mxu0 0.0
  %641 = vmatprep.subr.mxu0 0.0
  %642 = vmatpush2.msra.mxu0 0.0
  %643 = vmatprep.subr.mxu0 0.0
  %644 = vmatpush2.msra.mxu0 0.0
  %645 = vmatprep.subr.mxu0 0.0
  %646 = vmatpush2.msra.mxu0 0.0
  %647 = vmatprep.subr.mxu0 0.0
  %648 = vmatpush2.msra.mxu0 0.0
  %649 = vmatprep.subr.mxu0 0.0
  %650 = vmatpush2.msra.mxu0 0.0
  %651 = vmatprep.subr.mxu0 0.0
  %652 = vmatpush2.msra.mxu0 0.0
  %653 = vmatprep.subr.mxu0 0.0
  %654 = vmatpush2.msra.mxu0 0.0
  %655 = vmatprep.subr.mxu0 0.0
  %656 = vmatpush2.msra.mxu0 0.0
  %657 = vmatprep.subr.mxu0 0.0
  %658 = vmatpush2.msra.mxu0 0.0
  %659 = vmatprep.subr.mxu0 0.0
  %660 = vmatpush2.msra.mxu0 0.0
  %661 = vmatprep.subr.mxu0 0.0
  %662 = vmatpush2.msra.mxu0 0.0
  %663 = vmatprep.subr.mxu0 0.0
  %664 = vmatpush2.msra.mxu0 0.0
  %665 = vmatprep.subr.mxu0 0.0
  %666 = vmatpush2.msra.mxu0 0.0
  %667 = vmatprep.mubr.f32.mxu0 0.0
  %668 = vmatmul.mubr.f32.gmra.mxu0 %v518
  %v669 = vpop.f32.mrf.mxu0
  %v670 = vadd.f32 0.0, %v669
  %v671 = vpop.f32.mrf.mxu0
  %v672 = vadd.f32 0.0, %v671
  %673 = vdwg.mxu0
  %v674 = vadd.f32 %v401, %v599
  %v675 = vadd.f32 %v403, %v601
  %v676 = vadd.f32 %v472, %v670
  %v677 = vadd.f32 %v474, %v672
  %v678 = vld [vmem:[#allocation2] sm:$0x77]
  %v679 = vld [vmem:[#allocation2 + $0x8] sm:$0x77]
  %v680 = vld [vmem:[#allocation2 + $0x10] sm:$0x7]
  %v681 = vsel %vm41, 1, 0
  %v682 = vsel %vm42, 1, 0
  %v683 = vsel %vm43, 1, 0
  %v684 = vsel %vm44, 1, 0
  %vm685 = vcmp.eq.s32.totalorder %v681, 1
  %vm686 = vcmp.eq.s32.totalorder %v682, 1
  %vm687 = vcmp.eq.s32.totalorder %v683, 1
  %vm688 = vcmp.eq.s32.totalorder %v684, 1
  %v692 = vcombine.high %v678, %v678
  %v693 = vcombine.high %v679, %v679
  %694 = vrot.lane.b32.xlu0 %v678, 112
  %v695 = vpop.permute.xlu0 %694
  %696 = vrot.lane.b32.xlu0 %v692, 112
  %v697 = vpop.permute.xlu0 %696
  %698 = vrot.lane.b32.xlu0 %v679, 112
  %v699 = vpop.permute.xlu0 %698
  %700 = vrot.lane.b32.xlu0 %v693, 112
  %v701 = vpop.permute.xlu0 %700
  %702 = vrot.lane.b32.xlu0 %v680, 112
  %v703 = vpop.permute.xlu0 %702
  %vm704 = vcmask 916480
  %v705 = vsel %vm704, %v695, %v697
  %v706 = vsel %vm704, %v697, %v699
  %v707 = vsel %vm704, %v699, %v701
  %v708 = vsel %vm704, %v701, %v703
  %v713 = vsel %vm685, %v705, 0.0
  %v714 = vsel %vm686, %v706, 0.0
  %v715 = vsel %vm687, %v707, 0.0
  %v716 = vsel %vm688, %v708, 0.0
  %s717 = scalar_lea.vmem %s0, 12
  %v718 = vld [vmem:[%s717] sm:$0x7]
  %v720 = vsel %vm160, %v718, 0
  %v723 = vsel %vm164, %v713, 0
  %v726 = vsel %vm164, %v714, 0
  %v729 = vsel %vm164, %v715, 0
  %v732 = vsel %vm164, %v716, 0
  %734 = vmatprep.subr.mxu0 0.0
  %735 = vmatpush1.msra.mxu0 0.0
  %736 = vmatprep.subr.mxu0 0.0
  %737 = vmatpush1.msra.mxu0 0.0
  %738 = vmatprep.subr.mxu0 0.0
  %739 = vmatpush1.msra.mxu0 0.0
  %740 = vmatprep.subr.mxu0 0.0
  %741 = vmatpush1.msra.mxu0 0.0
  %742 = vmatprep.subr.mxu0 0.0
  %743 = vmatpush1.msra.mxu0 0.0
  %744 = vmatprep.subr.mxu0 0.0
  %745 = vmatpush1.msra.mxu0 0.0
  %746 = vmatprep.subr.mxu0 0.0
  %747 = vmatpush1.msra.mxu0 0.0
  %748 = vmatprep.subr.mxu0 0.0
  %749 = vmatpush1.msra.mxu0 0.0
  %750 = vmatprep.subr.mxu0 0.0
  %751 = vmatpush1.msra.mxu0 0.0
  %752 = vmatprep.subr.mxu0 0.0
  %753 = vmatpush1.msra.mxu0 0.0
  %754 = vmatprep.subr.mxu0 0.0
  %755 = vmatpush1.msra.mxu0 0.0
  %756 = vmatprep.subr.mxu0 0.0
  %757 = vmatpush1.msra.mxu0 0.0
  %758 = vmatprep.subr.mxu0 0.0
  %759 = vmatpush1.msra.mxu0 0.0
  %760 = vmatprep.subr.mxu0 0.0
  %761 = vmatpush1.msra.mxu0 0.0
  %762 = vmatprep.subr.mxu0 0.0
  %763 = vmatpush1.msra.mxu0 0.0
  %764 = vmatprep.subr.mxu0 %v726
  %765 = vmatpush1.msra.mxu0 %v723
  %766 = vmatprep.subr.mxu0 0.0
  %767 = vmatpush2.msra.mxu0 0.0
  %768 = vmatprep.subr.mxu0 0.0
  %769 = vmatpush2.msra.mxu0 0.0
  %770 = vmatprep.subr.mxu0 0.0
  %771 = vmatpush2.msra.mxu0 0.0
  %772 = vmatprep.subr.mxu0 0.0
  %773 = vmatpush2.msra.mxu0 0.0
  %774 = vmatprep.subr.mxu0 0.0
  %775 = vmatpush2.msra.mxu0 0.0
  %776 = vmatprep.subr.mxu0 0.0
  %777 = vmatpush2.msra.mxu0 0.0
  %778 = vmatprep.subr.mxu0 0.0
  %779 = vmatpush2.msra.mxu0 0.0
  %780 = vmatprep.subr.mxu0 0.0
  %781 = vmatpush2.msra.mxu0 0.0
  %782 = vmatprep.subr.mxu0 0.0
  %783 = vmatpush2.msra.mxu0 0.0
  %784 = vmatprep.subr.mxu0 0.0
  %785 = vmatpush2.msra.mxu0 0.0
  %786 = vmatprep.subr.mxu0 0.0
  %787 = vmatpush2.msra.mxu0 0.0
  %788 = vmatprep.subr.mxu0 0.0
  %789 = vmatpush2.msra.mxu0 0.0
  %790 = vmatprep.subr.mxu0 0.0
  %791 = vmatpush2.msra.mxu0 0.0
  %792 = vmatprep.subr.mxu0 0.0
  %793 = vmatpush2.msra.mxu0 0.0
  %794 = vmatprep.subr.mxu0 0.0
  %795 = vmatpush2.msra.mxu0 0.0
  %796 = vmatprep.subr.mxu0 0.0
  %797 = vmatpush2.msra.mxu0 0.0
  %798 = vmatprep.mubr.f32.mxu0 0.0
  %799 = vmatmul.mubr.f32.gmra.mxu0 %v720
  %v800 = vpop.f32.mrf.mxu0
  %v801 = vadd.f32 0.0, %v800
  %v802 = vpop.f32.mrf.mxu0
  %v803 = vadd.f32 0.0, %v802
  %804 = vdwg.mxu0
  %805 = vmatprep.subr.mxu0 0.0
  %806 = vmatpush1.msra.mxu0 0.0
  %807 = vmatprep.subr.mxu0 0.0
  %808 = vmatpush1.msra.mxu0 0.0
  %809 = vmatprep.subr.mxu0 0.0
  %810 = vmatpush1.msra.mxu0 0.0
  %811 = vmatprep.subr.mxu0 0.0
  %812 = vmatpush1.msra.mxu0 0.0
  %813 = vmatprep.subr.mxu0 0.0
  %814 = vmatpush1.msra.mxu0 0.0
  %815 = vmatprep.subr.mxu0 0.0
  %816 = vmatpush1.msra.mxu0 0.0
  %817 = vmatprep.subr.mxu0 0.0
  %818 = vmatpush1.msra.mxu0 0.0
  %819 = vmatprep.subr.mxu0 0.0
  %820 = vmatpush1.msra.mxu0 0.0
  %821 = vmatprep.subr.mxu0 0.0
  %822 = vmatpush1.msra.mxu0 0.0
  %823 = vmatprep.subr.mxu0 0.0
  %824 = vmatpush1.msra.mxu0 0.0
  %825 = vmatprep.subr.mxu0 0.0
  %826 = vmatpush1.msra.mxu0 0.0
  %827 = vmatprep.subr.mxu0 0.0
  %828 = vmatpush1.msra.mxu0 0.0
  %829 = vmatprep.subr.mxu0 0.0
  %830 = vmatpush1.msra.mxu0 0.0
  %831 = vmatprep.subr.mxu0 0.0
  %832 = vmatpush1.msra.mxu0 0.0
  %833 = vmatprep.subr.mxu0 0.0
  %834 = vmatpush1.msra.mxu0 0.0
  %835 = vmatprep.subr.mxu0 %v732
  %836 = vmatpush1.msra.mxu0 %v729
  %837 = vmatprep.subr.mxu0 0.0
  %838 = vmatpush2.msra.mxu0 0.0
  %839 = vmatprep.subr.mxu0 0.0
  %840 = vmatpush2.msra.mxu0 0.0
  %841 = vmatprep.subr.mxu0 0.0
  %842 = vmatpush2.msra.mxu0 0.0
  %843 = vmatprep.subr.mxu0 0.0
  %844 = vmatpush2.msra.mxu0 0.0
  %845 = vmatprep.subr.mxu0 0.0
  %846 = vmatpush2.msra.mxu0 0.0
  %847 = vmatprep.subr.mxu0 0.0
  %848 = vmatpush2.msra.mxu0 0.0
  %849 = vmatprep.subr.mxu0 0.0
  %850 = vmatpush2.msra.mxu0 0.0
  %851 = vmatprep.subr.mxu0 0.0
  %852 = vmatpush2.msra.mxu0 0.0
  %853 = vmatprep.subr.mxu0 0.0
  %854 = vmatpush2.msra.mxu0 0.0
  %855 = vmatprep.subr.mxu0 0.0
  %856 = vmatpush2.msra.mxu0 0.0
  %857 = vmatprep.subr.mxu0 0.0
  %858 = vmatpush2.msra.mxu0 0.0
  %859 = vmatprep.subr.mxu0 0.0
  %860 = vmatpush2.msra.mxu0 0.0
  %861 = vmatprep.subr.mxu0 0.0
  %862 = vmatpush2.msra.mxu0 0.0
  %863 = vmatprep.subr.mxu0 0.0
  %864 = vmatpush2.msra.mxu0 0.0
  %865 = vmatprep.subr.mxu0 0.0
  %866 = vmatpush2.msra.mxu0 0.0
  %867 = vmatprep.subr.mxu0 0.0
  %868 = vmatpush2.msra.mxu0 0.0
  %869 = vmatprep.mubr.f32.mxu0 0.0
  %870 = vmatmul.mubr.f32.gmra.mxu0 %v720
  %v871 = vpop.f32.mrf.mxu0
  %v872 = vadd.f32 0.0, %v871
  %v873 = vpop.f32.mrf.mxu0
  %v874 = vadd.f32 0.0, %v873
  %875 = vdwg.mxu0
  %v876 = vadd.f32 %v674, %v801
  %v877 = vadd.f32 %v675, %v803
  %v878 = vadd.f32 %v676, %v872
  %v879 = vadd.f32 %v677, %v874
  %v880 = vld [vmem:[#allocation2] sm:$0x77]
  %v881 = vld [vmem:[#allocation2 + $0x8] sm:$0x77]
  %v882 = vld [vmem:[#allocation2 + $0x10] sm:$0x7]
  %s883 = scalar_lea.vmem %s0, 16
  %v884 = vld [vmem:[%s883] sm:$0x7]
  %v888 = vcombine.high %v880, %v880
  %v889 = vcombine.high %v881, %v881
  %890 = vrot.lane.b32.xlu0 %v880, 111
  %v891 = vpop.permute.xlu0 %890
  %892 = vrot.lane.b32.xlu0 %v888, 111
  %v893 = vpop.permute.xlu0 %892
  %894 = vrot.lane.b32.xlu0 %v881, 111
  %v895 = vpop.permute.xlu0 %894
  %896 = vrot.lane.b32.xlu0 %v889, 111
  %v897 = vpop.permute.xlu0 %896
  %898 = vrot.lane.b32.xlu0 %v882, 111
  %v899 = vpop.permute.xlu0 %898
  %vm900 = vcmask 908288
  %v901 = vsel %vm900, %v891, %v893
  %v902 = vsel %vm900, %v893, %v895
  %v903 = vsel %vm900, %v895, %v897
  %v904 = vsel %vm900, %v897, %v899
  %v906 = vsel %vm160, %v884, 0
  %v908 = vsel %vm164, %v901, 0
  %v910 = vsel %vm164, %v902, 0
  %v912 = vsel %vm164, %v903, 0
  %v914 = vsel %vm164, %v904, 0
  %916 = vmatprep.subr.mxu0 0.0
  %917 = vmatpush1.msra.mxu0 0.0
  %918 = vmatprep.subr.mxu0 0.0
  %919 = vmatpush1.msra.mxu0 0.0
  %920 = vmatprep.subr.mxu0 0.0
  %921 = vmatpush1.msra.mxu0 0.0
  %922 = vmatprep.subr.mxu0 0.0
  %923 = vmatpush1.msra.mxu0 0.0
  %924 = vmatprep.subr.mxu0 0.0
  %925 = vmatpush1.msra.mxu0 0.0
  %926 = vmatprep.subr.mxu0 0.0
  %927 = vmatpush1.msra.mxu0 0.0
  %928 = vmatprep.subr.mxu0 0.0
  %929 = vmatpush1.msra.mxu0 0.0
  %930 = vmatprep.subr.mxu0 0.0
  %931 = vmatpush1.msra.mxu0 0.0
  %932 = vmatprep.subr.mxu0 0.0
  %933 = vmatpush1.msra.mxu0 0.0
  %934 = vmatprep.subr.mxu0 0.0
  %935 = vmatpush1.msra.mxu0 0.0
  %936 = vmatprep.subr.mxu0 0.0
  %937 = vmatpush1.msra.mxu0 0.0
  %938 = vmatprep.subr.mxu0 0.0
  %939 = vmatpush1.msra.mxu0 0.0
  %940 = vmatprep.subr.mxu0 0.0
  %941 = vmatpush1.msra.mxu0 0.0
  %942 = vmatprep.subr.mxu0 0.0
  %943 = vmatpush1.msra.mxu0 0.0
  %944 = vmatprep.subr.mxu0 0.0
  %945 = vmatpush1.msra.mxu0 0.0
  %946 = vmatprep.subr.mxu0 %v910
  %947 = vmatpush1.msra.mxu0 %v908
  %948 = vmatprep.subr.mxu0 0.0
  %949 = vmatpush2.msra.mxu0 0.0
  %950 = vmatprep.subr.mxu0 0.0
  %951 = vmatpush2.msra.mxu0 0.0
  %952 = vmatprep.subr.mxu0 0.0
  %953 = vmatpush2.msra.mxu0 0.0
  %954 = vmatprep.subr.mxu0 0.0
  %955 = vmatpush2.msra.mxu0 0.0
  %956 = vmatprep.subr.mxu0 0.0
  %957 = vmatpush2.msra.mxu0 0.0
  %958 = vmatprep.subr.mxu0 0.0
  %959 = vmatpush2.msra.mxu0 0.0
  %960 = vmatprep.subr.mxu0 0.0
  %961 = vmatpush2.msra.mxu0 0.0
  %962 = vmatprep.subr.mxu0 0.0
  %963 = vmatpush2.msra.mxu0 0.0
  %964 = vmatprep.subr.mxu0 0.0
  %965 = vmatpush2.msra.mxu0 0.0
  %966 = vmatprep.subr.mxu0 0.0
  %967 = vmatpush2.msra.mxu0 0.0
  %968 = vmatprep.subr.mxu0 0.0
  %969 = vmatpush2.msra.mxu0 0.0
  %970 = vmatprep.subr.mxu0 0.0
  %971 = vmatpush2.msra.mxu0 0.0
  %972 = vmatprep.subr.mxu0 0.0
  %973 = vmatpush2.msra.mxu0 0.0
  %974 = vmatprep.subr.mxu0 0.0
  %975 = vmatpush2.msra.mxu0 0.0
  %976 = vmatprep.subr.mxu0 0.0
  %977 = vmatpush2.msra.mxu0 0.0
  %978 = vmatprep.subr.mxu0 0.0
  %979 = vmatpush2.msra.mxu0 0.0
  %980 = vmatprep.mubr.f32.mxu0 0.0
  %981 = vmatmul.mubr.f32.gmra.mxu0 %v906
  %v982 = vpop.f32.mrf.mxu0
  %v983 = vadd.f32 0.0, %v982
  %v984 = vpop.f32.mrf.mxu0
  %v985 = vadd.f32 0.0, %v984
  %986 = vdwg.mxu0
  %987 = vmatprep.subr.mxu0 0.0
  %988 = vmatpush1.msra.mxu0 0.0
  %989 = vmatprep.subr.mxu0 0.0
  %990 = vmatpush1.msra.mxu0 0.0
  %991 = vmatprep.subr.mxu0 0.0
  %992 = vmatpush1.msra.mxu0 0.0
  %993 = vmatprep.subr.mxu0 0.0
  %994 = vmatpush1.msra.mxu0 0.0
  %995 = vmatprep.subr.mxu0 0.0
  %996 = vmatpush1.msra.mxu0 0.0
  %997 = vmatprep.subr.mxu0 0.0
  %998 = vmatpush1.msra.mxu0 0.0
  %999 = vmatprep.subr.mxu0 0.0
  %1000 = vmatpush1.msra.mxu0 0.0
  %1001 = vmatprep.subr.mxu0 0.0
  %1002 = vmatpush1.msra.mxu0 0.0
  %1003 = vmatprep.subr.mxu0 0.0
  %1004 = vmatpush1.msra.mxu0 0.0
  %1005 = vmatprep.subr.mxu0 0.0
  %1006 = vmatpush1.msra.mxu0 0.0
  %1007 = vmatprep.subr.mxu0 0.0
  %1008 = vmatpush1.msra.mxu0 0.0
  %1009 = vmatprep.subr.mxu0 0.0
  %1010 = vmatpush1.msra.mxu0 0.0
  %1011 = vmatprep.subr.mxu0 0.0
  %1012 = vmatpush1.msra.mxu0 0.0
  %1013 = vmatprep.subr.mxu0 0.0
  %1014 = vmatpush1.msra.mxu0 0.0
  %1015 = vmatprep.subr.mxu0 0.0
  %1016 = vmatpush1.msra.mxu0 0.0
  %1017 = vmatprep.subr.mxu0 %v914
  %1018 = vmatpush1.msra.mxu0 %v912
  %1019 = vmatprep.subr.mxu0 0.0
  %1020 = vmatpush2.msra.mxu0 0.0
  %1021 = vmatprep.subr.mxu0 0.0
  %1022 = vmatpush2.msra.mxu0 0.0
  %1023 = vmatprep.subr.mxu0 0.0
  %1024 = vmatpush2.msra.mxu0 0.0
  %1025 = vmatprep.subr.mxu0 0.0
  %1026 = vmatpush2.msra.mxu0 0.0
  %1027 = vmatprep.subr.mxu0 0.0
  %1028 = vmatpush2.msra.mxu0 0.0
  %1029 = vmatprep.subr.mxu0 0.0
  %1030 = vmatpush2.msra.mxu0 0.0
  %1031 = vmatprep.subr.mxu0 0.0
  %1032 = vmatpush2.msra.mxu0 0.0
  %1033 = vmatprep.subr.mxu0 0.0
  %1034 = vmatpush2.msra.mxu0 0.0
  %1035 = vmatprep.subr.mxu0 0.0
  %1036 = vmatpush2.msra.mxu0 0.0
  %1037 = vmatprep.subr.mxu0 0.0
  %1038 = vmatpush2.msra.mxu0 0.0
  %1039 = vmatprep.subr.mxu0 0.0
  %1040 = vmatpush2.msra.mxu0 0.0
  %1041 = vmatprep.subr.mxu0 0.0
  %1042 = vmatpush2.msra.mxu0 0.0
  %1043 = vmatprep.subr.mxu0 0.0
  %1044 = vmatpush2.msra.mxu0 0.0
  %1045 = vmatprep.subr.mxu0 0.0
  %1046 = vmatpush2.msra.mxu0 0.0
  %1047 = vmatprep.subr.mxu0 0.0
  %1048 = vmatpush2.msra.mxu0 0.0
  %1049 = vmatprep.subr.mxu0 0.0
  %1050 = vmatpush2.msra.mxu0 0.0
  %1051 = vmatprep.mubr.f32.mxu0 0.0
  %1052 = vmatmul.mubr.f32.gmra.mxu0 %v906
  %v1053 = vpop.f32.mrf.mxu0
  %v1054 = vadd.f32 0.0, %v1053
  %v1055 = vpop.f32.mrf.mxu0
  %v1056 = vadd.f32 0.0, %v1055
  %1057 = vdwg.mxu0
  %v1058 = vadd.f32 %v876, %v983
  %v1059 = vadd.f32 %v877, %v985
  %v1060 = vadd.f32 %v878, %v1054
  %v1061 = vadd.f32 %v879, %v1056
  %v1062 = vld [vmem:[#allocation2] sm:$0x77]
  %v1063 = vld [vmem:[#allocation2 + $0x8] sm:$0x77]
  %v1064 = vld [vmem:[#allocation2 + $0x10] sm:$0x7]
  %v1065 = vsel %vm45, 1, 0
  %v1066 = vsel %vm46, 1, 0
  %v1067 = vsel %vm47, 1, 0
  %v1068 = vsel %vm48, 1, 0
  %vm1069 = vcmp.eq.s32.totalorder %v1065, 1
  %vm1070 = vcmp.eq.s32.totalorder %v1066, 1
  %vm1071 = vcmp.eq.s32.totalorder %v1067, 1
  %vm1072 = vcmp.eq.s32.totalorder %v1068, 1
  %v1076 = vcombine.high %v1062, %v1062
  %v1077 = vcombine.high %v1063, %v1063
  %1078 = vrot.lane.b32.xlu0 %v1062, 110
  %v1079 = vpop.permute.xlu0 %1078
  %1080 = vrot.lane.b32.xlu0 %v1076, 110
  %v1081 = vpop.permute.xlu0 %1080
  %1082 = vrot.lane.b32.xlu0 %v1063, 110
  %v1083 = vpop.permute.xlu0 %1082
  %1084 = vrot.lane.b32.xlu0 %v1077, 110
  %v1085 = vpop.permute.xlu0 %1084
  %1086 = vrot.lane.b32.xlu0 %v1064, 110
  %v1087 = vpop.permute.xlu0 %1086
  %vm1088 = vcmask 900096
  %v1089 = vsel %vm1088, %v1079, %v1081
  %v1090 = vsel %vm1088, %v1081, %v1083
  %v1091 = vsel %vm1088, %v1083, %v1085
  %v1092 = vsel %vm1088, %v1085, %v1087
  %v1097 = vsel %vm1069, %v1089, 0.0
  %v1098 = vsel %vm1070, %v1090, 0.0
  %v1099 = vsel %vm1071, %v1091, 0.0
  %v1100 = vsel %vm1072, %v1092, 0.0
  %s1101 = scalar_lea.vmem %s0, 20
  %v1102 = vld [vmem:[%s1101] sm:$0x7]
  %v1104 = vsel %vm160, %v1102, 0
  %v1107 = vsel %vm164, %v1097, 0
  %v1110 = vsel %vm164, %v1098, 0
  %v1113 = vsel %vm164, %v1099, 0
  %v1116 = vsel %vm164, %v1100, 0
  %1118 = vmatprep.subr.mxu0 0.0
  %1119 = vmatpush1.msra.mxu0 0.0
  %1120 = vmatprep.subr.mxu0 0.0
  %1121 = vmatpush1.msra.mxu0 0.0
  %1122 = vmatprep.subr.mxu0 0.0
  %1123 = vmatpush1.msra.mxu0 0.0
  %1124 = vmatprep.subr.mxu0 0.0
  %1125 = vmatpush1.msra.mxu0 0.0
  %1126 = vmatprep.subr.mxu0 0.0
  %1127 = vmatpush1.msra.mxu0 0.0
  %1128 = vmatprep.subr.mxu0 0.0
  %1129 = vmatpush1.msra.mxu0 0.0
  %1130 = vmatprep.subr.mxu0 0.0
  %1131 = vmatpush1.msra.mxu0 0.0
  %1132 = vmatprep.subr.mxu0 0.0
  %1133 = vmatpush1.msra.mxu0 0.0
  %1134 = vmatprep.subr.mxu0 0.0
  %1135 = vmatpush1.msra.mxu0 0.0
  %1136 = vmatprep.subr.mxu0 0.0
  %1137 = vmatpush1.msra.mxu0 0.0
  %1138 = vmatprep.subr.mxu0 0.0
  %1139 = vmatpush1.msra.mxu0 0.0
  %1140 = vmatprep.subr.mxu0 0.0
  %1141 = vmatpush1.msra.mxu0 0.0
  %1142 = vmatprep.subr.mxu0 0.0
  %1143 = vmatpush1.msra.mxu0 0.0
  %1144 = vmatprep.subr.mxu0 0.0
  %1145 = vmatpush1.msra.mxu0 0.0
  %1146 = vmatprep.subr.mxu0 0.0
  %1147 = vmatpush1.msra.mxu0 0.0
  %1148 = vmatprep.subr.mxu0 %v1110
  %1149 = vmatpush1.msra.mxu0 %v1107
  %1150 = vmatprep.subr.mxu0 0.0
  %1151 = vmatpush2.msra.mxu0 0.0
  %1152 = vmatprep.subr.mxu0 0.0
  %1153 = vmatpush2.msra.mxu0 0.0
  %1154 = vmatprep.subr.mxu0 0.0
  %1155 = vmatpush2.msra.mxu0 0.0
  %1156 = vmatprep.subr.mxu0 0.0
  %1157 = vmatpush2.msra.mxu0 0.0
  %1158 = vmatprep.subr.mxu0 0.0
  %1159 = vmatpush2.msra.mxu0 0.0
  %1160 = vmatprep.subr.mxu0 0.0
  %1161 = vmatpush2.msra.mxu0 0.0
  %1162 = vmatprep.subr.mxu0 0.0
  %1163 = vmatpush2.msra.mxu0 0.0
  %1164 = vmatprep.subr.mxu0 0.0
  %1165 = vmatpush2.msra.mxu0 0.0
  %1166 = vmatprep.subr.mxu0 0.0
  %1167 = vmatpush2.msra.mxu0 0.0
  %1168 = vmatprep.subr.mxu0 0.0
  %1169 = vmatpush2.msra.mxu0 0.0
  %1170 = vmatprep.subr.mxu0 0.0
  %1171 = vmatpush2.msra.mxu0 0.0
  %1172 = vmatprep.subr.mxu0 0.0
  %1173 = vmatpush2.msra.mxu0 0.0
  %1174 = vmatprep.subr.mxu0 0.0
  %1175 = vmatpush2.msra.mxu0 0.0
  %1176 = vmatprep.subr.mxu0 0.0
  %1177 = vmatpush2.msra.mxu0 0.0
  %1178 = vmatprep.subr.mxu0 0.0
  %1179 = vmatpush2.msra.mxu0 0.0
  %1180 = vmatprep.subr.mxu0 0.0
  %1181 = vmatpush2.msra.mxu0 0.0
  %1182 = vmatprep.mubr.f32.mxu0 0.0
  %1183 = vmatmul.mubr.f32.gmra.mxu0 %v1104
  %v1184 = vpop.f32.mrf.mxu0
  %v1185 = vadd.f32 0.0, %v1184
  %v1186 = vpop.f32.mrf.mxu0
  %v1187 = vadd.f32 0.0, %v1186
  %1188 = vdwg.mxu0
  %1189 = vmatprep.subr.mxu0 0.0
  %1190 = vmatpush1.msra.mxu0 0.0
  %1191 = vmatprep.subr.mxu0 0.0
  %1192 = vmatpush1.msra.mxu0 0.0
  %1193 = vmatprep.subr.mxu0 0.0
  %1194 = vmatpush1.msra.mxu0 0.0
  %1195 = vmatprep.subr.mxu0 0.0
  %1196 = vmatpush1.msra.mxu0 0.0
  %1197 = vmatprep.subr.mxu0 0.0
  %1198 = vmatpush1.msra.mxu0 0.0
  %1199 = vmatprep.subr.mxu0 0.0
  %1200 = vmatpush1.msra.mxu0 0.0
  %1201 = vmatprep.subr.mxu0 0.0
  %1202 = vmatpush1.msra.mxu0 0.0
  %1203 = vmatprep.subr.mxu0 0.0
  %1204 = vmatpush1.msra.mxu0 0.0
  %1205 = vmatprep.subr.mxu0 0.0
  %1206 = vmatpush1.msra.mxu0 0.0
  %1207 = vmatprep.subr.mxu0 0.0
  %1208 = vmatpush1.msra.mxu0 0.0
  %1209 = vmatprep.subr.mxu0 0.0
  %1210 = vmatpush1.msra.mxu0 0.0
  %1211 = vmatprep.subr.mxu0 0.0
  %1212 = vmatpush1.msra.mxu0 0.0
  %1213 = vmatprep.subr.mxu0 0.0
  %1214 = vmatpush1.msra.mxu0 0.0
  %1215 = vmatprep.subr.mxu0 0.0
  %1216 = vmatpush1.msra.mxu0 0.0
  %1217 = vmatprep.subr.mxu0 0.0
  %1218 = vmatpush1.msra.mxu0 0.0
  %1219 = vmatprep.subr.mxu0 %v1116
  %1220 = vmatpush1.msra.mxu0 %v1113
  %1221 = vmatprep.subr.mxu0 0.0
  %1222 = vmatpush2.msra.mxu0 0.0
  %1223 = vmatprep.subr.mxu0 0.0
  %1224 = vmatpush2.msra.mxu0 0.0
  %1225 = vmatprep.subr.mxu0 0.0
  %1226 = vmatpush2.msra.mxu0 0.0
  %1227 = vmatprep.subr.mxu0 0.0
  %1228 = vmatpush2.msra.mxu0 0.0
  %1229 = vmatprep.subr.mxu0 0.0
  %1230 = vmatpush2.msra.mxu0 0.0
  %1231 = vmatprep.subr.mxu0 0.0
  %1232 = vmatpush2.msra.mxu0 0.0
  %1233 = vmatprep.subr.mxu0 0.0
  %1234 = vmatpush2.msra.mxu0 0.0
  %1235 = vmatprep.subr.mxu0 0.0
  %1236 = vmatpush2.msra.mxu0 0.0
  %1237 = vmatprep.subr.mxu0 0.0
  %1238 = vmatpush2.msra.mxu0 0.0
  %1239 = vmatprep.subr.mxu0 0.0
  %1240 = vmatpush2.msra.mxu0 0.0
  %1241 = vmatprep.subr.mxu0 0.0
  %1242 = vmatpush2.msra.mxu0 0.0
  %1243 = vmatprep.subr.mxu0 0.0
  %1244 = vmatpush2.msra.mxu0 0.0
  %1245 = vmatprep.subr.mxu0 0.0
  %1246 = vmatpush2.msra.mxu0 0.0
  %1247 = vmatprep.subr.mxu0 0.0
  %1248 = vmatpush2.msra.mxu0 0.0
  %1249 = vmatprep.subr.mxu0 0.0
  %1250 = vmatpush2.msra.mxu0 0.0
  %1251 = vmatprep.subr.mxu0 0.0
  %1252 = vmatpush2.msra.mxu0 0.0
  %1253 = vmatprep.mubr.f32.mxu0 0.0
  %1254 = vmatmul.mubr.f32.gmra.mxu0 %v1104
  %v1255 = vpop.f32.mrf.mxu0
  %v1256 = vadd.f32 0.0, %v1255
  %v1257 = vpop.f32.mrf.mxu0
  %v1258 = vadd.f32 0.0, %v1257
  %1259 = vdwg.mxu0
  %v1260 = vadd.f32 %v1058, %v1185
  %v1261 = vadd.f32 %v1059, %v1187
  %v1262 = vadd.f32 %v1060, %v1256
  %v1263 = vadd.f32 %v1061, %v1258
  %v1264 = vld [vmem:[#allocation2] sm:$0x77]
  %v1265 = vld [vmem:[#allocation2 + $0x8] sm:$0x77]
  %v1266 = vld [vmem:[#allocation2 + $0x10] sm:$0x7]
  %v1267 = vsel %vm65, 1, 0
  %v1268 = vsel %vm66, 1, 0
  %v1269 = vsel %vm67, 1, 0
  %v1270 = vsel %vm68, 1, 0
  %vm1271 = vcmp.eq.s32.totalorder %v1267, 1
  %vm1272 = vcmp.eq.s32.totalorder %v1268, 1
  %vm1273 = vcmp.eq.s32.totalorder %v1269, 1
  %vm1274 = vcmp.eq.s32.totalorder %v1270, 1
  %v1278 = vcombine.high %v1264, %v1264
  %v1279 = vcombine.high %v1265, %v1265
  %1280 = vrot.lane.b32.xlu0 %v1264, 96
  %v1281 = vpop.permute.xlu0 %1280
  %1282 = vrot.lane.b32.xlu0 %v1278, 96
  %v1283 = vpop.permute.xlu0 %1282
  %1284 = vrot.lane.b32.xlu0 %v1265, 96
  %v1285 = vpop.permute.xlu0 %1284
  %1286 = vrot.lane.b32.xlu0 %v1279, 96
  %v1287 = vpop.permute.xlu0 %1286
  %1288 = vrot.lane.b32.xlu0 %v1266, 96
  %v1289 = vpop.permute.xlu0 %1288
  %vm1290 = vcmask 785408
  %v1291 = vsel %vm1290, %v1281, %v1283
  %v1292 = vsel %vm1290, %v1283, %v1285
  %v1293 = vsel %vm1290, %v1285, %v1287
  %v1294 = vsel %vm1290, %v1287, %v1289
  %v1299 = vsel %vm1271, %v1291, 0.0
  %v1300 = vsel %vm1272, %v1292, 0.0
  %v1301 = vsel %vm1273, %v1293, 0.0
  %v1302 = vsel %vm1274, %v1294, 0.0
  %s1303 = scalar_lea.vmem %s0, 24
  %v1304 = vld [vmem:[%s1303] sm:$0x7]
  %v1306 = vsel %vm160, %v1304, 0
  %v1309 = vsel %vm164, %v1299, 0
  %v1312 = vsel %vm164, %v1300, 0
  %v1315 = vsel %vm164, %v1301, 0
  %v1318 = vsel %vm164, %v1302, 0
  %1320 = vmatprep.subr.mxu0 0.0
  %1321 = vmatpush1.msra.mxu0 0.0
  %1322 = vmatprep.subr.mxu0 0.0
  %1323 = vmatpush1.msra.mxu0 0.0
  %1324 = vmatprep.subr.mxu0 0.0
  %1325 = vmatpush1.msra.mxu0 0.0
  %1326 = vmatprep.subr.mxu0 0.0
  %1327 = vmatpush1.msra.mxu0 0.0
  %1328 = vmatprep.subr.mxu0 0.0
  %1329 = vmatpush1.msra.mxu0 0.0
  %1330 = vmatprep.subr.mxu0 0.0
  %1331 = vmatpush1.msra.mxu0 0.0
  %1332 = vmatprep.subr.mxu0 0.0
  %1333 = vmatpush1.msra.mxu0 0.0
  %1334 = vmatprep.subr.mxu0 0.0
  %1335 = vmatpush1.msra.mxu0 0.0
  %1336 = vmatprep.subr.mxu0 0.0
  %1337 = vmatpush1.msra.mxu0 0.0
  %1338 = vmatprep.subr.mxu0 0.0
  %1339 = vmatpush1.msra.mxu0 0.0
  %1340 = vmatprep.subr.mxu0 0.0
  %1341 = vmatpush1.msra.mxu0 0.0
  %1342 = vmatprep.subr.mxu0 0.0
  %1343 = vmatpush1.msra.mxu0 0.0
  %1344 = vmatprep.subr.mxu0 0.0
  %1345 = vmatpush1.msra.mxu0 0.0
  %1346 = vmatprep.subr.mxu0 0.0
  %1347 = vmatpush1.msra.mxu0 0.0
  %1348 = vmatprep.subr.mxu0 0.0
  %1349 = vmatpush1.msra.mxu0 0.0
  %1350 = vmatprep.subr.mxu0 %v1312
  %1351 = vmatpush1.msra.mxu0 %v1309
  %1352 = vmatprep.subr.mxu0 0.0
  %1353 = vmatpush2.msra.mxu0 0.0
  %1354 = vmatprep.subr.mxu0 0.0
  %1355 = vmatpush2.msra.mxu0 0.0
  %1356 = vmatprep.subr.mxu0 0.0
  %1357 = vmatpush2.msra.mxu0 0.0
  %1358 = vmatprep.subr.mxu0 0.0
  %1359 = vmatpush2.msra.mxu0 0.0
  %1360 = vmatprep.subr.mxu0 0.0
  %1361 = vmatpush2.msra.mxu0 0.0
  %1362 = vmatprep.subr.mxu0 0.0
  %1363 = vmatpush2.msra.mxu0 0.0
  %1364 = vmatprep.subr.mxu0 0.0
  %1365 = vmatpush2.msra.mxu0 0.0
  %1366 = vmatprep.subr.mxu0 0.0
  %1367 = vmatpush2.msra.mxu0 0.0
  %1368 = vmatprep.subr.mxu0 0.0
  %1369 = vmatpush2.msra.mxu0 0.0
  %1370 = vmatprep.subr.mxu0 0.0
  %1371 = vmatpush2.msra.mxu0 0.0
  %1372 = vmatprep.subr.mxu0 0.0
  %1373 = vmatpush2.msra.mxu0 0.0
  %1374 = vmatprep.subr.mxu0 0.0
  %1375 = vmatpush2.msra.mxu0 0.0
  %1376 = vmatprep.subr.mxu0 0.0
  %1377 = vmatpush2.msra.mxu0 0.0
  %1378 = vmatprep.subr.mxu0 0.0
  %1379 = vmatpush2.msra.mxu0 0.0
  %1380 = vmatprep.subr.mxu0 0.0
  %1381 = vmatpush2.msra.mxu0 0.0
  %1382 = vmatprep.subr.mxu0 0.0
  %1383 = vmatpush2.msra.mxu0 0.0
  %1384 = vmatprep.mubr.f32.mxu0 0.0
  %1385 = vmatmul.mubr.f32.gmra.mxu0 %v1306
  %v1386 = vpop.f32.mrf.mxu0
  %v1387 = vadd.f32 0.0, %v1386
  %v1388 = vpop.f32.mrf.mxu0
  %v1389 = vadd.f32 0.0, %v1388
  %1390 = vdwg.mxu0
  %1391 = vmatprep.subr.mxu0 0.0
  %1392 = vmatpush1.msra.mxu0 0.0
  %1393 = vmatprep.subr.mxu0 0.0
  %1394 = vmatpush1.msra.mxu0 0.0
  %1395 = vmatprep.subr.mxu0 0.0
  %1396 = vmatpush1.msra.mxu0 0.0
  %1397 = vmatprep.subr.mxu0 0.0
  %1398 = vmatpush1.msra.mxu0 0.0
  %1399 = vmatprep.subr.mxu0 0.0
  %1400 = vmatpush1.msra.mxu0 0.0
  %1401 = vmatprep.subr.mxu0 0.0
  %1402 = vmatpush1.msra.mxu0 0.0
  %1403 = vmatprep.subr.mxu0 0.0
  %1404 = vmatpush1.msra.mxu0 0.0
  %1405 = vmatprep.subr.mxu0 0.0
  %1406 = vmatpush1.msra.mxu0 0.0
  %1407 = vmatprep.subr.mxu0 0.0
  %1408 = vmatpush1.msra.mxu0 0.0
  %1409 = vmatprep.subr.mxu0 0.0
  %1410 = vmatpush1.msra.mxu0 0.0
  %1411 = vmatprep.subr.mxu0 0.0
  %1412 = vmatpush1.msra.mxu0 0.0
  %1413 = vmatprep.subr.mxu0 0.0
  %1414 = vmatpush1.msra.mxu0 0.0
  %1415 = vmatprep.subr.mxu0 0.0
  %1416 = vmatpush1.msra.mxu0 0.0
  %1417 = vmatprep.subr.mxu0 0.0
  %1418 = vmatpush1.msra.mxu0 0.0
  %1419 = vmatprep.subr.mxu0 0.0
  %1420 = vmatpush1.msra.mxu0 0.0
  %1421 = vmatprep.subr.mxu0 %v1318
  %1422 = vmatpush1.msra.mxu0 %v1315
  %1423 = vmatprep.subr.mxu0 0.0
  %1424 = vmatpush2.msra.mxu0 0.0
  %1425 = vmatprep.subr.mxu0 0.0
  %1426 = vmatpush2.msra.mxu0 0.0
  %1427 = vmatprep.subr.mxu0 0.0
  %1428 = vmatpush2.msra.mxu0 0.0
  %1429 = vmatprep.subr.mxu0 0.0
  %1430 = vmatpush2.msra.mxu0 0.0
  %1431 = vmatprep.subr.mxu0 0.0
  %1432 = vmatpush2.msra.mxu0 0.0
  %1433 = vmatprep.subr.mxu0 0.0
  %1434 = vmatpush2.msra.mxu0 0.0
  %1435 = vmatprep.subr.mxu0 0.0
  %1436 = vmatpush2.msra.mxu0 0.0
  %1437 = vmatprep.subr.mxu0 0.0
  %1438 = vmatpush2.msra.mxu0 0.0
  %1439 = vmatprep.subr.mxu0 0.0
  %1440 = vmatpush2.msra.mxu0 0.0
  %1441 = vmatprep.subr.mxu0 0.0
  %1442 = vmatpush2.msra.mxu0 0.0
  %1443 = vmatprep.subr.mxu0 0.0
  %1444 = vmatpush2.msra.mxu0 0.0
  %1445 = vmatprep.subr.mxu0 0.0
  %1446 = vmatpush2.msra.mxu0 0.0
  %1447 = vmatprep.subr.mxu0 0.0
  %1448 = vmatpush2.msra.mxu0 0.0
  %1449 = vmatprep.subr.mxu0 0.0
  %1450 = vmatpush2.msra.mxu0 0.0
  %1451 = vmatprep.subr.mxu0 0.0
  %1452 = vmatpush2.msra.mxu0 0.0
  %1453 = vmatprep.subr.mxu0 0.0
  %1454 = vmatpush2.msra.mxu0 0.0
  %1455 = vmatprep.mubr.f32.mxu0 0.0
  %1456 = vmatmul.mubr.f32.gmra.mxu0 %v1306
  %v1457 = vpop.f32.mrf.mxu0
  %v1458 = vadd.f32 0.0, %v1457
  %v1459 = vpop.f32.mrf.mxu0
  %v1460 = vadd.f32 0.0, %v1459
  %1461 = vdwg.mxu0
  %v1462 = vadd.f32 %v1260, %v1387
  %v1463 = vadd.f32 %v1261, %v1389
  %v1464 = vadd.f32 %v1262, %v1458
  %v1465 = vadd.f32 %v1263, %v1460
  %v1466 = vld [vmem:[#allocation2] sm:$0x77]
  %v1467 = vld [vmem:[#allocation2 + $0x8] sm:$0x77]
  %v1468 = vld [vmem:[#allocation2 + $0x10] sm:$0x7]
  %v1469 = vsel %vm53, 1, 0
  %v1470 = vsel %vm54, 1, 0
  %v1471 = vsel %vm55, 1, 0
  %v1472 = vsel %vm56, 1, 0
  %vm1473 = vcmp.eq.s32.totalorder %v1469, 1
  %vm1474 = vcmp.eq.s32.totalorder %v1470, 1
  %vm1475 = vcmp.eq.s32.totalorder %v1471, 1
  %vm1476 = vcmp.eq.s32.totalorder %v1472, 1
  %v1480 = vcombine.high %v1466, %v1466
  %v1481 = vcombine.high %v1467, %v1467
  %1482 = vrot.lane.b32.xlu0 %v1466, 95
  %v1483 = vpop.permute.xlu0 %1482
  %1484 = vrot.lane.b32.xlu0 %v1480, 95
  %v1485 = vpop.permute.xlu0 %1484
  %1486 = vrot.lane.b32.xlu0 %v1467, 95
  %v1487 = vpop.permute.xlu0 %1486
  %1488 = vrot.lane.b32.xlu0 %v1481, 95
  %v1489 = vpop.permute.xlu0 %1488
  %1490 = vrot.lane.b32.xlu0 %v1468, 95
  %v1491 = vpop.permute.xlu0 %1490
  %vm1492 = vcmask 777216
  %v1493 = vsel %vm1492, %v1483, %v1485
  %v1494 = vsel %vm1492, %v1485, %v1487
  %v1495 = vsel %vm1492, %v1487, %v1489
  %v1496 = vsel %vm1492, %v1489, %v1491
  %v1501 = vsel %vm1473, %v1493, 0.0
  %v1502 = vsel %vm1474, %v1494, 0.0
  %v1503 = vsel %vm1475, %v1495, 0.0
  %v1504 = vsel %vm1476, %v1496, 0.0
  %s1505 = scalar_lea.vmem %s0, 28
  %v1506 = vld [vmem:[%s1505] sm:$0x7]
  %v1508 = vsel %vm160, %v1506, 0
  %v1511 = vsel %vm164, %v1501, 0
  %v1514 = vsel %vm164, %v1502, 0
  %v1517 = vsel %vm164, %v1503, 0
  %v1520 = vsel %vm164, %v1504, 0
  %1522 = vmatprep.subr.mxu0 0.0
  %1523 = vmatpush1.msra.mxu0 0.0
  %1524 = vmatprep.subr.mxu0 0.0
  %1525 = vmatpush1.msra.mxu0 0.0
  %1526 = vmatprep.subr.mxu0 0.0
  %1527 = vmatpush1.msra.mxu0 0.0
  %1528 = vmatprep.subr.mxu0 0.0
  %1529 = vmatpush1.msra.mxu0 0.0
  %1530 = vmatprep.subr.mxu0 0.0
  %1531 = vmatpush1.msra.mxu0 0.0
  %1532 = vmatprep.subr.mxu0 0.0
  %1533 = vmatpush1.msra.mxu0 0.0
  %1534 = vmatprep.subr.mxu0 0.0
  %1535 = vmatpush1.msra.mxu0 0.0
  %1536 = vmatprep.subr.mxu0 0.0
  %1537 = vmatpush1.msra.mxu0 0.0
  %1538 = vmatprep.subr.mxu0 0.0
  %1539 = vmatpush1.msra.mxu0 0.0
  %1540 = vmatprep.subr.mxu0 0.0
  %1541 = vmatpush1.msra.mxu0 0.0
  %1542 = vmatprep.subr.mxu0 0.0
  %1543 = vmatpush1.msra.mxu0 0.0
  %1544 = vmatprep.subr.mxu0 0.0
  %1545 = vmatpush1.msra.mxu0 0.0
  %1546 = vmatprep.subr.mxu0 0.0
  %1547 = vmatpush1.msra.mxu0 0.0
  %1548 = vmatprep.subr.mxu0 0.0
  %1549 = vmatpush1.msra.mxu0 0.0
  %1550 = vmatprep.subr.mxu0 0.0
  %1551 = vmatpush1.msra.mxu0 0.0
  %1552 = vmatprep.subr.mxu0 %v1514
  %1553 = vmatpush1.msra.mxu0 %v1511
  %1554 = vmatprep.subr.mxu0 0.0
  %1555 = vmatpush2.msra.mxu0 0.0
  %1556 = vmatprep.subr.mxu0 0.0
  %1557 = vmatpush2.msra.mxu0 0.0
  %1558 = vmatprep.subr.mxu0 0.0
  %1559 = vmatpush2.msra.mxu0 0.0
  %1560 = vmatprep.subr.mxu0 0.0
  %1561 = vmatpush2.msra.mxu0 0.0
  %1562 = vmatprep.subr.mxu0 0.0
  %1563 = vmatpush2.msra.mxu0 0.0
  %1564 = vmatprep.subr.mxu0 0.0
  %1565 = vmatpush2.msra.mxu0 0.0
  %1566 = vmatprep.subr.mxu0 0.0
  %1567 = vmatpush2.msra.mxu0 0.0
  %1568 = vmatprep.subr.mxu0 0.0
  %1569 = vmatpush2.msra.mxu0 0.0
  %1570 = vmatprep.subr.mxu0 0.0
  %1571 = vmatpush2.msra.mxu0 0.0
  %1572 = vmatprep.subr.mxu0 0.0
  %1573 = vmatpush2.msra.mxu0 0.0
  %1574 = vmatprep.subr.mxu0 0.0
  %1575 = vmatpush2.msra.mxu0 0.0
  %1576 = vmatprep.subr.mxu0 0.0
  %1577 = vmatpush2.msra.mxu0 0.0
  %1578 = vmatprep.subr.mxu0 0.0
  %1579 = vmatpush2.msra.mxu0 0.0
  %1580 = vmatprep.subr.mxu0 0.0
  %1581 = vmatpush2.msra.mxu0 0.0
  %1582 = vmatprep.subr.mxu0 0.0
  %1583 = vmatpush2.msra.mxu0 0.0
  %1584 = vmatprep.subr.mxu0 0.0
  %1585 = vmatpush2.msra.mxu0 0.0
  %1586 = vmatprep.mubr.f32.mxu0 0.0
  %1587 = vmatmul.mubr.f32.gmra.mxu0 %v1508
  %v1588 = vpop.f32.mrf.mxu0
  %v1589 = vadd.f32 0.0, %v1588
  %v1590 = vpop.f32.mrf.mxu0
  %v1591 = vadd.f32 0.0, %v1590
  %1592 = vdwg.mxu0
  %1593 = vmatprep.subr.mxu0 0.0
  %1594 = vmatpush1.msra.mxu0 0.0
  %1595 = vmatprep.subr.mxu0 0.0
  %1596 = vmatpush1.msra.mxu0 0.0
  %1597 = vmatprep.subr.mxu0 0.0
  %1598 = vmatpush1.msra.mxu0 0.0
  %1599 = vmatprep.subr.mxu0 0.0
  %1600 = vmatpush1.msra.mxu0 0.0
  %1601 = vmatprep.subr.mxu0 0.0
  %1602 = vmatpush1.msra.mxu0 0.0
  %1603 = vmatprep.subr.mxu0 0.0
  %1604 = vmatpush1.msra.mxu0 0.0
  %1605 = vmatprep.subr.mxu0 0.0
  %1606 = vmatpush1.msra.mxu0 0.0
  %1607 = vmatprep.subr.mxu0 0.0
  %1608 = vmatpush1.msra.mxu0 0.0
  %1609 = vmatprep.subr.mxu0 0.0
  %1610 = vmatpush1.msra.mxu0 0.0
  %1611 = vmatprep.subr.mxu0 0.0
  %1612 = vmatpush1.msra.mxu0 0.0
  %1613 = vmatprep.subr.mxu0 0.0
  %1614 = vmatpush1.msra.mxu0 0.0
  %1615 = vmatprep.subr.mxu0 0.0
  %1616 = vmatpush1.msra.mxu0 0.0
  %1617 = vmatprep.subr.mxu0 0.0
  %1618 = vmatpush1.msra.mxu0 0.0
  %1619 = vmatprep.subr.mxu0 0.0
  %1620 = vmatpush1.msra.mxu0 0.0
  %1621 = vmatprep.subr.mxu0 0.0
  %1622 = vmatpush1.msra.mxu0 0.0
  %1623 = vmatprep.subr.mxu0 %v1520
  %1624 = vmatpush1.msra.mxu0 %v1517
  %1625 = vmatprep.subr.mxu0 0.0
  %1626 = vmatpush2.msra.mxu0 0.0
  %1627 = vmatprep.subr.mxu0 0.0
  %1628 = vmatpush2.msra.mxu0 0.0
  %1629 = vmatprep.subr.mxu0 0.0
  %1630 = vmatpush2.msra.mxu0 0.0
  %1631 = vmatprep.subr.mxu0 0.0
  %1632 = vmatpush2.msra.mxu0 0.0
  %1633 = vmatprep.subr.mxu0 0.0
  %1634 = vmatpush2.msra.mxu0 0.0
  %1635 = vmatprep.subr.mxu0 0.0
  %1636 = vmatpush2.msra.mxu0 0.0
  %1637 = vmatprep.subr.mxu0 0.0
  %1638 = vmatpush2.msra.mxu0 0.0
  %1639 = vmatprep.subr.mxu0 0.0
  %1640 = vmatpush2.msra.mxu0 0.0
  %1641 = vmatprep.subr.mxu0 0.0
  %1642 = vmatpush2.msra.mxu0 0.0
  %1643 = vmatprep.subr.mxu0 0.0
  %1644 = vmatpush2.msra.mxu0 0.0
  %1645 = vmatprep.subr.mxu0 0.0
  %1646 = vmatpush2.msra.mxu0 0.0
  %1647 = vmatprep.subr.mxu0 0.0
  %1648 = vmatpush2.msra.mxu0 0.0
  %1649 = vmatprep.subr.mxu0 0.0
  %1650 = vmatpush2.msra.mxu0 0.0
  %1651 = vmatprep.subr.mxu0 0.0
  %1652 = vmatpush2.msra.mxu0 0.0
  %1653 = vmatprep.subr.mxu0 0.0
  %1654 = vmatpush2.msra.mxu0 0.0
  %1655 = vmatprep.subr.mxu0 0.0
  %1656 = vmatpush2.msra.mxu0 0.0
  %1657 = vmatprep.mubr.f32.mxu0 0.0
  %1658 = vmatmul.mubr.f32.gmra.mxu0 %v1508
  %v1659 = vpop.f32.mrf.mxu0
  %v1660 = vadd.f32 0.0, %v1659
  %v1661 = vpop.f32.mrf.mxu0
  %v1662 = vadd.f32 0.0, %v1661
  %1663 = vdwg.mxu0
  %v1664 = vadd.f32 %v1462, %v1589
  %v1665 = vadd.f32 %v1463, %v1591
  %v1666 = vadd.f32 %v1464, %v1660
  %v1667 = vadd.f32 %v1465, %v1662
  %v1668 = vld [vmem:[#allocation2] sm:$0x77]
  %v1669 = vld [vmem:[#allocation2 + $0x8] sm:$0x77]
  %v1670 = vld [vmem:[#allocation2 + $0x10] sm:$0x7]
  %v1671 = vsel %vm69, 1, 0
  %v1672 = vsel %vm70, 1, 0
  %v1673 = vsel %vm71, 1, 0
  %v1674 = vsel %vm72, 1, 0
  %vm1675 = vcmp.eq.s32.totalorder %v1671, 1
  %vm1676 = vcmp.eq.s32.totalorder %v1672, 1
  %vm1677 = vcmp.eq.s32.totalorder %v1673, 1
  %vm1678 = vcmp.eq.s32.totalorder %v1674, 1
  %v1682 = vcombine.high %v1668, %v1668
  %v1683 = vcombine.high %v1669, %v1669
  %1684 = vrot.lane.b32.xlu0 %v1668, 94
  %v1685 = vpop.permute.xlu0 %1684
  %1686 = vrot.lane.b32.xlu0 %v1682, 94
  %v1687 = vpop.permute.xlu0 %1686
  %1688 = vrot.lane.b32.xlu0 %v1669, 94
  %v1689 = vpop.permute.xlu0 %1688
  %1690 = vrot.lane.b32.xlu0 %v1683, 94
  %v1691 = vpop.permute.xlu0 %1690
  %1692 = vrot.lane.b32.xlu0 %v1670, 94
  %v1693 = vpop.permute.xlu0 %1692
  %vm1694 = vcmask 769024
  %v1695 = vsel %vm1694, %v1685, %v1687
  %v1696 = vsel %vm1694, %v1687, %v1689
  %v1697 = vsel %vm1694, %v1689, %v1691
  %v1698 = vsel %vm1694, %v1691, %v1693
  %v1703 = vsel %vm1675, %v1695, 0.0
  %v1704 = vsel %vm1676, %v1696, 0.0
  %v1705 = vsel %vm1677, %v1697, 0.0
  %v1706 = vsel %vm1678, %v1698, 0.0
  %s1707 = scalar_lea.vmem %s0, 32
  %v1708 = vld [vmem:[%s1707] sm:$0x7]
  %v1710 = vsel %vm160, %v1708, 0
  %v1713 = vsel %vm164, %v1703, 0
  %v1716 = vsel %vm164, %v1704, 0
  %v1719 = vsel %vm164, %v1705, 0
  %v1722 = vsel %vm164, %v1706, 0
  %1724 = vmatprep.subr.mxu0 0.0
  %1725 = vmatpush1.msra.mxu0 0.0
  %1726 = vmatprep.subr.mxu0 0.0
  %1727 = vmatpush1.msra.mxu0 0.0
  %1728 = vmatprep.subr.mxu0 0.0
  %1729 = vmatpush1.msra.mxu0 0.0
  %1730 = vmatprep.subr.mxu0 0.0
  %1731 = vmatpush1.msra.mxu0 0.0
  %1732 = vmatprep.subr.mxu0 0.0
  %1733 = vmatpush1.msra.mxu0 0.0
  %1734 = vmatprep.subr.mxu0 0.0
  %1735 = vmatpush1.msra.mxu0 0.0
  %1736 = vmatprep.subr.mxu0 0.0
  %1737 = vmatpush1.msra.mxu0 0.0
  %1738 = vmatprep.subr.mxu0 0.0
  %1739 = vmatpush1.msra.mxu0 0.0
  %1740 = vmatprep.subr.mxu0 0.0
  %1741 = vmatpush1.msra.mxu0 0.0
  %1742 = vmatprep.subr.mxu0 0.0
  %1743 = vmatpush1.msra.mxu0 0.0
  %1744 = vmatprep.subr.mxu0 0.0
  %1745 = vmatpush1.msra.mxu0 0.0
  %1746 = vmatprep.subr.mxu0 0.0
  %1747 = vmatpush1.msra.mxu0 0.0
  %1748 = vmatprep.subr.mxu0 0.0
  %1749 = vmatpush1.msra.mxu0 0.0
  %1750 = vmatprep.subr.mxu0 0.0
  %1751 = vmatpush1.msra.mxu0 0.0
  %1752 = vmatprep.subr.mxu0 0.0
  %1753 = vmatpush1.msra.mxu0 0.0
  %1754 = vmatprep.subr.mxu0 %v1716
  %1755 = vmatpush1.msra.mxu0 %v1713
  %1756 = vmatprep.subr.mxu0 0.0
  %1757 = vmatpush2.msra.mxu0 0.0
  %1758 = vmatprep.subr.mxu0 0.0
  %1759 = vmatpush2.msra.mxu0 0.0
  %1760 = vmatprep.subr.mxu0 0.0
  %1761 = vmatpush2.msra.mxu0 0.0
  %1762 = vmatprep.subr.mxu0 0.0
  %1763 = vmatpush2.msra.mxu0 0.0
  %1764 = vmatprep.subr.mxu0 0.0
  %1765 = vmatpush2.msra.mxu0 0.0
  %1766 = vmatprep.subr.mxu0 0.0
  %1767 = vmatpush2.msra.mxu0 0.0
  %1768 = vmatprep.subr.mxu0 0.0
  %1769 = vmatpush2.msra.mxu0 0.0
  %1770 = vmatprep.subr.mxu0 0.0
  %1771 = vmatpush2.msra.mxu0 0.0
  %1772 = vmatprep.subr.mxu0 0.0
  %1773 = vmatpush2.msra.mxu0 0.0
  %1774 = vmatprep.subr.mxu0 0.0
  %1775 = vmatpush2.msra.mxu0 0.0
  %1776 = vmatprep.subr.mxu0 0.0
  %1777 = vmatpush2.msra.mxu0 0.0
  %1778 = vmatprep.subr.mxu0 0.0
  %1779 = vmatpush2.msra.mxu0 0.0
  %1780 = vmatprep.subr.mxu0 0.0
  %1781 = vmatpush2.msra.mxu0 0.0
  %1782 = vmatprep.subr.mxu0 0.0
  %1783 = vmatpush2.msra.mxu0 0.0
  %1784 = vmatprep.subr.mxu0 0.0
  %1785 = vmatpush2.msra.mxu0 0.0
  %1786 = vmatprep.subr.mxu0 0.0
  %1787 = vmatpush2.msra.mxu0 0.0
  %1788 = vmatprep.mubr.f32.mxu0 0.0
  %1789 = vmatmul.mubr.f32.gmra.mxu0 %v1710
  %v1790 = vpop.f32.mrf.mxu0
  %v1791 = vadd.f32 0.0, %v1790
  %v1792 = vpop.f32.mrf.mxu0
  %v1793 = vadd.f32 0.0, %v1792
  %1794 = vdwg.mxu0
  %1795 = vmatprep.subr.mxu0 0.0
  %1796 = vmatpush1.msra.mxu0 0.0
  %1797 = vmatprep.subr.mxu0 0.0
  %1798 = vmatpush1.msra.mxu0 0.0
  %1799 = vmatprep.subr.mxu0 0.0
  %1800 = vmatpush1.msra.mxu0 0.0
  %1801 = vmatprep.subr.mxu0 0.0
  %1802 = vmatpush1.msra.mxu0 0.0
  %1803 = vmatprep.subr.mxu0 0.0
  %1804 = vmatpush1.msra.mxu0 0.0
  %1805 = vmatprep.subr.mxu0 0.0
  %1806 = vmatpush1.msra.mxu0 0.0
  %1807 = vmatprep.subr.mxu0 0.0
  %1808 = vmatpush1.msra.mxu0 0.0
  %1809 = vmatprep.subr.mxu0 0.0
  %1810 = vmatpush1.msra.mxu0 0.0
  %1811 = vmatprep.subr.mxu0 0.0
  %1812 = vmatpush1.msra.mxu0 0.0
  %1813 = vmatprep.subr.mxu0 0.0
  %1814 = vmatpush1.msra.mxu0 0.0
  %1815 = vmatprep.subr.mxu0 0.0
  %1816 = vmatpush1.msra.mxu0 0.0
  %1817 = vmatprep.subr.mxu0 0.0
  %1818 = vmatpush1.msra.mxu0 0.0
  %1819 = vmatprep.subr.mxu0 0.0
  %1820 = vmatpush1.msra.mxu0 0.0
  %1821 = vmatprep.subr.mxu0 0.0
  %1822 = vmatpush1.msra.mxu0 0.0
  %1823 = vmatprep.subr.mxu0 0.0
  %1824 = vmatpush1.msra.mxu0 0.0
  %1825 = vmatprep.subr.mxu0 %v1722
  %1826 = vmatpush1.msra.mxu0 %v1719
  %1827 = vmatprep.subr.mxu0 0.0
  %1828 = vmatpush2.msra.mxu0 0.0
  %1829 = vmatprep.subr.mxu0 0.0
  %1830 = vmatpush2.msra.mxu0 0.0
  %1831 = vmatprep.subr.mxu0 0.0
  %1832 = vmatpush2.msra.mxu0 0.0
  %1833 = vmatprep.subr.mxu0 0.0
  %1834 = vmatpush2.msra.mxu0 0.0
  %1835 = vmatprep.subr.mxu0 0.0
  %1836 = vmatpush2.msra.mxu0 0.0
  %1837 = vmatprep.subr.mxu0 0.0
  %1838 = vmatpush2.msra.mxu0 0.0
  %1839 = vmatprep.subr.mxu0 0.0
  %1840 = vmatpush2.msra.mxu0 0.0
  %1841 = vmatprep.subr.mxu0 0.0
  %1842 = vmatpush2.msra.mxu0 0.0
  %1843 = vmatprep.subr.mxu0 0.0
  %1844 = vmatpush2.msra.mxu0 0.0
  %1845 = vmatprep.subr.mxu0 0.0
  %1846 = vmatpush2.msra.mxu0 0.0
  %1847 = vmatprep.subr.mxu0 0.0
  %1848 = vmatpush2.msra.mxu0 0.0
  %1849 = vmatprep.subr.mxu0 0.0
  %1850 = vmatpush2.msra.mxu0 0.0
  %1851 = vmatprep.subr.mxu0 0.0
  %1852 = vmatpush2.msra.mxu0 0.0
  %1853 = vmatprep.subr.mxu0 0.0
  %1854 = vmatpush2.msra.mxu0 0.0
  %1855 = vmatprep.subr.mxu0 0.0
  %1856 = vmatpush2.msra.mxu0 0.0
  %1857 = vmatprep.subr.mxu0 0.0
  %1858 = vmatpush2.msra.mxu0 0.0
  %1859 = vmatprep.mubr.f32.mxu0 0.0
  %1860 = vmatmul.mubr.f32.gmra.mxu0 %v1710
  %v1861 = vpop.f32.mrf.mxu0
  %v1862 = vadd.f32 0.0, %v1861
  %v1863 = vpop.f32.mrf.mxu0
  %v1864 = vadd.f32 0.0, %v1863
  %1865 = vdwg.mxu0
  %v1866 = vadd.f32 %v1664, %v1791
  %v1867 = vadd.f32 %v1665, %v1793
  %v1868 = vadd.f32 %v1666, %v1862
  %v1869 = vadd.f32 %v1667, %v1864
  %v1870 = vld [vmem:[%s1] sm:$0x7]
  %1872 = vset.pattern.permute.xlu0 0
  %1873 = vperm.xlu0 %1872, %v1870
  %v1874 = vpop.permute.xlu0 %1873
  %v1876 = vadd.f32 %v1866, %v1874
  %v1877 = vadd.f32 %v1867, %v1874
  %v1878 = vadd.f32 %v1868, %v1874
  %v1879 = vadd.f32 %v1869, %v1874
  %v1880 = vxor.u32 %v1876, 2147483648
  %v1881 = vxor.u32 %v1877, 2147483648
  %v1882 = vxor.u32 %v1878, 2147483648
  %v1883 = vxor.u32 %v1879, 2147483648
  %v1884 = vmul.f32 %v1880, 1.442695
  %v1885 = vpow.pop %v1884
  %v1886 = vmul.f32 %v1881, 1.442695
  %v1887 = vpow.pop %v1886
  %v1888 = vmul.f32 %v1882, 1.442695
  %v1889 = vpow.pop %v1888
  %v1890 = vmul.f32 %v1883, 1.442695
  %v1891 = vpow.pop %v1890
  %v1892 = vadd.f32 %v1885, 1.0
  %v1893 = vadd.f32 %v1887, 1.0
  %v1894 = vadd.f32 %v1889, 1.0
  %v1895 = vadd.f32 %v1891, 1.0
  %v1896 = vrcp.pop %v1892
  %v1897 = vmul.f32 1.0, %v1896
  %v1898 = vrcp.pop %v1893
  %v1899 = vmul.f32 1.0, %v1898
  %v1900 = vrcp.pop %v1894
  %v1901 = vmul.f32 1.0, %v1900
  %v1902 = vrcp.pop %v1895
  %v1903 = vmul.f32 1.0, %v1902
  %v1904 = vadd.f32 %v1897, %v73
  %v1905 = vadd.f32 %v1899, %v77
  %v1906 = vadd.f32 %v1901, %v75
  %v1907 = vadd.f32 %v1903, %v80
  %v1912 = vcombine.low %v1904, %v1905
  %v1913 = vcombine.low %v1906, %v1907
  %1914 = vrot.lane.b32.xlu0 %v1912, 17
  %v1915 = vpop.permute.xlu0 %1914
  %1916 = vrot.lane.b32.xlu0 %v1913, 17
  %v1917 = vpop.permute.xlu0 %1916
  %v1918 = vrot.slane %v1915, 4
  %v1919 = vrot.slane %v1917, 4
  %v1920 = vsel %vm90, %v1918, %v1915
  %v1921 = vsel %vm92, %v1918, %v1919
  %v1922 = vsel %vm90, %v1921, %v1917
  %1926 = vst.msk [vmem:[#allocation2] sm:$0x77] %vm100, %v1920
  %1927 = vst [vmem:[#allocation2 + $0x8] sm:$0x77] %v1922
  %1928 = vst.msk [vmem:[#allocation2 + $0x10] sm:$0x7] %vm20, %v1919
  %v1929 = vld [vmem:[#allocation2] sm:$0x77]
  %v1930 = vld [vmem:[#allocation2 + $0x8] sm:$0x77]
  %v1933 = vcombine.high %v1929, %v1929
  %v1934 = vcombine.high %v1930, %v1930
  %v1937 = vsel %vm110, %v1929, 0.0
  %v1938 = vsel %vm111, %v1933, 0.0
  %v1939 = vsel %vm112, %v1930, 0.0
  %v1940 = vsel %vm113, %v1934, 0.0
  %v1941 = vld [vmem:[%s2] sm:$0x7]
  %v1942 = vld [vmem:[#allocation2 + $0x10] sm:$0x7]
  %1944 = vrot.lane.b32.xlu0 %v1929, 127
  %v1945 = vpop.permute.xlu0 %1944
  %1946 = vrot.lane.b32.xlu0 %v1933, 127
  %v1947 = vpop.permute.xlu0 %1946
  %1948 = vrot.lane.b32.xlu0 %v1930, 127
  %v1949 = vpop.permute.xlu0 %1948
  %1950 = vrot.lane.b32.xlu0 %v1934, 127
  %v1951 = vpop.permute.xlu0 %1950
  %1952 = vrot.lane.b32.xlu0 %v1942, 127
  %v1953 = vpop.permute.xlu0 %1952
  %v1954 = vsel %vm145, %v1945, %v1947
  %v1955 = vsel %vm145, %v1947, %v1949
  %v1956 = vsel %vm145, %v1949, %v1951
  %v1957 = vsel %vm145, %v1951, %v1953
  %v1962 = vsel %vm130, %v1954, 0.0
  %v1963 = vsel %vm131, %v1955, 0.0
  %v1964 = vsel %vm132, %v1956, 0.0
  %v1965 = vsel %vm133, %v1957, 0.0
  %s1966 = scalar_lea.vmem %s2, 4
  %v1967 = vld [vmem:[%s1966] sm:$0x7]
  %v1969 = vsel %vm160, %v1967, 0
  %v1972 = vsel %vm164, %v1962, 0
  %v1975 = vsel %vm164, %v1963, 0
  %v1978 = vsel %vm164, %v1964, 0
  %v1981 = vsel %vm164, %v1965, 0
  %1983 = vmatprep.subr.mxu0 0.0
  %1984 = vmatpush1.msra.mxu0 0.0
  %1985 = vmatprep.subr.mxu0 0.0
  %1986 = vmatpush1.msra.mxu0 0.0
  %1987 = vmatprep.subr.mxu0 0.0
  %1988 = vmatpush1.msra.mxu0 0.0
  %1989 = vmatprep.subr.mxu0 0.0
  %1990 = vmatpush1.msra.mxu0 0.0
  %1991 = vmatprep.subr.mxu0 0.0
  %1992 = vmatpush1.msra.mxu0 0.0
  %1993 = vmatprep.subr.mxu0 0.0
  %1994 = vmatpush1.msra.mxu0 0.0
  %1995 = vmatprep.subr.mxu0 0.0
  %1996 = vmatpush1.msra.mxu0 0.0
  %1997 = vmatprep.subr.mxu0 0.0
  %1998 = vmatpush1.msra.mxu0 0.0
  %1999 = vmatprep.subr.mxu0 0.0
  %2000 = vmatpush1.msra.mxu0 0.0
  %2001 = vmatprep.subr.mxu0 0.0
  %2002 = vmatpush1.msra.mxu0 0.0
  %2003 = vmatprep.subr.mxu0 0.0
  %2004 = vmatpush1.msra.mxu0 0.0
  %2005 = vmatprep.subr.mxu0 0.0
  %2006 = vmatpush1.msra.mxu0 0.0
  %2007 = vmatprep.subr.mxu0 0.0
  %2008 = vmatpush1.msra.mxu0 0.0
  %2009 = vmatprep.subr.mxu0 0.0
  %2010 = vmatpush1.msra.mxu0 0.0
  %2011 = vmatprep.subr.mxu0 0.0
  %2012 = vmatpush1.msra.mxu0 0.0
  %2013 = vmatprep.subr.mxu0 %v1975
  %2014 = vmatpush1.msra.mxu0 %v1972
  %2015 = vmatprep.subr.mxu0 0.0
  %2016 = vmatpush2.msra.mxu0 0.0
  %2017 = vmatprep.subr.mxu0 0.0
  %2018 = vmatpush2.msra.mxu0 0.0
  %2019 = vmatprep.subr.mxu0 0.0
  %2020 = vmatpush2.msra.mxu0 0.0
  %2021 = vmatprep.subr.mxu0 0.0
  %2022 = vmatpush2.msra.mxu0 0.0
  %2023 = vmatprep.subr.mxu0 0.0
  %2024 = vmatpush2.msra.mxu0 0.0
  %2025 = vmatprep.subr.mxu0 0.0
  %2026 = vmatpush2.msra.mxu0 0.0
  %2027 = vmatprep.subr.mxu0 0.0
  %2028 = vmatpush2.msra.mxu0 0.0
  %2029 = vmatprep.subr.mxu0 0.0
  %2030 = vmatpush2.msra.mxu0 0.0
  %2031 = vmatprep.subr.mxu0 0.0
  %2032 = vmatpush2.msra.mxu0 0.0
  %2033 = vmatprep.subr.mxu0 0.0
  %2034 = vmatpush2.msra.mxu0 0.0
  %2035 = vmatprep.subr.mxu0 0.0
  %2036 = vmatpush2.msra.mxu0 0.0
  %2037 = vmatprep.subr.mxu0 0.0
  %2038 = vmatpush2.msra.mxu0 0.0
  %2039 = vmatprep.subr.mxu0 0.0
  %2040 = vmatpush2.msra.mxu0 0.0
  %2041 = vmatprep.subr.mxu0 0.0
  %2042 = vmatpush2.msra.mxu0 0.0
  %2043 = vmatprep.subr.mxu0 0.0
  %2044 = vmatpush2.msra.mxu0 0.0
  %2045 = vmatprep.subr.mxu0 0.0
  %2046 = vmatpush2.msra.mxu0 0.0
  %2047 = vmatprep.mubr.f32.mxu0 0.0
  %2048 = vmatmul.mubr.f32.gmra.mxu0 %v1969
  %v2049 = vpop.f32.mrf.mxu0
  %v2050 = vadd.f32 0.0, %v2049
  %v2051 = vpop.f32.mrf.mxu0
  %v2052 = vadd.f32 0.0, %v2051
  %2053 = vdwg.mxu0
  %2054 = vmatprep.subr.mxu0 0.0
  %2055 = vmatpush1.msra.mxu0 0.0
  %2056 = vmatprep.subr.mxu0 0.0
  %2057 = vmatpush1.msra.mxu0 0.0
  %2058 = vmatprep.subr.mxu0 0.0
  %2059 = vmatpush1.msra.mxu0 0.0
  %2060 = vmatprep.subr.mxu0 0.0
  %2061 = vmatpush1.msra.mxu0 0.0
  %2062 = vmatprep.subr.mxu0 0.0
  %2063 = vmatpush1.msra.mxu0 0.0
  %2064 = vmatprep.subr.mxu0 0.0
  %2065 = vmatpush1.msra.mxu0 0.0
  %2066 = vmatprep.subr.mxu0 0.0
  %2067 = vmatpush1.msra.mxu0 0.0
  %2068 = vmatprep.subr.mxu0 0.0
  %2069 = vmatpush1.msra.mxu0 0.0
  %2070 = vmatprep.subr.mxu0 0.0
  %2071 = vmatpush1.msra.mxu0 0.0
  %2072 = vmatprep.subr.mxu0 0.0
  %2073 = vmatpush1.msra.mxu0 0.0
  %2074 = vmatprep.subr.mxu0 0.0
  %2075 = vmatpush1.msra.mxu0 0.0
  %2076 = vmatprep.subr.mxu0 0.0
  %2077 = vmatpush1.msra.mxu0 0.0
  %2078 = vmatprep.subr.mxu0 0.0
  %2079 = vmatpush1.msra.mxu0 0.0
  %2080 = vmatprep.subr.mxu0 0.0
  %2081 = vmatpush1.msra.mxu0 0.0
  %2082 = vmatprep.subr.mxu0 0.0
  %2083 = vmatpush1.msra.mxu0 0.0
  %2084 = vmatprep.subr.mxu0 %v1981
  %2085 = vmatpush1.msra.mxu0 %v1978
  %2086 = vmatprep.subr.mxu0 0.0
  %2087 = vmatpush2.msra.mxu0 0.0
  %2088 = vmatprep.subr.mxu0 0.0
  %2089 = vmatpush2.msra.mxu0 0.0
  %2090 = vmatprep.subr.mxu0 0.0
  %2091 = vmatpush2.msra.mxu0 0.0
  %2092 = vmatprep.subr.mxu0 0.0
  %2093 = vmatpush2.msra.mxu0 0.0
  %2094 = vmatprep.subr.mxu0 0.0
  %2095 = vmatpush2.msra.mxu0 0.0
  %2096 = vmatprep.subr.mxu0 0.0
  %2097 = vmatpush2.msra.mxu0 0.0
  %2098 = vmatprep.subr.mxu0 0.0
  %2099 = vmatpush2.msra.mxu0 0.0
  %2100 = vmatprep.subr.mxu0 0.0
  %2101 = vmatpush2.msra.mxu0 0.0
  %2102 = vmatprep.subr.mxu0 0.0
  %2103 = vmatpush2.msra.mxu0 0.0
  %2104 = vmatprep.subr.mxu0 0.0
  %2105 = vmatpush2.msra.mxu0 0.0
  %2106 = vmatprep.subr.mxu0 0.0
  %2107 = vmatpush2.msra.mxu0 0.0
  %2108 = vmatprep.subr.mxu0 0.0
  %2109 = vmatpush2.msra.mxu0 0.0
  %2110 = vmatprep.subr.mxu0 0.0
  %2111 = vmatpush2.msra.mxu0 0.0
  %2112 = vmatprep.subr.mxu0 0.0
  %2113 = vmatpush2.msra.mxu0 0.0
  %2114 = vmatprep.subr.mxu0 0.0
  %2115 = vmatpush2.msra.mxu0 0.0
  %2116 = vmatprep.subr.mxu0 0.0
  %2117 = vmatpush2.msra.mxu0 0.0
  %2118 = vmatprep.mubr.f32.mxu0 0.0
  %2119 = vmatmul.mubr.f32.gmra.mxu0 %v1969
  %v2120 = vpop.f32.mrf.mxu0
  %v2121 = vadd.f32 0.0, %v2120
  %v2122 = vpop.f32.mrf.mxu0
  %v2123 = vadd.f32 0.0, %v2122
  %2124 = vdwg.mxu0
  %v2126 = vsel %vm160, %v1941, 0
  %v2129 = vsel %vm164, %v1937, 0
  %v2132 = vsel %vm164, %v1938, 0
  %v2135 = vsel %vm164, %v1939, 0
  %v2138 = vsel %vm164, %v1940, 0
  %2140 = vmatprep.subr.mxu0 0.0
  %2141 = vmatpush1.msra.mxu0 0.0
  %2142 = vmatprep.subr.mxu0 0.0
  %2143 = vmatpush1.msra.mxu0 0.0
  %2144 = vmatprep.subr.mxu0 0.0
  %2145 = vmatpush1.msra.mxu0 0.0
  %2146 = vmatprep.subr.mxu0 0.0
  %2147 = vmatpush1.msra.mxu0 0.0
  %2148 = vmatprep.subr.mxu0 0.0
  %2149 = vmatpush1.msra.mxu0 0.0
  %2150 = vmatprep.subr.mxu0 0.0
  %2151 = vmatpush1.msra.mxu0 0.0
  %2152 = vmatprep.subr.mxu0 0.0
  %2153 = vmatpush1.msra.mxu0 0.0
  %2154 = vmatprep.subr.mxu0 0.0
  %2155 = vmatpush1.msra.mxu0 0.0
  %2156 = vmatprep.subr.mxu0 0.0
  %2157 = vmatpush1.msra.mxu0 0.0
  %2158 = vmatprep.subr.mxu0 0.0
  %2159 = vmatpush1.msra.mxu0 0.0
  %2160 = vmatprep.subr.mxu0 0.0
  %2161 = vmatpush1.msra.mxu0 0.0
  %2162 = vmatprep.subr.mxu0 0.0
  %2163 = vmatpush1.msra.mxu0 0.0
  %2164 = vmatprep.subr.mxu0 0.0
  %2165 = vmatpush1.msra.mxu0 0.0
  %2166 = vmatprep.subr.mxu0 0.0
  %2167 = vmatpush1.msra.mxu0 0.0
  %2168 = vmatprep.subr.mxu0 0.0
  %2169 = vmatpush1.msra.mxu0 0.0
  %2170 = vmatprep.subr.mxu0 %v2132
  %2171 = vmatpush1.msra.mxu0 %v2129
  %2172 = vmatprep.subr.mxu0 0.0
  %2173 = vmatpush2.msra.mxu0 0.0
  %2174 = vmatprep.subr.mxu0 0.0
  %2175 = vmatpush2.msra.mxu0 0.0
  %2176 = vmatprep.subr.mxu0 0.0
  %2177 = vmatpush2.msra.mxu0 0.0
  %2178 = vmatprep.subr.mxu0 0.0
  %2179 = vmatpush2.msra.mxu0 0.0
  %2180 = vmatprep.subr.mxu0 0.0
  %2181 = vmatpush2.msra.mxu0 0.0
  %2182 = vmatprep.subr.mxu0 0.0
  %2183 = vmatpush2.msra.mxu0 0.0
  %2184 = vmatprep.subr.mxu0 0.0
  %2185 = vmatpush2.msra.mxu0 0.0
  %2186 = vmatprep.subr.mxu0 0.0
  %2187 = vmatpush2.msra.mxu0 0.0
  %2188 = vmatprep.subr.mxu0 0.0
  %2189 = vmatpush2.msra.mxu0 0.0
  %2190 = vmatprep.subr.mxu0 0.0
  %2191 = vmatpush2.msra.mxu0 0.0
  %2192 = vmatprep.subr.mxu0 0.0
  %2193 = vmatpush2.msra.mxu0 0.0
  %2194 = vmatprep.subr.mxu0 0.0
  %2195 = vmatpush2.msra.mxu0 0.0
  %2196 = vmatprep.subr.mxu0 0.0
  %2197 = vmatpush2.msra.mxu0 0.0
  %2198 = vmatprep.subr.mxu0 0.0
  %2199 = vmatpush2.msra.mxu0 0.0
  %2200 = vmatprep.subr.mxu0 0.0
  %2201 = vmatpush2.msra.mxu0 0.0
  %2202 = vmatprep.subr.mxu0 0.0
  %2203 = vmatpush2.msra.mxu0 0.0
  %2204 = vmatprep.mubr.f32.mxu0 0.0
  %2205 = vmatmul.mubr.f32.gmra.mxu0 %v2126
  %v2206 = vpop.f32.mrf.mxu0
  %v2207 = vadd.f32 %v2050, %v2206
  %v2208 = vpop.f32.mrf.mxu0
  %v2209 = vadd.f32 %v2052, %v2208
  %2210 = vdwg.mxu0
  %2211 = vmatprep.subr.mxu0 0.0
  %2212 = vmatpush1.msra.mxu0 0.0
  %2213 = vmatprep.subr.mxu0 0.0
  %2214 = vmatpush1.msra.mxu0 0.0
  %2215 = vmatprep.subr.mxu0 0.0
  %2216 = vmatpush1.msra.mxu0 0.0
  %2217 = vmatprep.subr.mxu0 0.0
  %2218 = vmatpush1.msra.mxu0 0.0
  %2219 = vmatprep.subr.mxu0 0.0
  %2220 = vmatpush1.msra.mxu0 0.0
  %2221 = vmatprep.subr.mxu0 0.0
  %2222 = vmatpush1.msra.mxu0 0.0
  %2223 = vmatprep.subr.mxu0 0.0
  %2224 = vmatpush1.msra.mxu0 0.0
  %2225 = vmatprep.subr.mxu0 0.0
  %2226 = vmatpush1.msra.mxu0 0.0
  %2227 = vmatprep.subr.mxu0 0.0
  %2228 = vmatpush1.msra.mxu0 0.0
  %2229 = vmatprep.subr.mxu0 0.0
  %2230 = vmatpush1.msra.mxu0 0.0
  %2231 = vmatprep.subr.mxu0 0.0
  %2232 = vmatpush1.msra.mxu0 0.0
  %2233 = vmatprep.subr.mxu0 0.0
  %2234 = vmatpush1.msra.mxu0 0.0
  %2235 = vmatprep.subr.mxu0 0.0
  %2236 = vmatpush1.msra.mxu0 0.0
  %2237 = vmatprep.subr.mxu0 0.0
  %2238 = vmatpush1.msra.mxu0 0.0
  %2239 = vmatprep.subr.mxu0 0.0
  %2240 = vmatpush1.msra.mxu0 0.0
  %2241 = vmatprep.subr.mxu0 %v2138
  %2242 = vmatpush1.msra.mxu0 %v2135
  %2243 = vmatprep.subr.mxu0 0.0
  %2244 = vmatpush2.msra.mxu0 0.0
  %2245 = vmatprep.subr.mxu0 0.0
  %2246 = vmatpush2.msra.mxu0 0.0
  %2247 = vmatprep.subr.mxu0 0.0
  %2248 = vmatpush2.msra.mxu0 0.0
  %2249 = vmatprep.subr.mxu0 0.0
  %2250 = vmatpush2.msra.mxu0 0.0
  %2251 = vmatprep.subr.mxu0 0.0
  %2252 = vmatpush2.msra.mxu0 0.0
  %2253 = vmatprep.subr.mxu0 0.0
  %2254 = vmatpush2.msra.mxu0 0.0
  %2255 = vmatprep.subr.mxu0 0.0
  %2256 = vmatpush2.msra.mxu0 0.0
  %2257 = vmatprep.subr.mxu0 0.0
  %2258 = vmatpush2.msra.mxu0 0.0
  %2259 = vmatprep.subr.mxu0 0.0
  %2260 = vmatpush2.msra.mxu0 0.0
  %2261 = vmatprep.subr.mxu0 0.0
  %2262 = vmatpush2.msra.mxu0 0.0
  %2263 = vmatprep.subr.mxu0 0.0
  %2264 = vmatpush2.msra.mxu0 0.0
  %2265 = vmatprep.subr.mxu0 0.0
  %2266 = vmatpush2.msra.mxu0 0.0
  %2267 = vmatprep.subr.mxu0 0.0
  %2268 = vmatpush2.msra.mxu0 0.0
  %2269 = vmatprep.subr.mxu0 0.0
  %2270 = vmatpush2.msra.mxu0 0.0
  %2271 = vmatprep.subr.mxu0 0.0
  %2272 = vmatpush2.msra.mxu0 0.0
  %2273 = vmatprep.subr.mxu0 0.0
  %2274 = vmatpush2.msra.mxu0 0.0
  %2275 = vmatprep.mubr.f32.mxu0 0.0
  %2276 = vmatmul.mubr.f32.gmra.mxu0 %v2126
  %v2277 = vpop.f32.mrf.mxu0
  %v2278 = vadd.f32 %v2121, %v2277
  %v2279 = vpop.f32.mrf.mxu0
  %v2280 = vadd.f32 %v2123, %v2279
  %2281 = vdwg.mxu0
  %v2282 = vld [vmem:[#allocation2] sm:$0x77]
  %v2283 = vld [vmem:[#allocation2 + $0x8] sm:$0x77]
  %v2284 = vld [vmem:[#allocation2 + $0x10] sm:$0x7]
  %v2288 = vcombine.high %v2282, %v2282
  %v2289 = vcombine.high %v2283, %v2283
  %2290 = vrot.lane.b32.xlu0 %v2282, 126
  %v2291 = vpop.permute.xlu0 %2290
  %2292 = vrot.lane.b32.xlu0 %v2288, 126
  %v2293 = vpop.permute.xlu0 %2292
  %2294 = vrot.lane.b32.xlu0 %v2283, 126
  %v2295 = vpop.permute.xlu0 %2294
  %2296 = vrot.lane.b32.xlu0 %v2289, 126
  %v2297 = vpop.permute.xlu0 %2296
  %2298 = vrot.lane.b32.xlu0 %v2284, 126
  %v2299 = vpop.permute.xlu0 %2298
  %v2300 = vsel %vm502, %v2291, %v2293
  %v2301 = vsel %vm502, %v2293, %v2295
  %v2302 = vsel %vm502, %v2295, %v2297
  %v2303 = vsel %vm502, %v2297, %v2299
  %v2308 = vsel %vm483, %v2300, 0.0
  %v2309 = vsel %vm484, %v2301, 0.0
  %v2310 = vsel %vm485, %v2302, 0.0
  %v2311 = vsel %vm486, %v2303, 0.0
  %s2312 = scalar_lea.vmem %s2, 8
  %v2313 = vld [vmem:[%s2312] sm:$0x7]
  %v2315 = vsel %vm160, %v2313, 0
  %v2318 = vsel %vm164, %v2308, 0
  %v2321 = vsel %vm164, %v2309, 0
  %v2324 = vsel %vm164, %v2310, 0
  %v2327 = vsel %vm164, %v2311, 0
  %2329 = vmatprep.subr.mxu0 0.0
  %2330 = vmatpush1.msra.mxu0 0.0
  %2331 = vmatprep.subr.mxu0 0.0
  %2332 = vmatpush1.msra.mxu0 0.0
  %2333 = vmatprep.subr.mxu0 0.0
  %2334 = vmatpush1.msra.mxu0 0.0
  %2335 = vmatprep.subr.mxu0 0.0
  %2336 = vmatpush1.msra.mxu0 0.0
  %2337 = vmatprep.subr.mxu0 0.0
  %2338 = vmatpush1.msra.mxu0 0.0
  %2339 = vmatprep.subr.mxu0 0.0
  %2340 = vmatpush1.msra.mxu0 0.0
  %2341 = vmatprep.subr.mxu0 0.0
  %2342 = vmatpush1.msra.mxu0 0.0
  %2343 = vmatprep.subr.mxu0 0.0
  %2344 = vmatpush1.msra.mxu0 0.0
  %2345 = vmatprep.subr.mxu0 0.0
  %2346 = vmatpush1.msra.mxu0 0.0
  %2347 = vmatprep.subr.mxu0 0.0
  %2348 = vmatpush1.msra.mxu0 0.0
  %2349 = vmatprep.subr.mxu0 0.0
  %2350 = vmatpush1.msra.mxu0 0.0
  %2351 = vmatprep.subr.mxu0 0.0
  %2352 = vmatpush1.msra.mxu0 0.0
  %2353 = vmatprep.subr.mxu0 0.0
  %2354 = vmatpush1.msra.mxu0 0.0
  %2355 = vmatprep.subr.mxu0 0.0
  %2356 = vmatpush1.msra.mxu0 0.0
  %2357 = vmatprep.subr.mxu0 0.0
  %2358 = vmatpush1.msra.mxu0 0.0
  %2359 = vmatprep.subr.mxu0 %v2321
  %2360 = vmatpush1.msra.mxu0 %v2318
  %2361 = vmatprep.subr.mxu0 0.0
  %2362 = vmatpush2.msra.mxu0 0.0
  %2363 = vmatprep.subr.mxu0 0.0
  %2364 = vmatpush2.msra.mxu0 0.0
  %2365 = vmatprep.subr.mxu0 0.0
  %2366 = vmatpush2.msra.mxu0 0.0
  %2367 = vmatprep.subr.mxu0 0.0
  %2368 = vmatpush2.msra.mxu0 0.0
  %2369 = vmatprep.subr.mxu0 0.0
  %2370 = vmatpush2.msra.mxu0 0.0
  %2371 = vmatprep.subr.mxu0 0.0
  %2372 = vmatpush2.msra.mxu0 0.0
  %2373 = vmatprep.subr.mxu0 0.0
  %2374 = vmatpush2.msra.mxu0 0.0
  %2375 = vmatprep.subr.mxu0 0.0
  %2376 = vmatpush2.msra.mxu0 0.0
  %2377 = vmatprep.subr.mxu0 0.0
  %2378 = vmatpush2.msra.mxu0 0.0
  %2379 = vmatprep.subr.mxu0 0.0
  %2380 = vmatpush2.msra.mxu0 0.0
  %2381 = vmatprep.subr.mxu0 0.0
  %2382 = vmatpush2.msra.mxu0 0.0
  %2383 = vmatprep.subr.mxu0 0.0
  %2384 = vmatpush2.msra.mxu0 0.0
  %2385 = vmatprep.subr.mxu0 0.0
  %2386 = vmatpush2.msra.mxu0 0.0
  %2387 = vmatprep.subr.mxu0 0.0
  %2388 = vmatpush2.msra.mxu0 0.0
  %2389 = vmatprep.subr.mxu0 0.0
  %2390 = vmatpush2.msra.mxu0 0.0
  %2391 = vmatprep.subr.mxu0 0.0
  %2392 = vmatpush2.msra.mxu0 0.0
  %2393 = vmatprep.mubr.f32.mxu0 0.0
  %2394 = vmatmul.mubr.f32.gmra.mxu0 %v2315
  %v2395 = vpop.f32.mrf.mxu0
  %v2396 = vadd.f32 0.0, %v2395
  %v2397 = vpop.f32.mrf.mxu0
  %v2398 = vadd.f32 0.0, %v2397
  %2399 = vdwg.mxu0
  %2400 = vmatprep.subr.mxu0 0.0
  %2401 = vmatpush1.msra.mxu0 0.0
  %2402 = vmatprep.subr.mxu0 0.0
  %2403 = vmatpush1.msra.mxu0 0.0
  %2404 = vmatprep.subr.mxu0 0.0
  %2405 = vmatpush1.msra.mxu0 0.0
  %2406 = vmatprep.subr.mxu0 0.0
  %2407 = vmatpush1.msra.mxu0 0.0
  %2408 = vmatprep.subr.mxu0 0.0
  %2409 = vmatpush1.msra.mxu0 0.0
  %2410 = vmatprep.subr.mxu0 0.0
  %2411 = vmatpush1.msra.mxu0 0.0
  %2412 = vmatprep.subr.mxu0 0.0
  %2413 = vmatpush1.msra.mxu0 0.0
  %2414 = vmatprep.subr.mxu0 0.0
  %2415 = vmatpush1.msra.mxu0 0.0
  %2416 = vmatprep.subr.mxu0 0.0
  %2417 = vmatpush1.msra.mxu0 0.0
  %2418 = vmatprep.subr.mxu0 0.0
  %2419 = vmatpush1.msra.mxu0 0.0
  %2420 = vmatprep.subr.mxu0 0.0
  %2421 = vmatpush1.msra.mxu0 0.0
  %2422 = vmatprep.subr.mxu0 0.0
  %2423 = vmatpush1.msra.mxu0 0.0
  %2424 = vmatprep.subr.mxu0 0.0
  %2425 = vmatpush1.msra.mxu0 0.0
  %2426 = vmatprep.subr.mxu0 0.0
  %2427 = vmatpush1.msra.mxu0 0.0
  %2428 = vmatprep.subr.mxu0 0.0
  %2429 = vmatpush1.msra.mxu0 0.0
  %2430 = vmatprep.subr.mxu0 %v2327
  %2431 = vmatpush1.msra.mxu0 %v2324
  %2432 = vmatprep.subr.mxu0 0.0
  %2433 = vmatpush2.msra.mxu0 0.0
  %2434 = vmatprep.subr.mxu0 0.0
  %2435 = vmatpush2.msra.mxu0 0.0
  %2436 = vmatprep.subr.mxu0 0.0
  %2437 = vmatpush2.msra.mxu0 0.0
  %2438 = vmatprep.subr.mxu0 0.0
  %2439 = vmatpush2.msra.mxu0 0.0
  %2440 = vmatprep.subr.mxu0 0.0
  %2441 = vmatpush2.msra.mxu0 0.0
  %2442 = vmatprep.subr.mxu0 0.0
  %2443 = vmatpush2.msra.mxu0 0.0
  %2444 = vmatprep.subr.mxu0 0.0
  %2445 = vmatpush2.msra.mxu0 0.0
  %2446 = vmatprep.subr.mxu0 0.0
  %2447 = vmatpush2.msra.mxu0 0.0
  %2448 = vmatprep.subr.mxu0 0.0
  %2449 = vmatpush2.msra.mxu0 0.0
  %2450 = vmatprep.subr.mxu0 0.0
  %2451 = vmatpush2.msra.mxu0 0.0
  %2452 = vmatprep.subr.mxu0 0.0
  %2453 = vmatpush2.msra.mxu0 0.0
  %2454 = vmatprep.subr.mxu0 0.0
  %2455 = vmatpush2.msra.mxu0 0.0
  %2456 = vmatprep.subr.mxu0 0.0
  %2457 = vmatpush2.msra.mxu0 0.0
  %2458 = vmatprep.subr.mxu0 0.0
  %2459 = vmatpush2.msra.mxu0 0.0
  %2460 = vmatprep.subr.mxu0 0.0
  %2461 = vmatpush2.msra.mxu0 0.0
  %2462 = vmatprep.subr.mxu0 0.0
  %2463 = vmatpush2.msra.mxu0 0.0
  %2464 = vmatprep.mubr.f32.mxu0 0.0
  %2465 = vmatmul.mubr.f32.gmra.mxu0 %v2315
  %v2466 = vpop.f32.mrf.mxu0
  %v2467 = vadd.f32 0.0, %v2466
  %v2468 = vpop.f32.mrf.mxu0
  %v2469 = vadd.f32 0.0, %v2468
  %2470 = vdwg.mxu0
  %v2471 = vadd.f32 %v2207, %v2396
  %v2472 = vadd.f32 %v2209, %v2398
  %v2473 = vadd.f32 %v2278, %v2467
  %v2474 = vadd.f32 %v2280, %v2469
  %v2475 = vld [vmem:[#allocation2] sm:$0x77]
  %v2476 = vld [vmem:[#allocation2 + $0x8] sm:$0x77]
  %v2477 = vld [vmem:[#allocation2 + $0x10] sm:$0x7]
  %v2481 = vcombine.high %v2475, %v2475
  %v2482 = vcombine.high %v2476, %v2476
  %2483 = vrot.lane.b32.xlu0 %v2475, 112
  %v2484 = vpop.permute.xlu0 %2483
  %2485 = vrot.lane.b32.xlu0 %v2481, 112
  %v2486 = vpop.permute.xlu0 %2485
  %2487 = vrot.lane.b32.xlu0 %v2476, 112
  %v2488 = vpop.permute.xlu0 %2487
  %2489 = vrot.lane.b32.xlu0 %v2482, 112
  %v2490 = vpop.permute.xlu0 %2489
  %2491 = vrot.lane.b32.xlu0 %v2477, 112
  %v2492 = vpop.permute.xlu0 %2491
  %v2493 = vsel %vm704, %v2484, %v2486
  %v2494 = vsel %vm704, %v2486, %v2488
  %v2495 = vsel %vm704, %v2488, %v2490
  %v2496 = vsel %vm704, %v2490, %v2492
  %v2501 = vsel %vm685, %v2493, 0.0
  %v2502 = vsel %vm686, %v2494, 0.0
  %v2503 = vsel %vm687, %v2495, 0.0
  %v2504 = vsel %vm688, %v2496, 0.0
  %s2505 = scalar_lea.vmem %s2, 12
  %v2506 = vld [vmem:[%s2505] sm:$0x7]
  %v2508 = vsel %vm160, %v2506, 0
  %v2511 = vsel %vm164, %v2501, 0
  %v2514 = vsel %vm164, %v2502, 0
  %v2517 = vsel %vm164, %v2503, 0
  %v2520 = vsel %vm164, %v2504, 0
  %2522 = vmatprep.subr.mxu0 0.0
  %2523 = vmatpush1.msra.mxu0 0.0
  %2524 = vmatprep.subr.mxu0 0.0
  %2525 = vmatpush1.msra.mxu0 0.0
  %2526 = vmatprep.subr.mxu0 0.0
  %2527 = vmatpush1.msra.mxu0 0.0
  %2528 = vmatprep.subr.mxu0 0.0
  %2529 = vmatpush1.msra.mxu0 0.0
  %2530 = vmatprep.subr.mxu0 0.0
  %2531 = vmatpush1.msra.mxu0 0.0
  %2532 = vmatprep.subr.mxu0 0.0
  %2533 = vmatpush1.msra.mxu0 0.0
  %2534 = vmatprep.subr.mxu0 0.0
  %2535 = vmatpush1.msra.mxu0 0.0
  %2536 = vmatprep.subr.mxu0 0.0
  %2537 = vmatpush1.msra.mxu0 0.0
  %2538 = vmatprep.subr.mxu0 0.0
  %2539 = vmatpush1.msra.mxu0 0.0
  %2540 = vmatprep.subr.mxu0 0.0
  %2541 = vmatpush1.msra.mxu0 0.0
  %2542 = vmatprep.subr.mxu0 0.0
  %2543 = vmatpush1.msra.mxu0 0.0
  %2544 = vmatprep.subr.mxu0 0.0
  %2545 = vmatpush1.msra.mxu0 0.0
  %2546 = vmatprep.subr.mxu0 0.0
  %2547 = vmatpush1.msra.mxu0 0.0
  %2548 = vmatprep.subr.mxu0 0.0
  %2549 = vmatpush1.msra.mxu0 0.0
  %2550 = vmatprep.subr.mxu0 0.0
  %2551 = vmatpush1.msra.mxu0 0.0
  %2552 = vmatprep.subr.mxu0 %v2514
  %2553 = vmatpush1.msra.mxu0 %v2511
  %2554 = vmatprep.subr.mxu0 0.0
  %2555 = vmatpush2.msra.mxu0 0.0
  %2556 = vmatprep.subr.mxu0 0.0
  %2557 = vmatpush2.msra.mxu0 0.0
  %2558 = vmatprep.subr.mxu0 0.0
  %2559 = vmatpush2.msra.mxu0 0.0
  %2560 = vmatprep.subr.mxu0 0.0
  %2561 = vmatpush2.msra.mxu0 0.0
  %2562 = vmatprep.subr.mxu0 0.0
  %2563 = vmatpush2.msra.mxu0 0.0
  %2564 = vmatprep.subr.mxu0 0.0
  %2565 = vmatpush2.msra.mxu0 0.0
  %2566 = vmatprep.subr.mxu0 0.0
  %2567 = vmatpush2.msra.mxu0 0.0
  %2568 = vmatprep.subr.mxu0 0.0
  %2569 = vmatpush2.msra.mxu0 0.0
  %2570 = vmatprep.subr.mxu0 0.0
  %2571 = vmatpush2.msra.mxu0 0.0
  %2572 = vmatprep.subr.mxu0 0.0
  %2573 = vmatpush2.msra.mxu0 0.0
  %2574 = vmatprep.subr.mxu0 0.0
  %2575 = vmatpush2.msra.mxu0 0.0
  %2576 = vmatprep.subr.mxu0 0.0
  %2577 = vmatpush2.msra.mxu0 0.0
  %2578 = vmatprep.subr.mxu0 0.0
  %2579 = vmatpush2.msra.mxu0 0.0
  %2580 = vmatprep.subr.mxu0 0.0
  %2581 = vmatpush2.msra.mxu0 0.0
  %2582 = vmatprep.subr.mxu0 0.0
  %2583 = vmatpush2.msra.mxu0 0.0
  %2584 = vmatprep.subr.mxu0 0.0
  %2585 = vmatpush2.msra.mxu0 0.0
  %2586 = vmatprep.mubr.f32.mxu0 0.0
  %2587 = vmatmul.mubr.f32.gmra.mxu0 %v2508
  %v2588 = vpop.f32.mrf.mxu0
  %v2589 = vadd.f32 0.0, %v2588
  %v2590 = vpop.f32.mrf.mxu0
  %v2591 = vadd.f32 0.0, %v2590
  %2592 = vdwg.mxu0
  %2593 = vmatprep.subr.mxu0 0.0
  %2594 = vmatpush1.msra.mxu0 0.0
  %2595 = vmatprep.subr.mxu0 0.0
  %2596 = vmatpush1.msra.mxu0 0.0
  %2597 = vmatprep.subr.mxu0 0.0
  %2598 = vmatpush1.msra.mxu0 0.0
  %2599 = vmatprep.subr.mxu0 0.0
  %2600 = vmatpush1.msra.mxu0 0.0
  %2601 = vmatprep.subr.mxu0 0.0
  %2602 = vmatpush1.msra.mxu0 0.0
  %2603 = vmatprep.subr.mxu0 0.0
  %2604 = vmatpush1.msra.mxu0 0.0
  %2605 = vmatprep.subr.mxu0 0.0
  %2606 = vmatpush1.msra.mxu0 0.0
  %2607 = vmatprep.subr.mxu0 0.0
  %2608 = vmatpush1.msra.mxu0 0.0
  %2609 = vmatprep.subr.mxu0 0.0
  %2610 = vmatpush1.msra.mxu0 0.0
  %2611 = vmatprep.subr.mxu0 0.0
  %2612 = vmatpush1.msra.mxu0 0.0
  %2613 = vmatprep.subr.mxu0 0.0
  %2614 = vmatpush1.msra.mxu0 0.0
  %2615 = vmatprep.subr.mxu0 0.0
  %2616 = vmatpush1.msra.mxu0 0.0
  %2617 = vmatprep.subr.mxu0 0.0
  %2618 = vmatpush1.msra.mxu0 0.0
  %2619 = vmatprep.subr.mxu0 0.0
  %2620 = vmatpush1.msra.mxu0 0.0
  %2621 = vmatprep.subr.mxu0 0.0
  %2622 = vmatpush1.msra.mxu0 0.0
  %2623 = vmatprep.subr.mxu0 %v2520
  %2624 = vmatpush1.msra.mxu0 %v2517
  %2625 = vmatprep.subr.mxu0 0.0
  %2626 = vmatpush2.msra.mxu0 0.0
  %2627 = vmatprep.subr.mxu0 0.0
  %2628 = vmatpush2.msra.mxu0 0.0
  %2629 = vmatprep.subr.mxu0 0.0
  %2630 = vmatpush2.msra.mxu0 0.0
  %2631 = vmatprep.subr.mxu0 0.0
  %2632 = vmatpush2.msra.mxu0 0.0
  %2633 = vmatprep.subr.mxu0 0.0
  %2634 = vmatpush2.msra.mxu0 0.0
  %2635 = vmatprep.subr.mxu0 0.0
  %2636 = vmatpush2.msra.mxu0 0.0
  %2637 = vmatprep.subr.mxu0 0.0
  %2638 = vmatpush2.msra.mxu0 0.0
  %2639 = vmatprep.subr.mxu0 0.0
  %2640 = vmatpush2.msra.mxu0 0.0
  %2641 = vmatprep.subr.mxu0 0.0
  %2642 = vmatpush2.msra.mxu0 0.0
  %2643 = vmatprep.subr.mxu0 0.0
  %2644 = vmatpush2.msra.mxu0 0.0
  %2645 = vmatprep.subr.mxu0 0.0
  %2646 = vmatpush2.msra.mxu0 0.0
  %2647 = vmatprep.subr.mxu0 0.0
  %2648 = vmatpush2.msra.mxu0 0.0
  %2649 = vmatprep.subr.mxu0 0.0
  %2650 = vmatpush2.msra.mxu0 0.0
  %2651 = vmatprep.subr.mxu0 0.0
  %2652 = vmatpush2.msra.mxu0 0.0
  %2653 = vmatprep.subr.mxu0 0.0
  %2654 = vmatpush2.msra.mxu0 0.0
  %2655 = vmatprep.subr.mxu0 0.0
  %2656 = vmatpush2.msra.mxu0 0.0
  %2657 = vmatprep.mubr.f32.mxu0 0.0
  %2658 = vmatmul.mubr.f32.gmra.mxu0 %v2508
  %v2659 = vpop.f32.mrf.mxu0
  %v2660 = vadd.f32 0.0, %v2659
  %v2661 = vpop.f32.mrf.mxu0
  %v2662 = vadd.f32 0.0, %v2661
  %2663 = vdwg.mxu0
  %v2664 = vadd.f32 %v2471, %v2589
  %v2665 = vadd.f32 %v2472, %v2591
  %v2666 = vadd.f32 %v2473, %v2660
  %v2667 = vadd.f32 %v2474, %v2662
  %v2668 = vld [vmem:[#allocation2] sm:$0x77]
  %v2669 = vld [vmem:[#allocation2 + $0x8] sm:$0x77]
  %v2670 = vld [vmem:[#allocation2 + $0x10] sm:$0x7]
  %s2671 = scalar_lea.vmem %s2, 16
  %v2672 = vld [vmem:[%s2671] sm:$0x7]
  %v2676 = vcombine.high %v2668, %v2668
  %v2677 = vcombine.high %v2669, %v2669
  %2678 = vrot.lane.b32.xlu0 %v2668, 111
  %v2679 = vpop.permute.xlu0 %2678
  %2680 = vrot.lane.b32.xlu0 %v2676, 111
  %v2681 = vpop.permute.xlu0 %2680
  %2682 = vrot.lane.b32.xlu0 %v2669, 111
  %v2683 = vpop.permute.xlu0 %2682
  %2684 = vrot.lane.b32.xlu0 %v2677, 111
  %v2685 = vpop.permute.xlu0 %2684
  %2686 = vrot.lane.b32.xlu0 %v2670, 111
  %v2687 = vpop.permute.xlu0 %2686
  %v2688 = vsel %vm900, %v2679, %v2681
  %v2689 = vsel %vm900, %v2681, %v2683
  %v2690 = vsel %vm900, %v2683, %v2685
  %v2691 = vsel %vm900, %v2685, %v2687
  %v2693 = vsel %vm160, %v2672, 0
  %v2695 = vsel %vm164, %v2688, 0
  %v2697 = vsel %vm164, %v2689, 0
  %v2699 = vsel %vm164, %v2690, 0
  %v2701 = vsel %vm164, %v2691, 0
  %2703 = vmatprep.subr.mxu0 0.0
  %2704 = vmatpush1.msra.mxu0 0.0
  %2705 = vmatprep.subr.mxu0 0.0
  %2706 = vmatpush1.msra.mxu0 0.0
  %2707 = vmatprep.subr.mxu0 0.0
  %2708 = vmatpush1.msra.mxu0 0.0
  %2709 = vmatprep.subr.mxu0 0.0
  %2710 = vmatpush1.msra.mxu0 0.0
  %2711 = vmatprep.subr.mxu0 0.0
  %2712 = vmatpush1.msra.mxu0 0.0
  %2713 = vmatprep.subr.mxu0 0.0
  %2714 = vmatpush1.msra.mxu0 0.0
  %2715 = vmatprep.subr.mxu0 0.0
  %2716 = vmatpush1.msra.mxu0 0.0
  %2717 = vmatprep.subr.mxu0 0.0
  %2718 = vmatpush1.msra.mxu0 0.0
  %2719 = vmatprep.subr.mxu0 0.0
  %2720 = vmatpush1.msra.mxu0 0.0
  %2721 = vmatprep.subr.mxu0 0.0
  %2722 = vmatpush1.msra.mxu0 0.0
  %2723 = vmatprep.subr.mxu0 0.0
  %2724 = vmatpush1.msra.mxu0 0.0
  %2725 = vmatprep.subr.mxu0 0.0
  %2726 = vmatpush1.msra.mxu0 0.0
  %2727 = vmatprep.subr.mxu0 0.0
  %2728 = vmatpush1.msra.mxu0 0.0
  %2729 = vmatprep.subr.mxu0 0.0
  %2730 = vmatpush1.msra.mxu0 0.0
  %2731 = vmatprep.subr.mxu0 0.0
  %2732 = vmatpush1.msra.mxu0 0.0
  %2733 = vmatprep.subr.mxu0 %v2697
  %2734 = vmatpush1.msra.mxu0 %v2695
  %2735 = vmatprep.subr.mxu0 0.0
  %2736 = vmatpush2.msra.mxu0 0.0
  %2737 = vmatprep.subr.mxu0 0.0
  %2738 = vmatpush2.msra.mxu0 0.0
  %2739 = vmatprep.subr.mxu0 0.0
  %2740 = vmatpush2.msra.mxu0 0.0
  %2741 = vmatprep.subr.mxu0 0.0
  %2742 = vmatpush2.msra.mxu0 0.0
  %2743 = vmatprep.subr.mxu0 0.0
  %2744 = vmatpush2.msra.mxu0 0.0
  %2745 = vmatprep.subr.mxu0 0.0
  %2746 = vmatpush2.msra.mxu0 0.0
  %2747 = vmatprep.subr.mxu0 0.0
  %2748 = vmatpush2.msra.mxu0 0.0
  %2749 = vmatprep.subr.mxu0 0.0
  %2750 = vmatpush2.msra.mxu0 0.0
  %2751 = vmatprep.subr.mxu0 0.0
  %2752 = vmatpush2.msra.mxu0 0.0
  %2753 = vmatprep.subr.mxu0 0.0
  %2754 = vmatpush2.msra.mxu0 0.0
  %2755 = vmatprep.subr.mxu0 0.0
  %2756 = vmatpush2.msra.mxu0 0.0
  %2757 = vmatprep.subr.mxu0 0.0
  %2758 = vmatpush2.msra.mxu0 0.0
  %2759 = vmatprep.subr.mxu0 0.0
  %2760 = vmatpush2.msra.mxu0 0.0
  %2761 = vmatprep.subr.mxu0 0.0
  %2762 = vmatpush2.msra.mxu0 0.0
  %2763 = vmatprep.subr.mxu0 0.0
  %2764 = vmatpush2.msra.mxu0 0.0
  %2765 = vmatprep.subr.mxu0 0.0
  %2766 = vmatpush2.msra.mxu0 0.0
  %2767 = vmatprep.mubr.f32.mxu0 0.0
  %2768 = vmatmul.mubr.f32.gmra.mxu0 %v2693
  %v2769 = vpop.f32.mrf.mxu0
  %v2770 = vadd.f32 0.0, %v2769
  %v2771 = vpop.f32.mrf.mxu0
  %v2772 = vadd.f32 0.0, %v2771
  %2773 = vdwg.mxu0
  %2774 = vmatprep.subr.mxu0 0.0
  %2775 = vmatpush1.msra.mxu0 0.0
  %2776 = vmatprep.subr.mxu0 0.0
  %2777 = vmatpush1.msra.mxu0 0.0
  %2778 = vmatprep.subr.mxu0 0.0
  %2779 = vmatpush1.msra.mxu0 0.0
  %2780 = vmatprep.subr.mxu0 0.0
  %2781 = vmatpush1.msra.mxu0 0.0
  %2782 = vmatprep.subr.mxu0 0.0
  %2783 = vmatpush1.msra.mxu0 0.0
  %2784 = vmatprep.subr.mxu0 0.0
  %2785 = vmatpush1.msra.mxu0 0.0
  %2786 = vmatprep.subr.mxu0 0.0
  %2787 = vmatpush1.msra.mxu0 0.0
  %2788 = vmatprep.subr.mxu0 0.0
  %2789 = vmatpush1.msra.mxu0 0.0
  %2790 = vmatprep.subr.mxu0 0.0
  %2791 = vmatpush1.msra.mxu0 0.0
  %2792 = vmatprep.subr.mxu0 0.0
  %2793 = vmatpush1.msra.mxu0 0.0
  %2794 = vmatprep.subr.mxu0 0.0
  %2795 = vmatpush1.msra.mxu0 0.0
  %2796 = vmatprep.subr.mxu0 0.0
  %2797 = vmatpush1.msra.mxu0 0.0
  %2798 = vmatprep.subr.mxu0 0.0
  %2799 = vmatpush1.msra.mxu0 0.0
  %2800 = vmatprep.subr.mxu0 0.0
  %2801 = vmatpush1.msra.mxu0 0.0
  %2802 = vmatprep.subr.mxu0 0.0
  %2803 = vmatpush1.msra.mxu0 0.0
  %2804 = vmatprep.subr.mxu0 %v2701
  %2805 = vmatpush1.msra.mxu0 %v2699
  %2806 = vmatprep.subr.mxu0 0.0
  %2807 = vmatpush2.msra.mxu0 0.0
  %2808 = vmatprep.subr.mxu0 0.0
  %2809 = vmatpush2.msra.mxu0 0.0
  %2810 = vmatprep.subr.mxu0 0.0
  %2811 = vmatpush2.msra.mxu0 0.0
  %2812 = vmatprep.subr.mxu0 0.0
  %2813 = vmatpush2.msra.mxu0 0.0
  %2814 = vmatprep.subr.mxu0 0.0
  %2815 = vmatpush2.msra.mxu0 0.0
  %2816 = vmatprep.subr.mxu0 0.0
  %2817 = vmatpush2.msra.mxu0 0.0
  %2818 = vmatprep.subr.mxu0 0.0
  %2819 = vmatpush2.msra.mxu0 0.0
  %2820 = vmatprep.subr.mxu0 0.0
  %2821 = vmatpush2.msra.mxu0 0.0
  %2822 = vmatprep.subr.mxu0 0.0
  %2823 = vmatpush2.msra.mxu0 0.0
  %2824 = vmatprep.subr.mxu0 0.0
  %2825 = vmatpush2.msra.mxu0 0.0
  %2826 = vmatprep.subr.mxu0 0.0
  %2827 = vmatpush2.msra.mxu0 0.0
  %2828 = vmatprep.subr.mxu0 0.0
  %2829 = vmatpush2.msra.mxu0 0.0
  %2830 = vmatprep.subr.mxu0 0.0
  %2831 = vmatpush2.msra.mxu0 0.0
  %2832 = vmatprep.subr.mxu0 0.0
  %2833 = vmatpush2.msra.mxu0 0.0
  %2834 = vmatprep.subr.mxu0 0.0
  %2835 = vmatpush2.msra.mxu0 0.0
  %2836 = vmatprep.subr.mxu0 0.0
  %2837 = vmatpush2.msra.mxu0 0.0
  %2838 = vmatprep.mubr.f32.mxu0 0.0
  %2839 = vmatmul.mubr.f32.gmra.mxu0 %v2693
  %v2840 = vpop.f32.mrf.mxu0
  %v2841 = vadd.f32 0.0, %v2840
  %v2842 = vpop.f32.mrf.mxu0
  %v2843 = vadd.f32 0.0, %v2842
  %2844 = vdwg.mxu0
  %v2845 = vadd.f32 %v2664, %v2770
  %v2846 = vadd.f32 %v2665, %v2772
  %v2847 = vadd.f32 %v2666, %v2841
  %v2848 = vadd.f32 %v2667, %v2843
  %v2849 = vld [vmem:[#allocation2] sm:$0x77]
  %v2850 = vld [vmem:[#allocation2 + $0x8] sm:$0x77]
  %v2851 = vld [vmem:[#allocation2 + $0x10] sm:$0x7]
  %v2855 = vcombine.high %v2849, %v2849
  %v2856 = vcombine.high %v2850, %v2850
  %2857 = vrot.lane.b32.xlu0 %v2849, 110
  %v2858 = vpop.permute.xlu0 %2857
  %2859 = vrot.lane.b32.xlu0 %v2855, 110
  %v2860 = vpop.permute.xlu0 %2859
  %2861 = vrot.lane.b32.xlu0 %v2850, 110
  %v2862 = vpop.permute.xlu0 %2861
  %2863 = vrot.lane.b32.xlu0 %v2856, 110
  %v2864 = vpop.permute.xlu0 %2863
  %2865 = vrot.lane.b32.xlu0 %v2851, 110
  %v2866 = vpop.permute.xlu0 %2865
  %v2867 = vsel %vm1088, %v2858, %v2860
  %v2868 = vsel %vm1088, %v2860, %v2862
  %v2869 = vsel %vm1088, %v2862, %v2864
  %v2870 = vsel %vm1088, %v2864, %v2866
  %v2875 = vsel %vm1069, %v2867, 0.0
  %v2876 = vsel %vm1070, %v2868, 0.0
  %v2877 = vsel %vm1071, %v2869, 0.0
  %v2878 = vsel %vm1072, %v2870, 0.0
  %s2879 = scalar_lea.vmem %s2, 20
  %v2880 = vld [vmem:[%s2879] sm:$0x7]
  %v2882 = vsel %vm160, %v2880, 0
  %v2885 = vsel %vm164, %v2875, 0
  %v2888 = vsel %vm164, %v2876, 0
  %v2891 = vsel %vm164, %v2877, 0
  %v2894 = vsel %vm164, %v2878, 0
  %2896 = vmatprep.subr.mxu0 0.0
  %2897 = vmatpush1.msra.mxu0 0.0
  %2898 = vmatprep.subr.mxu0 0.0
  %2899 = vmatpush1.msra.mxu0 0.0
  %2900 = vmatprep.subr.mxu0 0.0
  %2901 = vmatpush1.msra.mxu0 0.0
  %2902 = vmatprep.subr.mxu0 0.0
  %2903 = vmatpush1.msra.mxu0 0.0
  %2904 = vmatprep.subr.mxu0 0.0
  %2905 = vmatpush1.msra.mxu0 0.0
  %2906 = vmatprep.subr.mxu0 0.0
  %2907 = vmatpush1.msra.mxu0 0.0
  %2908 = vmatprep.subr.mxu0 0.0
  %2909 = vmatpush1.msra.mxu0 0.0
  %2910 = vmatprep.subr.mxu0 0.0
  %2911 = vmatpush1.msra.mxu0 0.0
  %2912 = vmatprep.subr.mxu0 0.0
  %2913 = vmatpush1.msra.mxu0 0.0
  %2914 = vmatprep.subr.mxu0 0.0
  %2915 = vmatpush1.msra.mxu0 0.0
  %2916 = vmatprep.subr.mxu0 0.0
  %2917 = vmatpush1.msra.mxu0 0.0
  %2918 = vmatprep.subr.mxu0 0.0
  %2919 = vmatpush1.msra.mxu0 0.0
  %2920 = vmatprep.subr.mxu0 0.0
  %2921 = vmatpush1.msra.mxu0 0.0
  %2922 = vmatprep.subr.mxu0 0.0
  %2923 = vmatpush1.msra.mxu0 0.0
  %2924 = vmatprep.subr.mxu0 0.0
  %2925 = vmatpush1.msra.mxu0 0.0
  %2926 = vmatprep.subr.mxu0 %v2888
  %2927 = vmatpush1.msra.mxu0 %v2885
  %2928 = vmatprep.subr.mxu0 0.0
  %2929 = vmatpush2.msra.mxu0 0.0
  %2930 = vmatprep.subr.mxu0 0.0
  %2931 = vmatpush2.msra.mxu0 0.0
  %2932 = vmatprep.subr.mxu0 0.0
  %2933 = vmatpush2.msra.mxu0 0.0
  %2934 = vmatprep.subr.mxu0 0.0
  %2935 = vmatpush2.msra.mxu0 0.0
  %2936 = vmatprep.subr.mxu0 0.0
  %2937 = vmatpush2.msra.mxu0 0.0
  %2938 = vmatprep.subr.mxu0 0.0
  %2939 = vmatpush2.msra.mxu0 0.0
  %2940 = vmatprep.subr.mxu0 0.0
  %2941 = vmatpush2.msra.mxu0 0.0
  %2942 = vmatprep.subr.mxu0 0.0
  %2943 = vmatpush2.msra.mxu0 0.0
  %2944 = vmatprep.subr.mxu0 0.0
  %2945 = vmatpush2.msra.mxu0 0.0
  %2946 = vmatprep.subr.mxu0 0.0
  %2947 = vmatpush2.msra.mxu0 0.0
  %2948 = vmatprep.subr.mxu0 0.0
  %2949 = vmatpush2.msra.mxu0 0.0
  %2950 = vmatprep.subr.mxu0 0.0
  %2951 = vmatpush2.msra.mxu0 0.0
  %2952 = vmatprep.subr.mxu0 0.0
  %2953 = vmatpush2.msra.mxu0 0.0
  %2954 = vmatprep.subr.mxu0 0.0
  %2955 = vmatpush2.msra.mxu0 0.0
  %2956 = vmatprep.subr.mxu0 0.0
  %2957 = vmatpush2.msra.mxu0 0.0
  %2958 = vmatprep.subr.mxu0 0.0
  %2959 = vmatpush2.msra.mxu0 0.0
  %2960 = vmatprep.mubr.f32.mxu0 0.0
  %2961 = vmatmul.mubr.f32.gmra.mxu0 %v2882
  %v2962 = vpop.f32.mrf.mxu0
  %v2963 = vadd.f32 0.0, %v2962
  %v2964 = vpop.f32.mrf.mxu0
  %v2965 = vadd.f32 0.0, %v2964
  %2966 = vdwg.mxu0
  %2967 = vmatprep.subr.mxu0 0.0
  %2968 = vmatpush1.msra.mxu0 0.0
  %2969 = vmatprep.subr.mxu0 0.0
  %2970 = vmatpush1.msra.mxu0 0.0
  %2971 = vmatprep.subr.mxu0 0.0
  %2972 = vmatpush1.msra.mxu0 0.0
  %2973 = vmatprep.subr.mxu0 0.0
  %2974 = vmatpush1.msra.mxu0 0.0
  %2975 = vmatprep.subr.mxu0 0.0
  %2976 = vmatpush1.msra.mxu0 0.0
  %2977 = vmatprep.subr.mxu0 0.0
  %2978 = vmatpush1.msra.mxu0 0.0
  %2979 = vmatprep.subr.mxu0 0.0
  %2980 = vmatpush1.msra.mxu0 0.0
  %2981 = vmatprep.subr.mxu0 0.0
  %2982 = vmatpush1.msra.mxu0 0.0
  %2983 = vmatprep.subr.mxu0 0.0
  %2984 = vmatpush1.msra.mxu0 0.0
  %2985 = vmatprep.subr.mxu0 0.0
  %2986 = vmatpush1.msra.mxu0 0.0
  %2987 = vmatprep.subr.mxu0 0.0
  %2988 = vmatpush1.msra.mxu0 0.0
  %2989 = vmatprep.subr.mxu0 0.0
  %2990 = vmatpush1.msra.mxu0 0.0
  %2991 = vmatprep.subr.mxu0 0.0
  %2992 = vmatpush1.msra.mxu0 0.0
  %2993 = vmatprep.subr.mxu0 0.0
  %2994 = vmatpush1.msra.mxu0 0.0
  %2995 = vmatprep.subr.mxu0 0.0
  %2996 = vmatpush1.msra.mxu0 0.0
  %2997 = vmatprep.subr.mxu0 %v2894
  %2998 = vmatpush1.msra.mxu0 %v2891
  %2999 = vmatprep.subr.mxu0 0.0
  %3000 = vmatpush2.msra.mxu0 0.0
  %3001 = vmatprep.subr.mxu0 0.0
  %3002 = vmatpush2.msra.mxu0 0.0
  %3003 = vmatprep.subr.mxu0 0.0
  %3004 = vmatpush2.msra.mxu0 0.0
  %3005 = vmatprep.subr.mxu0 0.0
  %3006 = vmatpush2.msra.mxu0 0.0
  %3007 = vmatprep.subr.mxu0 0.0
  %3008 = vmatpush2.msra.mxu0 0.0
  %3009 = vmatprep.subr.mxu0 0.0
  %3010 = vmatpush2.msra.mxu0 0.0
  %3011 = vmatprep.subr.mxu0 0.0
  %3012 = vmatpush2.msra.mxu0 0.0
  %3013 = vmatprep.subr.mxu0 0.0
  %3014 = vmatpush2.msra.mxu0 0.0
  %3015 = vmatprep.subr.mxu0 0.0
  %3016 = vmatpush2.msra.mxu0 0.0
  %3017 = vmatprep.subr.mxu0 0.0
  %3018 = vmatpush2.msra.mxu0 0.0
  %3019 = vmatprep.subr.mxu0 0.0
  %3020 = vmatpush2.msra.mxu0 0.0
  %3021 = vmatprep.subr.mxu0 0.0
  %3022 = vmatpush2.msra.mxu0 0.0
  %3023 = vmatprep.subr.mxu0 0.0
  %3024 = vmatpush2.msra.mxu0 0.0
  %3025 = vmatprep.subr.mxu0 0.0
  %3026 = vmatpush2.msra.mxu0 0.0
  %3027 = vmatprep.subr.mxu0 0.0
  %3028 = vmatpush2.msra.mxu0 0.0
  %3029 = vmatprep.subr.mxu0 0.0
  %3030 = vmatpush2.msra.mxu0 0.0
  %3031 = vmatprep.mubr.f32.mxu0 0.0
  %3032 = vmatmul.mubr.f32.gmra.mxu0 %v2882
  %v3033 = vpop.f32.mrf.mxu0
  %v3034 = vadd.f32 0.0, %v3033
  %v3035 = vpop.f32.mrf.mxu0
  %v3036 = vadd.f32 0.0, %v3035
  %3037 = vdwg.mxu0
  %v3038 = vadd.f32 %v2845, %v2963
  %v3039 = vadd.f32 %v2846, %v2965
  %v3040 = vadd.f32 %v2847, %v3034
  %v3041 = vadd.f32 %v2848, %v3036
  %v3042 = vld [vmem:[#allocation2] sm:$0x77]
  %v3043 = vld [vmem:[#allocation2 + $0x8] sm:$0x77]
  %v3044 = vld [vmem:[#allocation2 + $0x10] sm:$0x7]
  %v3048 = vcombine.high %v3042, %v3042
  %v3049 = vcombine.high %v3043, %v3043
  %3050 = vrot.lane.b32.xlu0 %v3042, 96
  %v3051 = vpop.permute.xlu0 %3050
  %3052 = vrot.lane.b32.xlu0 %v3048, 96
  %v3053 = vpop.permute.xlu0 %3052
  %3054 = vrot.lane.b32.xlu0 %v3043, 96
  %v3055 = vpop.permute.xlu0 %3054
  %3056 = vrot.lane.b32.xlu0 %v3049, 96
  %v3057 = vpop.permute.xlu0 %3056
  %3058 = vrot.lane.b32.xlu0 %v3044, 96
  %v3059 = vpop.permute.xlu0 %3058
  %v3060 = vsel %vm1290, %v3051, %v3053
  %v3061 = vsel %vm1290, %v3053, %v3055
  %v3062 = vsel %vm1290, %v3055, %v3057
  %v3063 = vsel %vm1290, %v3057, %v3059
  %v3068 = vsel %vm1271, %v3060, 0.0
  %v3069 = vsel %vm1272, %v3061, 0.0
  %v3070 = vsel %vm1273, %v3062, 0.0
  %v3071 = vsel %vm1274, %v3063, 0.0
  %s3072 = scalar_lea.vmem %s2, 24
  %v3073 = vld [vmem:[%s3072] sm:$0x7]
  %v3075 = vsel %vm160, %v3073, 0
  %v3078 = vsel %vm164, %v3068, 0
  %v3081 = vsel %vm164, %v3069, 0
  %v3084 = vsel %vm164, %v3070, 0
  %v3087 = vsel %vm164, %v3071, 0
  %3089 = vmatprep.subr.mxu0 0.0
  %3090 = vmatpush1.msra.mxu0 0.0
  %3091 = vmatprep.subr.mxu0 0.0
  %3092 = vmatpush1.msra.mxu0 0.0
  %3093 = vmatprep.subr.mxu0 0.0
  %3094 = vmatpush1.msra.mxu0 0.0
  %3095 = vmatprep.subr.mxu0 0.0
  %3096 = vmatpush1.msra.mxu0 0.0
  %3097 = vmatprep.subr.mxu0 0.0
  %3098 = vmatpush1.msra.mxu0 0.0
  %3099 = vmatprep.subr.mxu0 0.0
  %3100 = vmatpush1.msra.mxu0 0.0
  %3101 = vmatprep.subr.mxu0 0.0
  %3102 = vmatpush1.msra.mxu0 0.0
  %3103 = vmatprep.subr.mxu0 0.0
  %3104 = vmatpush1.msra.mxu0 0.0
  %3105 = vmatprep.subr.mxu0 0.0
  %3106 = vmatpush1.msra.mxu0 0.0
  %3107 = vmatprep.subr.mxu0 0.0
  %3108 = vmatpush1.msra.mxu0 0.0
  %3109 = vmatprep.subr.mxu0 0.0
  %3110 = vmatpush1.msra.mxu0 0.0
  %3111 = vmatprep.subr.mxu0 0.0
  %3112 = vmatpush1.msra.mxu0 0.0
  %3113 = vmatprep.subr.mxu0 0.0
  %3114 = vmatpush1.msra.mxu0 0.0
  %3115 = vmatprep.subr.mxu0 0.0
  %3116 = vmatpush1.msra.mxu0 0.0
  %3117 = vmatprep.subr.mxu0 0.0
  %3118 = vmatpush1.msra.mxu0 0.0
  %3119 = vmatprep.subr.mxu0 %v3081
  %3120 = vmatpush1.msra.mxu0 %v3078
  %3121 = vmatprep.subr.mxu0 0.0
  %3122 = vmatpush2.msra.mxu0 0.0
  %3123 = vmatprep.subr.mxu0 0.0
  %3124 = vmatpush2.msra.mxu0 0.0
  %3125 = vmatprep.subr.mxu0 0.0
  %3126 = vmatpush2.msra.mxu0 0.0
  %3127 = vmatprep.subr.mxu0 0.0
  %3128 = vmatpush2.msra.mxu0 0.0
  %3129 = vmatprep.subr.mxu0 0.0
  %3130 = vmatpush2.msra.mxu0 0.0
  %3131 = vmatprep.subr.mxu0 0.0
  %3132 = vmatpush2.msra.mxu0 0.0
  %3133 = vmatprep.subr.mxu0 0.0
  %3134 = vmatpush2.msra.mxu0 0.0
  %3135 = vmatprep.subr.mxu0 0.0
  %3136 = vmatpush2.msra.mxu0 0.0
  %3137 = vmatprep.subr.mxu0 0.0
  %3138 = vmatpush2.msra.mxu0 0.0
  %3139 = vmatprep.subr.mxu0 0.0
  %3140 = vmatpush2.msra.mxu0 0.0
  %3141 = vmatprep.subr.mxu0 0.0
  %3142 = vmatpush2.msra.mxu0 0.0
  %3143 = vmatprep.subr.mxu0 0.0
  %3144 = vmatpush2.msra.mxu0 0.0
  %3145 = vmatprep.subr.mxu0 0.0
  %3146 = vmatpush2.msra.mxu0 0.0
  %3147 = vmatprep.subr.mxu0 0.0
  %3148 = vmatpush2.msra.mxu0 0.0
  %3149 = vmatprep.subr.mxu0 0.0
  %3150 = vmatpush2.msra.mxu0 0.0
  %3151 = vmatprep.subr.mxu0 0.0
  %3152 = vmatpush2.msra.mxu0 0.0
  %3153 = vmatprep.mubr.f32.mxu0 0.0
  %3154 = vmatmul.mubr.f32.gmra.mxu0 %v3075
  %v3155 = vpop.f32.mrf.mxu0
  %v3156 = vadd.f32 0.0, %v3155
  %v3157 = vpop.f32.mrf.mxu0
  %v3158 = vadd.f32 0.0, %v3157
  %3159 = vdwg.mxu0
  %3160 = vmatprep.subr.mxu0 0.0
  %3161 = vmatpush1.msra.mxu0 0.0
  %3162 = vmatprep.subr.mxu0 0.0
  %3163 = vmatpush1.msra.mxu0 0.0
  %3164 = vmatprep.subr.mxu0 0.0
  %3165 = vmatpush1.msra.mxu0 0.0
  %3166 = vmatprep.subr.mxu0 0.0
  %3167 = vmatpush1.msra.mxu0 0.0
  %3168 = vmatprep.subr.mxu0 0.0
  %3169 = vmatpush1.msra.mxu0 0.0
  %3170 = vmatprep.subr.mxu0 0.0
  %3171 = vmatpush1.msra.mxu0 0.0
  %3172 = vmatprep.subr.mxu0 0.0
  %3173 = vmatpush1.msra.mxu0 0.0
  %3174 = vmatprep.subr.mxu0 0.0
  %3175 = vmatpush1.msra.mxu0 0.0
  %3176 = vmatprep.subr.mxu0 0.0
  %3177 = vmatpush1.msra.mxu0 0.0
  %3178 = vmatprep.subr.mxu0 0.0
  %3179 = vmatpush1.msra.mxu0 0.0
  %3180 = vmatprep.subr.mxu0 0.0
  %3181 = vmatpush1.msra.mxu0 0.0
  %3182 = vmatprep.subr.mxu0 0.0
  %3183 = vmatpush1.msra.mxu0 0.0
  %3184 = vmatprep.subr.mxu0 0.0
  %3185 = vmatpush1.msra.mxu0 0.0
  %3186 = vmatprep.subr.mxu0 0.0
  %3187 = vmatpush1.msra.mxu0 0.0
  %3188 = vmatprep.subr.mxu0 0.0
  %3189 = vmatpush1.msra.mxu0 0.0
  %3190 = vmatprep.subr.mxu0 %v3087
  %3191 = vmatpush1.msra.mxu0 %v3084
  %3192 = vmatprep.subr.mxu0 0.0
  %3193 = vmatpush2.msra.mxu0 0.0
  %3194 = vmatprep.subr.mxu0 0.0
  %3195 = vmatpush2.msra.mxu0 0.0
  %3196 = vmatprep.subr.mxu0 0.0
  %3197 = vmatpush2.msra.mxu0 0.0
  %3198 = vmatprep.subr.mxu0 0.0
  %3199 = vmatpush2.msra.mxu0 0.0
  %3200 = vmatprep.subr.mxu0 0.0
  %3201 = vmatpush2.msra.mxu0 0.0
  %3202 = vmatprep.subr.mxu0 0.0
  %3203 = vmatpush2.msra.mxu0 0.0
  %3204 = vmatprep.subr.mxu0 0.0
  %3205 = vmatpush2.msra.mxu0 0.0
  %3206 = vmatprep.subr.mxu0 0.0
  %3207 = vmatpush2.msra.mxu0 0.0
  %3208 = vmatprep.subr.mxu0 0.0
  %3209 = vmatpush2.msra.mxu0 0.0
  %3210 = vmatprep.subr.mxu0 0.0
  %3211 = vmatpush2.msra.mxu0 0.0
  %3212 = vmatprep.subr.mxu0 0.0
  %3213 = vmatpush2.msra.mxu0 0.0
  %3214 = vmatprep.subr.mxu0 0.0
  %3215 = vmatpush2.msra.mxu0 0.0
  %3216 = vmatprep.subr.mxu0 0.0
  %3217 = vmatpush2.msra.mxu0 0.0
  %3218 = vmatprep.subr.mxu0 0.0
  %3219 = vmatpush2.msra.mxu0 0.0
  %3220 = vmatprep.subr.mxu0 0.0
  %3221 = vmatpush2.msra.mxu0 0.0
  %3222 = vmatprep.subr.mxu0 0.0
  %3223 = vmatpush2.msra.mxu0 0.0
  %3224 = vmatprep.mubr.f32.mxu0 0.0
  %3225 = vmatmul.mubr.f32.gmra.mxu0 %v3075
  %v3226 = vpop.f32.mrf.mxu0
  %v3227 = vadd.f32 0.0, %v3226
  %v3228 = vpop.f32.mrf.mxu0
  %v3229 = vadd.f32 0.0, %v3228
  %3230 = vdwg.mxu0
  %v3231 = vadd.f32 %v3038, %v3156
  %v3232 = vadd.f32 %v3039, %v3158
  %v3233 = vadd.f32 %v3040, %v3227
  %v3234 = vadd.f32 %v3041, %v3229
  %v3235 = vld [vmem:[#allocation2] sm:$0x77]
  %v3236 = vld [vmem:[#allocation2 + $0x8] sm:$0x77]
  %v3237 = vld [vmem:[#allocation2 + $0x10] sm:$0x7]
  %v3241 = vcombine.high %v3235, %v3235
  %v3242 = vcombine.high %v3236, %v3236
  %3243 = vrot.lane.b32.xlu0 %v3235, 95
  %v3244 = vpop.permute.xlu0 %3243
  %3245 = vrot.lane.b32.xlu0 %v3241, 95
  %v3246 = vpop.permute.xlu0 %3245
  %3247 = vrot.lane.b32.xlu0 %v3236, 95
  %v3248 = vpop.permute.xlu0 %3247
  %3249 = vrot.lane.b32.xlu0 %v3242, 95
  %v3250 = vpop.permute.xlu0 %3249
  %3251 = vrot.lane.b32.xlu0 %v3237, 95
  %v3252 = vpop.permute.xlu0 %3251
  %v3253 = vsel %vm1492, %v3244, %v3246
  %v3254 = vsel %vm1492, %v3246, %v3248
  %v3255 = vsel %vm1492, %v3248, %v3250
  %v3256 = vsel %vm1492, %v3250, %v3252
  %v3261 = vsel %vm1473, %v3253, 0.0
  %v3262 = vsel %vm1474, %v3254, 0.0
  %v3263 = vsel %vm1475, %v3255, 0.0
  %v3264 = vsel %vm1476, %v3256, 0.0
  %s3265 = scalar_lea.vmem %s2, 28
  %v3266 = vld [vmem:[%s3265] sm:$0x7]
  %v3268 = vsel %vm160, %v3266, 0
  %v3271 = vsel %vm164, %v3261, 0
  %v3274 = vsel %vm164, %v3262, 0
  %v3277 = vsel %vm164, %v3263, 0
  %v3280 = vsel %vm164, %v3264, 0
  %3282 = vmatprep.subr.mxu0 0.0
  %3283 = vmatpush1.msra.mxu0 0.0
  %3284 = vmatprep.subr.mxu0 0.0
  %3285 = vmatpush1.msra.mxu0 0.0
  %3286 = vmatprep.subr.mxu0 0.0
  %3287 = vmatpush1.msra.mxu0 0.0
  %3288 = vmatprep.subr.mxu0 0.0
  %3289 = vmatpush1.msra.mxu0 0.0
  %3290 = vmatprep.subr.mxu0 0.0
  %3291 = vmatpush1.msra.mxu0 0.0
  %3292 = vmatprep.subr.mxu0 0.0
  %3293 = vmatpush1.msra.mxu0 0.0
  %3294 = vmatprep.subr.mxu0 0.0
  %3295 = vmatpush1.msra.mxu0 0.0
  %3296 = vmatprep.subr.mxu0 0.0
  %3297 = vmatpush1.msra.mxu0 0.0
  %3298 = vmatprep.subr.mxu0 0.0
  %3299 = vmatpush1.msra.mxu0 0.0
  %3300 = vmatprep.subr.mxu0 0.0
  %3301 = vmatpush1.msra.mxu0 0.0
  %3302 = vmatprep.subr.mxu0 0.0
  %3303 = vmatpush1.msra.mxu0 0.0
  %3304 = vmatprep.subr.mxu0 0.0
  %3305 = vmatpush1.msra.mxu0 0.0
  %3306 = vmatprep.subr.mxu0 0.0
  %3307 = vmatpush1.msra.mxu0 0.0
  %3308 = vmatprep.subr.mxu0 0.0
  %3309 = vmatpush1.msra.mxu0 0.0
  %3310 = vmatprep.subr.mxu0 0.0
  %3311 = vmatpush1.msra.mxu0 0.0
  %3312 = vmatprep.subr.mxu0 %v3274
  %3313 = vmatpush1.msra.mxu0 %v3271
  %3314 = vmatprep.subr.mxu0 0.0
  %3315 = vmatpush2.msra.mxu0 0.0
  %3316 = vmatprep.subr.mxu0 0.0
  %3317 = vmatpush2.msra.mxu0 0.0
  %3318 = vmatprep.subr.mxu0 0.0
  %3319 = vmatpush2.msra.mxu0 0.0
  %3320 = vmatprep.subr.mxu0 0.0
  %3321 = vmatpush2.msra.mxu0 0.0
  %3322 = vmatprep.subr.mxu0 0.0
  %3323 = vmatpush2.msra.mxu0 0.0
  %3324 = vmatprep.subr.mxu0 0.0
  %3325 = vmatpush2.msra.mxu0 0.0
  %3326 = vmatprep.subr.mxu0 0.0
  %3327 = vmatpush2.msra.mxu0 0.0
  %3328 = vmatprep.subr.mxu0 0.0
  %3329 = vmatpush2.msra.mxu0 0.0
  %3330 = vmatprep.subr.mxu0 0.0
  %3331 = vmatpush2.msra.mxu0 0.0
  %3332 = vmatprep.subr.mxu0 0.0
  %3333 = vmatpush2.msra.mxu0 0.0
  %3334 = vmatprep.subr.mxu0 0.0
  %3335 = vmatpush2.msra.mxu0 0.0
  %3336 = vmatprep.subr.mxu0 0.0
  %3337 = vmatpush2.msra.mxu0 0.0
  %3338 = vmatprep.subr.mxu0 0.0
  %3339 = vmatpush2.msra.mxu0 0.0
  %3340 = vmatprep.subr.mxu0 0.0
  %3341 = vmatpush2.msra.mxu0 0.0
  %3342 = vmatprep.subr.mxu0 0.0
  %3343 = vmatpush2.msra.mxu0 0.0
  %3344 = vmatprep.subr.mxu0 0.0
  %3345 = vmatpush2.msra.mxu0 0.0
  %3346 = vmatprep.mubr.f32.mxu0 0.0
  %3347 = vmatmul.mubr.f32.gmra.mxu0 %v3268
  %v3348 = vpop.f32.mrf.mxu0
  %v3349 = vadd.f32 0.0, %v3348
  %v3350 = vpop.f32.mrf.mxu0
  %v3351 = vadd.f32 0.0, %v3350
  %3352 = vdwg.mxu0
  %3353 = vmatprep.subr.mxu0 0.0
  %3354 = vmatpush1.msra.mxu0 0.0
  %3355 = vmatprep.subr.mxu0 0.0
  %3356 = vmatpush1.msra.mxu0 0.0
  %3357 = vmatprep.subr.mxu0 0.0
  %3358 = vmatpush1.msra.mxu0 0.0
  %3359 = vmatprep.subr.mxu0 0.0
  %3360 = vmatpush1.msra.mxu0 0.0
  %3361 = vmatprep.subr.mxu0 0.0
  %3362 = vmatpush1.msra.mxu0 0.0
  %3363 = vmatprep.subr.mxu0 0.0
  %3364 = vmatpush1.msra.mxu0 0.0
  %3365 = vmatprep.subr.mxu0 0.0
  %3366 = vmatpush1.msra.mxu0 0.0
  %3367 = vmatprep.subr.mxu0 0.0
  %3368 = vmatpush1.msra.mxu0 0.0
  %3369 = vmatprep.subr.mxu0 0.0
  %3370 = vmatpush1.msra.mxu0 0.0
  %3371 = vmatprep.subr.mxu0 0.0
  %3372 = vmatpush1.msra.mxu0 0.0
  %3373 = vmatprep.subr.mxu0 0.0
  %3374 = vmatpush1.msra.mxu0 0.0
  %3375 = vmatprep.subr.mxu0 0.0
  %3376 = vmatpush1.msra.mxu0 0.0
  %3377 = vmatprep.subr.mxu0 0.0
  %3378 = vmatpush1.msra.mxu0 0.0
  %3379 = vmatprep.subr.mxu0 0.0
  %3380 = vmatpush1.msra.mxu0 0.0
  %3381 = vmatprep.subr.mxu0 0.0
  %3382 = vmatpush1.msra.mxu0 0.0
  %3383 = vmatprep.subr.mxu0 %v3280
  %3384 = vmatpush1.msra.mxu0 %v3277
  %3385 = vmatprep.subr.mxu0 0.0
  %3386 = vmatpush2.msra.mxu0 0.0
  %3387 = vmatprep.subr.mxu0 0.0
  %3388 = vmatpush2.msra.mxu0 0.0
  %3389 = vmatprep.subr.mxu0 0.0
  %3390 = vmatpush2.msra.mxu0 0.0
  %3391 = vmatprep.subr.mxu0 0.0
  %3392 = vmatpush2.msra.mxu0 0.0
  %3393 = vmatprep.subr.mxu0 0.0
  %3394 = vmatpush2.msra.mxu0 0.0
  %3395 = vmatprep.subr.mxu0 0.0
  %3396 = vmatpush2.msra.mxu0 0.0
  %3397 = vmatprep.subr.mxu0 0.0
  %3398 = vmatpush2.msra.mxu0 0.0
  %3399 = vmatprep.subr.mxu0 0.0
  %3400 = vmatpush2.msra.mxu0 0.0
  %3401 = vmatprep.subr.mxu0 0.0
  %3402 = vmatpush2.msra.mxu0 0.0
  %3403 = vmatprep.subr.mxu0 0.0
  %3404 = vmatpush2.msra.mxu0 0.0
  %3405 = vmatprep.subr.mxu0 0.0
  %3406 = vmatpush2.msra.mxu0 0.0
  %3407 = vmatprep.subr.mxu0 0.0
  %3408 = vmatpush2.msra.mxu0 0.0
  %3409 = vmatprep.subr.mxu0 0.0
  %3410 = vmatpush2.msra.mxu0 0.0
  %3411 = vmatprep.subr.mxu0 0.0
  %3412 = vmatpush2.msra.mxu0 0.0
  %3413 = vmatprep.subr.mxu0 0.0
  %3414 = vmatpush2.msra.mxu0 0.0
  %3415 = vmatprep.subr.mxu0 0.0
  %3416 = vmatpush2.msra.mxu0 0.0
  %3417 = vmatprep.mubr.f32.mxu0 0.0
  %3418 = vmatmul.mubr.f32.gmra.mxu0 %v3268
  %v3419 = vpop.f32.mrf.mxu0
  %v3420 = vadd.f32 0.0, %v3419
  %v3421 = vpop.f32.mrf.mxu0
  %v3422 = vadd.f32 0.0, %v3421
  %3423 = vdwg.mxu0
  %v3424 = vadd.f32 %v3231, %v3349
  %v3425 = vadd.f32 %v3232, %v3351
  %v3426 = vadd.f32 %v3233, %v3420
  %v3427 = vadd.f32 %v3234, %v3422
  %v3428 = vld [vmem:[#allocation2] sm:$0x77]
  %v3429 = vld [vmem:[#allocation2 + $0x8] sm:$0x77]
  %v3430 = vld [vmem:[#allocation2 + $0x10] sm:$0x7]
  %v3434 = vcombine.high %v3428, %v3428
  %v3435 = vcombine.high %v3429, %v3429
  %3436 = vrot.lane.b32.xlu0 %v3428, 94
  %v3437 = vpop.permute.xlu0 %3436
  %3438 = vrot.lane.b32.xlu0 %v3434, 94
  %v3439 = vpop.permute.xlu0 %3438
  %3440 = vrot.lane.b32.xlu0 %v3429, 94
  %v3441 = vpop.permute.xlu0 %3440
  %3442 = vrot.lane.b32.xlu0 %v3435, 94
  %v3443 = vpop.permute.xlu0 %3442
  %3444 = vrot.lane.b32.xlu0 %v3430, 94
  %v3445 = vpop.permute.xlu0 %3444
  %v3446 = vsel %vm1694, %v3437, %v3439
  %v3447 = vsel %vm1694, %v3439, %v3441
  %v3448 = vsel %vm1694, %v3441, %v3443
  %v3449 = vsel %vm1694, %v3443, %v3445
  %v3454 = vsel %vm1675, %v3446, 0.0
  %v3455 = vsel %vm1676, %v3447, 0.0
  %v3456 = vsel %vm1677, %v3448, 0.0
  %v3457 = vsel %vm1678, %v3449, 0.0
  %s3458 = scalar_lea.vmem %s2, 32
  %v3459 = vld [vmem:[%s3458] sm:$0x7]
  %v3461 = vsel %vm160, %v3459, 0
  %v3464 = vsel %vm164, %v3454, 0
  %v3467 = vsel %vm164, %v3455, 0
  %v3470 = vsel %vm164, %v3456, 0
  %v3473 = vsel %vm164, %v3457, 0
  %3475 = vmatprep.subr.mxu0 0.0
  %3476 = vmatpush1.msra.mxu0 0.0
  %3477 = vmatprep.subr.mxu0 0.0
  %3478 = vmatpush1.msra.mxu0 0.0
  %3479 = vmatprep.subr.mxu0 0.0
  %3480 = vmatpush1.msra.mxu0 0.0
  %3481 = vmatprep.subr.mxu0 0.0
  %3482 = vmatpush1.msra.mxu0 0.0
  %3483 = vmatprep.subr.mxu0 0.0
  %3484 = vmatpush1.msra.mxu0 0.0
  %3485 = vmatprep.subr.mxu0 0.0
  %3486 = vmatpush1.msra.mxu0 0.0
  %3487 = vmatprep.subr.mxu0 0.0
  %3488 = vmatpush1.msra.mxu0 0.0
  %3489 = vmatprep.subr.mxu0 0.0
  %3490 = vmatpush1.msra.mxu0 0.0
  %3491 = vmatprep.subr.mxu0 0.0
  %3492 = vmatpush1.msra.mxu0 0.0
  %3493 = vmatprep.subr.mxu0 0.0
  %3494 = vmatpush1.msra.mxu0 0.0
  %3495 = vmatprep.subr.mxu0 0.0
  %3496 = vmatpush1.msra.mxu0 0.0
  %3497 = vmatprep.subr.mxu0 0.0
  %3498 = vmatpush1.msra.mxu0 0.0
  %3499 = vmatprep.subr.mxu0 0.0
  %3500 = vmatpush1.msra.mxu0 0.0
  %3501 = vmatprep.subr.mxu0 0.0
  %3502 = vmatpush1.msra.mxu0 0.0
  %3503 = vmatprep.subr.mxu0 0.0
  %3504 = vmatpush1.msra.mxu0 0.0
  %3505 = vmatprep.subr.mxu0 %v3467
  %3506 = vmatpush1.msra.mxu0 %v3464
  %3507 = vmatprep.subr.mxu0 0.0
  %3508 = vmatpush2.msra.mxu0 0.0
  %3509 = vmatprep.subr.mxu0 0.0
  %3510 = vmatpush2.msra.mxu0 0.0
  %3511 = vmatprep.subr.mxu0 0.0
  %3512 = vmatpush2.msra.mxu0 0.0
  %3513 = vmatprep.subr.mxu0 0.0
  %3514 = vmatpush2.msra.mxu0 0.0
  %3515 = vmatprep.subr.mxu0 0.0
  %3516 = vmatpush2.msra.mxu0 0.0
  %3517 = vmatprep.subr.mxu0 0.0
  %3518 = vmatpush2.msra.mxu0 0.0
  %3519 = vmatprep.subr.mxu0 0.0
  %3520 = vmatpush2.msra.mxu0 0.0
  %3521 = vmatprep.subr.mxu0 0.0
  %3522 = vmatpush2.msra.mxu0 0.0
  %3523 = vmatprep.subr.mxu0 0.0
  %3524 = vmatpush2.msra.mxu0 0.0
  %3525 = vmatprep.subr.mxu0 0.0
  %3526 = vmatpush2.msra.mxu0 0.0
  %3527 = vmatprep.subr.mxu0 0.0
  %3528 = vmatpush2.msra.mxu0 0.0
  %3529 = vmatprep.subr.mxu0 0.0
  %3530 = vmatpush2.msra.mxu0 0.0
  %3531 = vmatprep.subr.mxu0 0.0
  %3532 = vmatpush2.msra.mxu0 0.0
  %3533 = vmatprep.subr.mxu0 0.0
  %3534 = vmatpush2.msra.mxu0 0.0
  %3535 = vmatprep.subr.mxu0 0.0
  %3536 = vmatpush2.msra.mxu0 0.0
  %3537 = vmatprep.subr.mxu0 0.0
  %3538 = vmatpush2.msra.mxu0 0.0
  %3539 = vmatprep.mubr.f32.mxu0 0.0
  %3540 = vmatmul.mubr.f32.gmra.mxu0 %v3461
  %v3541 = vpop.f32.mrf.mxu0
  %v3542 = vadd.f32 0.0, %v3541
  %v3543 = vpop.f32.mrf.mxu0
  %v3544 = vadd.f32 0.0, %v3543
  %3545 = vdwg.mxu0
  %3546 = vmatprep.subr.mxu0 0.0
  %3547 = vmatpush1.msra.mxu0 0.0
  %3548 = vmatprep.subr.mxu0 0.0
  %3549 = vmatpush1.msra.mxu0 0.0
  %3550 = vmatprep.subr.mxu0 0.0
  %3551 = vmatpush1.msra.mxu0 0.0
  %3552 = vmatprep.subr.mxu0 0.0
  %3553 = vmatpush1.msra.mxu0 0.0
  %3554 = vmatprep.subr.mxu0 0.0
  %3555 = vmatpush1.msra.mxu0 0.0
  %3556 = vmatprep.subr.mxu0 0.0
  %3557 = vmatpush1.msra.mxu0 0.0
  %3558 = vmatprep.subr.mxu0 0.0
  %3559 = vmatpush1.msra.mxu0 0.0
  %3560 = vmatprep.subr.mxu0 0.0
  %3561 = vmatpush1.msra.mxu0 0.0
  %3562 = vmatprep.subr.mxu0 0.0
  %3563 = vmatpush1.msra.mxu0 0.0
  %3564 = vmatprep.subr.mxu0 0.0
  %3565 = vmatpush1.msra.mxu0 0.0
  %3566 = vmatprep.subr.mxu0 0.0
  %3567 = vmatpush1.msra.mxu0 0.0
  %3568 = vmatprep.subr.mxu0 0.0
  %3569 = vmatpush1.msra.mxu0 0.0
  %3570 = vmatprep.subr.mxu0 0.0
  %3571 = vmatpush1.msra.mxu0 0.0
  %3572 = vmatprep.subr.mxu0 0.0
  %3573 = vmatpush1.msra.mxu0 0.0
  %3574 = vmatprep.subr.mxu0 0.0
  %3575 = vmatpush1.msra.mxu0 0.0
  %3576 = vmatprep.subr.mxu0 %v3473
  %3577 = vmatpush1.msra.mxu0 %v3470
  %3578 = vmatprep.subr.mxu0 0.0
  %3579 = vmatpush2.msra.mxu0 0.0
  %3580 = vmatprep.subr.mxu0 0.0
  %3581 = vmatpush2.msra.mxu0 0.0
  %3582 = vmatprep.subr.mxu0 0.0
  %3583 = vmatpush2.msra.mxu0 0.0
  %3584 = vmatprep.subr.mxu0 0.0
  %3585 = vmatpush2.msra.mxu0 0.0
  %3586 = vmatprep.subr.mxu0 0.0
  %3587 = vmatpush2.msra.mxu0 0.0
  %3588 = vmatprep.subr.mxu0 0.0
  %3589 = vmatpush2.msra.mxu0 0.0
  %3590 = vmatprep.subr.mxu0 0.0
  %3591 = vmatpush2.msra.mxu0 0.0
  %3592 = vmatprep.subr.mxu0 0.0
  %3593 = vmatpush2.msra.mxu0 0.0
  %3594 = vmatprep.subr.mxu0 0.0
  %3595 = vmatpush2.msra.mxu0 0.0
  %3596 = vmatprep.subr.mxu0 0.0
  %3597 = vmatpush2.msra.mxu0 0.0
  %3598 = vmatprep.subr.mxu0 0.0
  %3599 = vmatpush2.msra.mxu0 0.0
  %3600 = vmatprep.subr.mxu0 0.0
  %3601 = vmatpush2.msra.mxu0 0.0
  %3602 = vmatprep.subr.mxu0 0.0
  %3603 = vmatpush2.msra.mxu0 0.0
  %3604 = vmatprep.subr.mxu0 0.0
  %3605 = vmatpush2.msra.mxu0 0.0
  %3606 = vmatprep.subr.mxu0 0.0
  %3607 = vmatpush2.msra.mxu0 0.0
  %3608 = vmatprep.subr.mxu0 0.0
  %3609 = vmatpush2.msra.mxu0 0.0
  %3610 = vmatprep.mubr.f32.mxu0 0.0
  %3611 = vmatmul.mubr.f32.gmra.mxu0 %v3461
  %v3612 = vpop.f32.mrf.mxu0
  %v3613 = vadd.f32 0.0, %v3612
  %v3614 = vpop.f32.mrf.mxu0
  %v3615 = vadd.f32 0.0, %v3614
  %3616 = vdwg.mxu0
  %v3617 = vadd.f32 %v3424, %v3542
  %v3618 = vadd.f32 %v3425, %v3544
  %v3619 = vadd.f32 %v3426, %v3613
  %v3620 = vadd.f32 %v3427, %v3615
  %v3621 = vld [vmem:[%s3] sm:$0x7]
  %3623 = vset.pattern.permute.xlu0 0
  %3624 = vperm.xlu0 %3623, %v3621
  %v3625 = vpop.permute.xlu0 %3624
  %v3627 = vadd.f32 %v3617, %v3625
  %v3628 = vadd.f32 %v3618, %v3625
  %v3629 = vadd.f32 %v3619, %v3625
  %v3630 = vadd.f32 %v3620, %v3625
  %v3631 = vxor.u32 %v3627, 2147483648
  %v3632 = vxor.u32 %v3628, 2147483648
  %v3633 = vxor.u32 %v3629, 2147483648
  %v3634 = vxor.u32 %v3630, 2147483648
  %v3635 = vmul.f32 %v3631, 1.442695
  %v3636 = vpow.pop %v3635
  %v3637 = vmul.f32 %v3632, 1.442695
  %v3638 = vpow.pop %v3637
  %v3639 = vmul.f32 %v3633, 1.442695
  %v3640 = vpow.pop %v3639
  %v3641 = vmul.f32 %v3634, 1.442695
  %v3642 = vpow.pop %v3641
  %v3643 = vadd.f32 %v3636, 1.0
  %v3644 = vadd.f32 %v3638, 1.0
  %v3645 = vadd.f32 %v3640, 1.0
  %v3646 = vadd.f32 %v3642, 1.0
  %v3647 = vrcp.pop %v3643
  %v3648 = vmul.f32 1.0, %v3647
  %v3649 = vrcp.pop %v3644
  %v3650 = vmul.f32 1.0, %v3649
  %v3651 = vrcp.pop %v3645
  %v3652 = vmul.f32 1.0, %v3651
  %v3653 = vrcp.pop %v3646
  %v3654 = vmul.f32 1.0, %v3653
  %v3657 = vcombine.low %v3648, %v3650
  %3659 = vst [vmem:[%s5] sm:$0x77] %v3657
  %v3662 = vcombine.low %v3652, %v3654
  %s3664 = scalar_lea.vmem %s5, 8
  %3665 = vst [vmem:[%s3664] sm:$0x77] %v3662
  // Predicated region
  $region22: #{dacon_forward.1} parent=0 // pred_check
    _
  $region23: #{dacon_forward.1} parent=0 // pred_check_branch
    %3667 = sbr.rel (0) target = $region25
  $region24: #{dacon_forward.1} parent=0 // pred_region
    _
  $region25: #{dacon_forward.1} parent=0 // pred_fallthru
    _
  // Predicated region
  $region26: #{dacon_forward.1} parent=0 // pred_check
    _
  $region27: #{dacon_forward.1} parent=0 // pred_check_branch
    %3669 = sbr.rel (0) target = $region29
  $region28: #{dacon_forward.1} parent=0 // pred_region
    _
  $region29: #{dacon_forward.1} parent=0 // pred_fallthru
    _

</llo_original>
